<compile_context>
chip_gen: v7x
topology: tpu7x:2x2x1
jax: 0.10.0
libtpu: 0.0.40
codegen_flags: <defaults>
</compile_context>

<pallas_src>
import functools

import jax
import jax.numpy as jnp
from jax.experimental import pallas as pl
from jax.experimental.pallas import tpu as pltpu


# ----------------------------------------------------------------------------
# Fused CoAttention kernel: one batch element per grid step, heads unrolled.
# ----------------------------------------------------------------------------
def _coattention_kernel(
    img_ref, txt_ref,
    img_w_ref, img_b_ref, txt_w_ref, txt_b_ref,
    w_img_side_ref, w_txt_side_ref,
    i2t_fc_ref, i2t_g_ref, i2t_beta_ref,
    t2i_fc_ref, t2i_g_ref, t2i_beta_ref,
    img_out_ref, txt_out_ref,
    *, n_head, d_k, d_v,
):
    qdim = n_head * d_k          # width of the query section of the fused QKV output
    vdim = n_head * d_v

    # ---- input projections (bias=True, like nn.Linear); bf16 MXU, f32 accumulate ----
    img = img_ref[0]             # [n_img, img_dim]  bf16
    txt = txt_ref[0]             # [n_txt, txt_dim]  bf16
    img_p = (jnp.dot(img, img_w_ref[...], preferred_element_type=jnp.float32)
             + img_b_ref[...])   # [n_img, d_model]  f32
    txt_p = (jnp.dot(txt, txt_w_ref[...], preferred_element_type=jnp.float32)
             + txt_b_ref[...])   # [n_txt, d_model]  f32

    # ---- fused QKV: one matmul per source tensor ----
    # img side -> [ q(i2t, pre-scaled) | k(t2i) | v(t2i) ]
    # txt side -> [ q(t2i, pre-scaled) | k(i2t) | v(i2t) ]
    img_qkv = jnp.dot(img_p.astype(jnp.bfloat16), w_img_side_ref[...],
                      preferred_element_type=jnp.float32)   # [n_img, 2*qdim + vdim]
    txt_qkv = jnp.dot(txt_p.astype(jnp.bfloat16), w_txt_side_ref[...],
                      preferred_element_type=jnp.float32)   # [n_txt, 2*qdim + vdim]

    def mha(q_all, k_all, v_all, fc_w, residual, gamma, beta):
        # q_all: [Lq, H*d_k] (temperature already folded in), k_all: [Lkv, H*d_k],
        # v_all: [Lkv, H*d_v], fc_w: [H*d_v, d_model], residual: [Lq, d_model].
        out = jnp.zeros(residual.shape, jnp.float32)
        for h in range(n_head):                              # static unroll (tiny H)
            qh = q_all[:, h * d_k:(h + 1) * d_k]
            kh = k_all[:, h * d_k:(h + 1) * d_k]
            vh = v_all[:, h * d_v:(h + 1) * d_v]
            # Contract last dims directly (no explicit transpose of k).
            s = jax.lax.dot_general(
                qh, kh, dimension_numbers=(((1,), (1,)), ((), ())),
                preferred_element_type=jnp.float32)          # [Lq, Lkv]
            s = s - jnp.max(s, axis=-1, keepdims=True)
            p = jnp.exp(s)
            p = p / jnp.sum(p, axis=-1, keepdims=True)
            ctx = jnp.dot(p, vh, preferred_element_type=jnp.float32)      # [Lq, d_v]
            out = out + jnp.dot(ctx, fc_w[h * d_v:(h + 1) * d_v, :],
                                preferred_element_type=jnp.float32)       # [Lq, D]
        # dropout is identity in eval; residual + LayerNorm (eps=1e-5, biased var)
        res = out + residual
        mean = jnp.mean(res, axis=-1, keepdims=True)
        var = jnp.mean((res - mean) ** 2, axis=-1, keepdims=True)
        return (res - mean) * jax.lax.rsqrt(var + 1e-5) * gamma + beta

    # image-to-text attention (queries = img, keys/values = txt)
    img_out_ref[0] = mha(
        img_qkv[:, :qdim],
        txt_qkv[:, qdim:2 * qdim],
        txt_qkv[:, 2 * qdim:2 * qdim + vdim],
        i2t_fc_ref[...], img_p, i2t_g_ref[...], i2t_beta_ref[...],
    ).astype(img_out_ref.dtype)

    # text-to-image attention (queries = txt, keys/values = img)
    txt_out_ref[0] = mha(
        txt_qkv[:, :qdim],
        img_qkv[:, qdim:2 * qdim],
        img_qkv[:, 2 * qdim:2 * qdim + vdim],
        t2i_fc_ref[...], txt_p, t2i_g_ref[...], t2i_beta_ref[...],
    ).astype(txt_out_ref.dtype)


# ----------------------------------------------------------------------------
# Wrapper: weight fusion / re-layout (bf16) + single pallas_call, grid=(B,)
# ----------------------------------------------------------------------------
def coattention_forward(params, img_features, txt_features, *, n_head, d_k, d_v):
    B, n_img, img_dim = img_features.shape
    _, n_txt, txt_dim = txt_features.shape
    d_model = params["img_proj_w"].shape[1]
    qdim = n_head * d_k
    vdim = n_head * d_v
    fused = 2 * qdim + vdim
    inv_temp = 1.0 / (d_k ** 0.5)

    i2t_wq, i2t_wk, i2t_wv, i2t_fc, i2t_g, i2t_beta = params["i2t"]
    t2i_wq, t2i_wk, t2i_wv, t2i_fc, t2i_g, t2i_beta = params["t2i"]

    # Fused per-source QKV operands; fold the softmax temperature into the query weights.
    w_img_side = jnp.concatenate(
        [i2t_wq * inv_temp, t2i_wk, t2i_wv], axis=1).astype(jnp.bfloat16)   # [D, fused]
    w_txt_side = jnp.concatenate(
        [t2i_wq * inv_temp, i2t_wk, i2t_wv], axis=1).astype(jnp.bfloat16)   # [D, fused]

    args = (
        img_features.astype(jnp.bfloat16),
        txt_features.astype(jnp.bfloat16),
        params["img_proj_w"].astype(jnp.bfloat16), params["img_proj_b"],
        params["txt_proj_w"].astype(jnp.bfloat16), params["txt_proj_b"],
        w_img_side, w_txt_side,
        i2t_fc, i2t_g, i2t_beta,
        t2i_fc, t2i_g, t2i_beta,
    )

    vec_spec = pl.BlockSpec((1, d_model), lambda b: (0, 0))
    fc_spec = pl.BlockSpec((vdim, d_model), lambda b: (0, 0))
    fused_spec = pl.BlockSpec((d_model, fused), lambda b: (0, 0))

    in_specs = [
        pl.BlockSpec((1, n_img, img_dim), lambda b: (b, 0, 0)),
        pl.BlockSpec((1, n_txt, txt_dim), lambda b: (b, 0, 0)),
        pl.BlockSpec((img_dim, d_model), lambda b: (0, 0)), vec_spec,
        pl.BlockSpec((txt_dim, d_model), lambda b: (0, 0)), vec_spec,
        fused_spec, fused_spec,
        fc_spec, vec_spec, vec_spec,
        fc_spec, vec_spec, vec_spec,
    ]
    out_specs = [
        pl.BlockSpec((1, n_img, d_model), lambda b: (b, 0, 0)),
        pl.BlockSpec((1, n_txt, d_model), lambda b: (b, 0, 0)),
    ]

    kernel = functools.partial(_coattention_kernel, n_head=n_head, d_k=d_k, d_v=d_v)

    return pl.pallas_call(
        kernel,
        out_shape=(jax.ShapeDtypeStruct((B, n_img, d_model), jnp.float32),
                   jax.ShapeDtypeStruct((B, n_txt, d_model), jnp.float32)),
        grid_spec=pltpu.PrefetchScalarGridSpec(
            num_scalar_prefetch=0,
            grid=(B,),
            in_specs=in_specs,
            out_specs=out_specs,
        ),
        compiler_params=pltpu.CompilerParams(
            dimension_semantics=("parallel",),
            vmem_limit_bytes=8 * 1024 * 1024,
        ),
    )(*args)


# ----------------------------------------------------------------------------
# Pure-JAX f32 reference (mirrors the PyTorch module, eval mode)
# ----------------------------------------------------------------------------
def coattention_reference(params, img_features, txt_features, *, n_head, d_k, d_v):
    def layer_norm(x, g, b):
        mean = jnp.mean(x, axis=-1, keepdims=True)
        var = jnp.mean((x - mean) ** 2, axis=-1, keepdims=True)
        return (x - mean) * jax.lax.rsqrt(var + 1e-5) * g + b

    def mha(p, q_in, kv_in):
        wq, wk, wv, fc, g, b = p
        B, Lq, D = q_in.shape
        Lkv = kv_in.shape[1]
        q = (q_in @ wq).reshape(B, Lq, n_head, d_k).transpose(0, 2, 1, 3)
        k = (kv_in @ wk).reshape(B, Lkv, n_head, d_k).transpose(0, 2, 1, 3)
        v = (kv_in @ wv).reshape(B, Lkv, n_head, d_v).transpose(0, 2, 1, 3)
        attn = jax.nn.softmax(q @ k.transpose(0, 1, 3, 2) / (d_k ** 0.5), axis=-1)
        o = (attn @ v).transpose(0, 2, 1, 3).reshape(B, Lq, n_head * d_v)
        return layer_norm(o @ fc + q_in, g, b)

    img_p = img_features @ params["img_proj_w"] + params["img_proj_b"]
    txt_p = txt_features @ params["txt_proj_w"] + params["txt_proj_b"]
    return mha(params["i2t"], img_p, txt_p), mha(params["t2i"], txt_p, img_p)


# ----------------------------------------------------------------------------
# Parameter container (matches the PyTorch module's structure)
# ----------------------------------------------------------------------------
def init_coattention_params(key, txt_dim, d_model, n_head, d_k, d_v):
    keys = jax.random.split(key, 16)
    scale = 0.02

    def w(k, shape, s=scale):
        return (s * jax.random.normal(k, shape)).astype(jnp.float32)

    params = {
        # img_proj: nn.Linear(2048, d_model)  (PyTorch hardcodes 2048)
        "img_proj_w": w(keys[0], (2048, d_model)),
        "img_proj_b": w(keys[1], (1, d_model)),
        # txt_proj: nn.Linear(txt_dim, d_model)
        "txt_proj_w": w(keys[2], (txt_dim, d_model)),
        "txt_proj_b": w(keys[3], (1, d_model)),
    }
    for name, base in (("i2t", 4), ("t2i", 10)):
        params[name] = (
            w(keys[base + 0], (d_model, n_head * d_k)),          # w_qs (bias=False)
            w(keys[base + 1], (d_model, n_head * d_k)),          # w_ks (bias=False)
            w(keys[base + 2], (d_model, n_head * d_v)),          # w_vs (bias=False)
            w(keys[base + 3], (n_head * d_v, d_model)),          # fc   (bias=False)
            1.0 + w(keys[base + 4], (1, d_model), 0.1),          # layernorm gamma
            w(keys[base + 5], (1, d_model), 0.1),                # layernorm beta
        )
    return params


if __name__ == "__main__":
    B = 2            # batch
    N_IMG = 8        # number of image regions
    N_TXT = 8        # text sequence length
    IMG_FEAT = 2048  # img_proj input dim is hardcoded to 2048 in the module
    TXT_DIM = 32
    D_MODEL = 32
    N_HEAD = 2
    D_K = 16
    D_V = 16

    key = jax.random.PRNGKey(0)
    k_img, k_txt, k_par = jax.random.split(key, 3)
    img_features = jax.random.normal(k_img, (B, N_IMG, IMG_FEAT), jnp.float32)
    txt_features = jax.random.normal(k_txt, (B, N_TXT, TXT_DIM), jnp.float32)

    params = init_coattention_params(k_par, TXT_DIM, D_MODEL, N_HEAD, D_K, D_V)

    img_attended, txt_attended = coattention_forward(
        params, img_features, txt_features, n_head=N_HEAD, d_k=D_K, d_v=D_V)
    jax.block_until_ready((img_attended, txt_attended))

    assert img_attended.shape == (B, N_IMG, D_MODEL)
    assert txt_attended.shape == (B, N_TXT, D_MODEL)
    assert bool(jnp.all(jnp.isfinite(img_attended)))
    assert bool(jnp.all(jnp.isfinite(txt_attended)))

    # Loose-tolerance parity vs. the f32 reference (kernel uses bf16 MXU operands).
    img_ref, txt_ref = coattention_reference(
        params, img_features, txt_features, n_head=N_HEAD, d_k=D_K, d_v=D_V)
    assert float(jnp.max(jnp.abs(img_attended - img_ref))) < 0.15
    assert float(jnp.max(jnp.abs(txt_attended - txt_ref))) < 0.15

    print("KERNEL_OK")
</pallas_src>

<mosaic_0001>
module attributes {stable_mosaic.version = 11 : i64} {
  func.func @_coattention_kernel(%arg0: i32, %arg1: memref<1x8x2048xbf16, #tpu.memory_space<vmem>>, %arg2: memref<1x8x32xbf16, #tpu.memory_space<vmem>>, %arg3: memref<2048x32xbf16, #tpu.memory_space<vmem>>, %arg4: memref<1x32xf32, #tpu.memory_space<vmem>>, %arg5: memref<32x32xbf16, #tpu.memory_space<vmem>>, %arg6: memref<1x32xf32, #tpu.memory_space<vmem>>, %arg7: memref<32x96xbf16, #tpu.memory_space<vmem>>, %arg8: memref<32x96xbf16, #tpu.memory_space<vmem>>, %arg9: memref<32x32xf32, #tpu.memory_space<vmem>>, %arg10: memref<1x32xf32, #tpu.memory_space<vmem>>, %arg11: memref<1x32xf32, #tpu.memory_space<vmem>>, %arg12: memref<32x32xf32, #tpu.memory_space<vmem>>, %arg13: memref<1x32xf32, #tpu.memory_space<vmem>>, %arg14: memref<1x32xf32, #tpu.memory_space<vmem>>, %arg15: memref<1x8x32xf32, #tpu.memory_space<vmem>>, %arg16: memref<1x8x32xf32, #tpu.memory_space<vmem>>) attributes {dimension_semantics = [#tpu.dimension_semantics<parallel>], iteration_bounds = array<i64: 2>, scalar_prefetch = 0 : i64, scratch_operands = 0 : i64, tpu.core_type = #tpu.core_type<tc>, window_params = [{transform_indices = @transform_0, window_bounds = array<i64: 1, 8, 2048>}, {transform_indices = @transform_1, window_bounds = array<i64: 1, 8, 32>}, {pipeline_mode = #tpu.pipeline_mode<synchronous>, transform_indices = @transform_2, window_bounds = array<i64: 2048, 32>}, {pipeline_mode = #tpu.pipeline_mode<synchronous>, transform_indices = @transform_3, window_bounds = array<i64: 1, 32>}, {pipeline_mode = #tpu.pipeline_mode<synchronous>, transform_indices = @transform_4, window_bounds = array<i64: 32, 32>}, {pipeline_mode = #tpu.pipeline_mode<synchronous>, transform_indices = @transform_5, window_bounds = array<i64: 1, 32>}, {pipeline_mode = #tpu.pipeline_mode<synchronous>, transform_indices = @transform_6, window_bounds = array<i64: 32, 96>}, {pipeline_mode = #tpu.pipeline_mode<synchronous>, transform_indices = @transform_7, window_bounds = array<i64: 32, 96>}, {pipeline_mode = #tpu.pipeline_mode<synchronous>, transform_indices = @transform_8, window_bounds = array<i64: 32, 32>}, {pipeline_mode = #tpu.pipeline_mode<synchronous>, transform_indices = @transform_9, window_bounds = array<i64: 1, 32>}, {pipeline_mode = #tpu.pipeline_mode<synchronous>, transform_indices = @transform_10, window_bounds = array<i64: 1, 32>}, {pipeline_mode = #tpu.pipeline_mode<synchronous>, transform_indices = @transform_11, window_bounds = array<i64: 32, 32>}, {pipeline_mode = #tpu.pipeline_mode<synchronous>, transform_indices = @transform_12, window_bounds = array<i64: 1, 32>}, {pipeline_mode = #tpu.pipeline_mode<synchronous>, transform_indices = @transform_13, window_bounds = array<i64: 1, 32>}, {transform_indices = @transform_14, window_bounds = array<i64: 1, 8, 32>}, {transform_indices = @transform_15, window_bounds = array<i64: 1, 8, 32>}]} {
    %c0 = arith.constant 0 : index
    %c0_0 = arith.constant 0 : index
    %c0_1 = arith.constant 0 : index
    %0 = vector.load %arg1[%c0, %c0_0, %c0_1] : memref<1x8x2048xbf16, #tpu.memory_space<vmem>>, vector<1x8x2048xbf16>
    %1 = vector.shape_cast %0 : vector<1x8x2048xbf16> to vector<8x2048xbf16>
    %c0_2 = arith.constant 0 : index
    %c0_3 = arith.constant 0 : index
    %c0_4 = arith.constant 0 : index
    %2 = vector.load %arg2[%c0_2, %c0_3, %c0_4] : memref<1x8x32xbf16, #tpu.memory_space<vmem>>, vector<1x8x32xbf16>
    %3 = vector.shape_cast %2 : vector<1x8x32xbf16> to vector<8x32xbf16>
    %c0_5 = arith.constant 0 : index
    %c0_6 = arith.constant 0 : index
    %4 = vector.load %arg3[%c0_5, %c0_6] : memref<2048x32xbf16, #tpu.memory_space<vmem>>, vector<2048x32xbf16>
    %cst = arith.constant dense<0.000000e+00> : vector<8x32xf32>
    %5 = tpu.matmul %1, %4, %cst {dimension_numbers = #tpu.dot_dimension_numbers<[1], [0], [0], [1], [0, 0, 1, 1], [], []>} : vector<8x2048xbf16>, vector<2048x32xbf16>, vector<8x32xf32> -> vector<8x32xf32>
    %c0_7 = arith.constant 0 : index
    %c0_8 = arith.constant 0 : index
    %6 = vector.load %arg4[%c0_7, %c0_8] : memref<1x32xf32, #tpu.memory_space<vmem>>, vector<1x32xf32>
    %7 = vector.broadcast %6 : vector<1x32xf32> to vector<8x32xf32>
    %8 = arith.addf %5, %7 : vector<8x32xf32>
    %c0_9 = arith.constant 0 : index
    %c0_10 = arith.constant 0 : index
    %9 = vector.load %arg5[%c0_9, %c0_10] : memref<32x32xbf16, #tpu.memory_space<vmem>>, vector<32x32xbf16>
    %cst_11 = arith.constant dense<0.000000e+00> : vector<8x32xf32>
    %10 = tpu.matmul %3, %9, %cst_11 {dimension_numbers = #tpu.dot_dimension_numbers<[1], [0], [0], [1], [0, 0, 1, 1], [], []>} : vector<8x32xbf16>, vector<32x32xbf16>, vector<8x32xf32> -> vector<8x32xf32>
    %c0_12 = arith.constant 0 : index
    %c0_13 = arith.constant 0 : index
    %11 = vector.load %arg6[%c0_12, %c0_13] : memref<1x32xf32, #tpu.memory_space<vmem>>, vector<1x32xf32>
    %12 = vector.broadcast %11 : vector<1x32xf32> to vector<8x32xf32>
    %13 = arith.addf %10, %12 : vector<8x32xf32>
    %14 = arith.truncf %8 : vector<8x32xf32> to vector<8x32xbf16>
    %c0_14 = arith.constant 0 : index
    %c0_15 = arith.constant 0 : index
    %15 = vector.load %arg7[%c0_14, %c0_15] : memref<32x96xbf16, #tpu.memory_space<vmem>>, vector<32x96xbf16>
    %cst_16 = arith.constant dense<0.000000e+00> : vector<8x96xf32>
    %16 = tpu.matmul %14, %15, %cst_16 {dimension_numbers = #tpu.dot_dimension_numbers<[1], [0], [0], [1], [0, 0, 1, 1], [], []>} : vector<8x32xbf16>, vector<32x96xbf16>, vector<8x96xf32> -> vector<8x96xf32>
    %17 = arith.truncf %13 : vector<8x32xf32> to vector<8x32xbf16>
    %c0_17 = arith.constant 0 : index
    %c0_18 = arith.constant 0 : index
    %18 = vector.load %arg8[%c0_17, %c0_18] : memref<32x96xbf16, #tpu.memory_space<vmem>>, vector<32x96xbf16>
    %cst_19 = arith.constant dense<0.000000e+00> : vector<8x96xf32>
    %19 = tpu.matmul %17, %18, %cst_19 {dimension_numbers = #tpu.dot_dimension_numbers<[1], [0], [0], [1], [0, 0, 1, 1], [], []>} : vector<8x32xbf16>, vector<32x96xbf16>, vector<8x96xf32> -> vector<8x96xf32>
    %20 = vector.extract_strided_slice %16 {offsets = [0, 0], sizes = [8, 32], strides = [1, 1]} : vector<8x96xf32> to vector<8x32xf32>
    %21 = vector.extract_strided_slice %19 {offsets = [0, 32], sizes = [8, 32], strides = [1, 1]} : vector<8x96xf32> to vector<8x32xf32>
    %22 = vector.extract_strided_slice %19 {offsets = [0, 64], sizes = [8, 32], strides = [1, 1]} : vector<8x96xf32> to vector<8x32xf32>
    %c0_20 = arith.constant 0 : index
    %c0_21 = arith.constant 0 : index
    %23 = vector.load %arg9[%c0_20, %c0_21] : memref<32x32xf32, #tpu.memory_space<vmem>>, vector<32x32xf32>
    %c0_22 = arith.constant 0 : index
    %c0_23 = arith.constant 0 : index
    %24 = vector.load %arg10[%c0_22, %c0_23] : memref<1x32xf32, #tpu.memory_space<vmem>>, vector<1x32xf32>
    %c0_24 = arith.constant 0 : index
    %c0_25 = arith.constant 0 : index
    %25 = vector.load %arg11[%c0_24, %c0_25] : memref<1x32xf32, #tpu.memory_space<vmem>>, vector<1x32xf32>
    %cst_26 = arith.constant 0.000000e+00 : f32
    %26 = vector.broadcast %cst_26 : f32 to vector<8x32xf32>
    %27 = vector.extract_strided_slice %20 {offsets = [0, 0], sizes = [8, 16], strides = [1, 1]} : vector<8x32xf32> to vector<8x16xf32>
    %28 = vector.extract_strided_slice %21 {offsets = [0, 0], sizes = [8, 16], strides = [1, 1]} : vector<8x32xf32> to vector<8x16xf32>
    %29 = vector.extract_strided_slice %22 {offsets = [0, 0], sizes = [8, 16], strides = [1, 1]} : vector<8x32xf32> to vector<8x16xf32>
    %cst_27 = arith.constant dense<0.000000e+00> : vector<8x8xf32>
    %30 = tpu.matmul %27, %28, %cst_27 {dimension_numbers = #tpu.dot_dimension_numbers<[1], [1], [0], [0], [0, 0, 1, 0], [], []>} : vector<8x16xf32>, vector<8x16xf32>, vector<8x8xf32> -> vector<8x8xf32>
    %cst_28 = arith.constant dense<0xFF800000> : vector<8xf32>
    %31 = vector.multi_reduction <maximumf>, %30, %cst_28 [1] : vector<8x8xf32> to vector<8xf32>
    %32 = vector.shape_cast %31 : vector<8xf32> to vector<8x1xf32>
    %33 = vector.broadcast %32 : vector<8x1xf32> to vector<8x8xf32>
    %34 = arith.subf %30, %33 : vector<8x8xf32>
    %35 = math.exp %34 : vector<8x8xf32>
    %cst_29 = arith.constant dense<0.000000e+00> : vector<8xf32>
    %36 = vector.multi_reduction <add>, %35, %cst_29 [1] : vector<8x8xf32> to vector<8xf32>
    %37 = vector.shape_cast %36 : vector<8xf32> to vector<8x1xf32>
    %38 = vector.broadcast %37 : vector<8x1xf32> to vector<8x8xf32>
    %39 = arith.divf %35, %38 : vector<8x8xf32>
    %cst_30 = arith.constant dense<0.000000e+00> : vector<8x16xf32>
    %40 = tpu.matmul %39, %29, %cst_30 {dimension_numbers = #tpu.dot_dimension_numbers<[1], [0], [0], [1], [0, 0, 1, 1], [], []>} : vector<8x8xf32>, vector<8x16xf32>, vector<8x16xf32> -> vector<8x16xf32>
    %41 = vector.extract_strided_slice %23 {offsets = [0, 0], sizes = [16, 32], strides = [1, 1]} : vector<32x32xf32> to vector<16x32xf32>
    %cst_31 = arith.constant dense<0.000000e+00> : vector<8x32xf32>
    %42 = tpu.matmul %40, %41, %cst_31 {dimension_numbers = #tpu.dot_dimension_numbers<[1], [0], [0], [1], [0, 0, 1, 1], [], []>} : vector<8x16xf32>, vector<16x32xf32>, vector<8x32xf32> -> vector<8x32xf32>
    %43 = arith.addf %26, %42 : vector<8x32xf32>
    %44 = vector.extract_strided_slice %20 {offsets = [0, 16], sizes = [8, 16], strides = [1, 1]} : vector<8x32xf32> to vector<8x16xf32>
    %45 = vector.extract_strided_slice %21 {offsets = [0, 16], sizes = [8, 16], strides = [1, 1]} : vector<8x32xf32> to vector<8x16xf32>
    %46 = vector.extract_strided_slice %22 {offsets = [0, 16], sizes = [8, 16], strides = [1, 1]} : vector<8x32xf32> to vector<8x16xf32>
    %cst_32 = arith.constant dense<0.000000e+00> : vector<8x8xf32>
    %47 = tpu.matmul %44, %45, %cst_32 {dimension_numbers = #tpu.dot_dimension_numbers<[1], [1], [0], [0], [0, 0, 1, 0], [], []>} : vector<8x16xf32>, vector<8x16xf32>, vector<8x8xf32> -> vector<8x8xf32>
    %cst_33 = arith.constant dense<0xFF800000> : vector<8xf32>
    %48 = vector.multi_reduction <maximumf>, %47, %cst_33 [1] : vector<8x8xf32> to vector<8xf32>
    %49 = vector.shape_cast %48 : vector<8xf32> to vector<8x1xf32>
    %50 = vector.broadcast %49 : vector<8x1xf32> to vector<8x8xf32>
    %51 = arith.subf %47, %50 : vector<8x8xf32>
    %52 = math.exp %51 : vector<8x8xf32>
    %cst_34 = arith.constant dense<0.000000e+00> : vector<8xf32>
    %53 = vector.multi_reduction <add>, %52, %cst_34 [1] : vector<8x8xf32> to vector<8xf32>
    %54 = vector.shape_cast %53 : vector<8xf32> to vector<8x1xf32>
    %55 = vector.broadcast %54 : vector<8x1xf32> to vector<8x8xf32>
    %56 = arith.divf %52, %55 : vector<8x8xf32>
    %cst_35 = arith.constant dense<0.000000e+00> : vector<8x16xf32>
    %57 = tpu.matmul %56, %46, %cst_35 {dimension_numbers = #tpu.dot_dimension_numbers<[1], [0], [0], [1], [0, 0, 1, 1], [], []>} : vector<8x8xf32>, vector<8x16xf32>, vector<8x16xf32> -> vector<8x16xf32>
    %58 = vector.extract_strided_slice %23 {offsets = [16, 0], sizes = [16, 32], strides = [1, 1]} : vector<32x32xf32> to vector<16x32xf32>
    %cst_36 = arith.constant dense<0.000000e+00> : vector<8x32xf32>
    %59 = tpu.matmul %57, %58, %cst_36 {dimension_numbers = #tpu.dot_dimension_numbers<[1], [0], [0], [1], [0, 0, 1, 1], [], []>} : vector<8x16xf32>, vector<16x32xf32>, vector<8x32xf32> -> vector<8x32xf32>
    %60 = arith.addf %43, %59 : vector<8x32xf32>
    %61 = arith.addf %60, %8 : vector<8x32xf32>
    %cst_37 = arith.constant dense<0.000000e+00> : vector<8xf32>
    %62 = vector.multi_reduction <add>, %61, %cst_37 [1] : vector<8x32xf32> to vector<8xf32>
    %63 = vector.shape_cast %62 : vector<8xf32> to vector<8x1xf32>
    %cst_38 = arith.constant 3.200000e+01 : f32
    %64 = vector.broadcast %cst_38 : f32 to vector<8x1xf32>
    %65 = arith.divf %63, %64 : vector<8x1xf32>
    %66 = vector.broadcast %65 : vector<8x1xf32> to vector<8x32xf32>
    %67 = arith.subf %61, %66 : vector<8x32xf32>
    %68 = arith.mulf %67, %67 : vector<8x32xf32>
    %cst_39 = arith.constant dense<0.000000e+00> : vector<8xf32>
    %69 = vector.multi_reduction <add>, %68, %cst_39 [1] : vector<8x32xf32> to vector<8xf32>
    %70 = vector.shape_cast %69 : vector<8xf32> to vector<8x1xf32>
    %cst_40 = arith.constant 3.200000e+01 : f32
    %71 = vector.broadcast %cst_40 : f32 to vector<8x1xf32>
    %72 = arith.divf %70, %71 : vector<8x1xf32>
    %73 = vector.broadcast %65 : vector<8x1xf32> to vector<8x32xf32>
    %74 = arith.subf %61, %73 : vector<8x32xf32>
    %cst_41 = arith.constant 9.99999974E-6 : f32
    %75 = vector.broadcast %cst_41 : f32 to vector<8x1xf32>
    %76 = arith.addf %72, %75 : vector<8x1xf32>
    %77 = math.rsqrt %76 : vector<8x1xf32>
    %78 = vector.broadcast %77 : vector<8x1xf32> to vector<8x32xf32>
    %79 = arith.mulf %74, %78 : vector<8x32xf32>
    %80 = vector.broadcast %24 : vector<1x32xf32> to vector<8x32xf32>
    %81 = arith.mulf %79, %80 : vector<8x32xf32>
    %82 = vector.broadcast %25 : vector<1x32xf32> to vector<8x32xf32>
    %83 = arith.addf %81, %82 : vector<8x32xf32>
    %c0_42 = arith.constant 0 : index
    %c0_43 = arith.constant 0 : index
    %c0_44 = arith.constant 0 : index
    %84 = vector.load %arg15[%c0_42, %c0_43, %c0_44] : memref<1x8x32xf32, #tpu.memory_space<vmem>>, vector<1x8x32xf32>
    %85 = vector.shape_cast %84 : vector<1x8x32xf32> to vector<8x32xf32>
    %86 = vector.shape_cast %83 : vector<8x32xf32> to vector<1x8x32xf32>
    tpu.vector_store %arg15[%c0_42, %c0_43, %c0_44], %86 {strides = array<i32>} : memref<1x8x32xf32, #tpu.memory_space<vmem>>, vector<1x8x32xf32>,
    %87 = vector.extract_strided_slice %19 {offsets = [0, 0], sizes = [8, 32], strides = [1, 1]} : vector<8x96xf32> to vector<8x32xf32>
    %88 = vector.extract_strided_slice %16 {offsets = [0, 32], sizes = [8, 32], strides = [1, 1]} : vector<8x96xf32> to vector<8x32xf32>
    %89 = vector.extract_strided_slice %16 {offsets = [0, 64], sizes = [8, 32], strides = [1, 1]} : vector<8x96xf32> to vector<8x32xf32>
    %c0_45 = arith.constant 0 : index
    %c0_46 = arith.constant 0 : index
    %90 = vector.load %arg12[%c0_45, %c0_46] : memref<32x32xf32, #tpu.memory_space<vmem>>, vector<32x32xf32>
    %c0_47 = arith.constant 0 : index
    %c0_48 = arith.constant 0 : index
    %91 = vector.load %arg13[%c0_47, %c0_48] : memref<1x32xf32, #tpu.memory_space<vmem>>, vector<1x32xf32>
    %c0_49 = arith.constant 0 : index
    %c0_50 = arith.constant 0 : index
    %92 = vector.load %arg14[%c0_49, %c0_50] : memref<1x32xf32, #tpu.memory_space<vmem>>, vector<1x32xf32>
    %cst_51 = arith.constant 0.000000e+00 : f32
    %93 = vector.broadcast %cst_51 : f32 to vector<8x32xf32>
    %94 = vector.extract_strided_slice %87 {offsets = [0, 0], sizes = [8, 16], strides = [1, 1]} : vector<8x32xf32> to vector<8x16xf32>
    %95 = vector.extract_strided_slice %88 {offsets = [0, 0], sizes = [8, 16], strides = [1, 1]} : vector<8x32xf32> to vector<8x16xf32>
    %96 = vector.extract_strided_slice %89 {offsets = [0, 0], sizes = [8, 16], strides = [1, 1]} : vector<8x32xf32> to vector<8x16xf32>
    %cst_52 = arith.constant dense<0.000000e+00> : vector<8x8xf32>
    %97 = tpu.matmul %94, %95, %cst_52 {dimension_numbers = #tpu.dot_dimension_numbers<[1], [1], [0], [0], [0, 0, 1, 0], [], []>} : vector<8x16xf32>, vector<8x16xf32>, vector<8x8xf32> -> vector<8x8xf32>
    %cst_53 = arith.constant dense<0xFF800000> : vector<8xf32>
    %98 = vector.multi_reduction <maximumf>, %97, %cst_53 [1] : vector<8x8xf32> to vector<8xf32>
    %99 = vector.shape_cast %98 : vector<8xf32> to vector<8x1xf32>
    %100 = vector.broadcast %99 : vector<8x1xf32> to vector<8x8xf32>
    %101 = arith.subf %97, %100 : vector<8x8xf32>
    %102 = math.exp %101 : vector<8x8xf32>
    %cst_54 = arith.constant dense<0.000000e+00> : vector<8xf32>
    %103 = vector.multi_reduction <add>, %102, %cst_54 [1] : vector<8x8xf32> to vector<8xf32>
    %104 = vector.shape_cast %103 : vector<8xf32> to vector<8x1xf32>
    %105 = vector.broadcast %104 : vector<8x1xf32> to vector<8x8xf32>
    %106 = arith.divf %102, %105 : vector<8x8xf32>
    %cst_55 = arith.constant dense<0.000000e+00> : vector<8x16xf32>
    %107 = tpu.matmul %106, %96, %cst_55 {dimension_numbers = #tpu.dot_dimension_numbers<[1], [0], [0], [1], [0, 0, 1, 1], [], []>} : vector<8x8xf32>, vector<8x16xf32>, vector<8x16xf32> -> vector<8x16xf32>
    %108 = vector.extract_strided_slice %90 {offsets = [0, 0], sizes = [16, 32], strides = [1, 1]} : vector<32x32xf32> to vector<16x32xf32>
    %cst_56 = arith.constant dense<0.000000e+00> : vector<8x32xf32>
    %109 = tpu.matmul %107, %108, %cst_56 {dimension_numbers = #tpu.dot_dimension_numbers<[1], [0], [0], [1], [0, 0, 1, 1], [], []>} : vector<8x16xf32>, vector<16x32xf32>, vector<8x32xf32> -> vector<8x32xf32>
    %110 = arith.addf %93, %109 : vector<8x32xf32>
    %111 = vector.extract_strided_slice %87 {offsets = [0, 16], sizes = [8, 16], strides = [1, 1]} : vector<8x32xf32> to vector<8x16xf32>
    %112 = vector.extract_strided_slice %88 {offsets = [0, 16], sizes = [8, 16], strides = [1, 1]} : vector<8x32xf32> to vector<8x16xf32>
    %113 = vector.extract_strided_slice %89 {offsets = [0, 16], sizes = [8, 16], strides = [1, 1]} : vector<8x32xf32> to vector<8x16xf32>
    %cst_57 = arith.constant dense<0.000000e+00> : vector<8x8xf32>
    %114 = tpu.matmul %111, %112, %cst_57 {dimension_numbers = #tpu.dot_dimension_numbers<[1], [1], [0], [0], [0, 0, 1, 0], [], []>} : vector<8x16xf32>, vector<8x16xf32>, vector<8x8xf32> -> vector<8x8xf32>
    %cst_58 = arith.constant dense<0xFF800000> : vector<8xf32>
    %115 = vector.multi_reduction <maximumf>, %114, %cst_58 [1] : vector<8x8xf32> to vector<8xf32>
    %116 = vector.shape_cast %115 : vector<8xf32> to vector<8x1xf32>
    %117 = vector.broadcast %116 : vector<8x1xf32> to vector<8x8xf32>
    %118 = arith.subf %114, %117 : vector<8x8xf32>
    %119 = math.exp %118 : vector<8x8xf32>
    %cst_59 = arith.constant dense<0.000000e+00> : vector<8xf32>
    %120 = vector.multi_reduction <add>, %119, %cst_59 [1] : vector<8x8xf32> to vector<8xf32>
    %121 = vector.shape_cast %120 : vector<8xf32> to vector<8x1xf32>
    %122 = vector.broadcast %121 : vector<8x1xf32> to vector<8x8xf32>
    %123 = arith.divf %119, %122 : vector<8x8xf32>
    %cst_60 = arith.constant dense<0.000000e+00> : vector<8x16xf32>
    %124 = tpu.matmul %123, %113, %cst_60 {dimension_numbers = #tpu.dot_dimension_numbers<[1], [0], [0], [1], [0, 0, 1, 1], [], []>} : vector<8x8xf32>, vector<8x16xf32>, vector<8x16xf32> -> vector<8x16xf32>
    %125 = vector.extract_strided_slice %90 {offsets = [16, 0], sizes = [16, 32], strides = [1, 1]} : vector<32x32xf32> to vector<16x32xf32>
    %cst_61 = arith.constant dense<0.000000e+00> : vector<8x32xf32>
    %126 = tpu.matmul %124, %125, %cst_61 {dimension_numbers = #tpu.dot_dimension_numbers<[1], [0], [0], [1], [0, 0, 1, 1], [], []>} : vector<8x16xf32>, vector<16x32xf32>, vector<8x32xf32> -> vector<8x32xf32>
    %127 = arith.addf %110, %126 : vector<8x32xf32>
    %128 = arith.addf %127, %13 : vector<8x32xf32>
    %cst_62 = arith.constant dense<0.000000e+00> : vector<8xf32>
    %129 = vector.multi_reduction <add>, %128, %cst_62 [1] : vector<8x32xf32> to vector<8xf32>
    %130 = vector.shape_cast %129 : vector<8xf32> to vector<8x1xf32>
    %cst_63 = arith.constant 3.200000e+01 : f32
    %131 = vector.broadcast %cst_63 : f32 to vector<8x1xf32>
    %132 = arith.divf %130, %131 : vector<8x1xf32>
    %133 = vector.broadcast %132 : vector<8x1xf32> to vector<8x32xf32>
    %134 = arith.subf %128, %133 : vector<8x32xf32>
    %135 = arith.mulf %134, %134 : vector<8x32xf32>
    %cst_64 = arith.constant dense<0.000000e+00> : vector<8xf32>
    %136 = vector.multi_reduction <add>, %135, %cst_64 [1] : vector<8x32xf32> to vector<8xf32>
    %137 = vector.shape_cast %136 : vector<8xf32> to vector<8x1xf32>
    %cst_65 = arith.constant 3.200000e+01 : f32
    %138 = vector.broadcast %cst_65 : f32 to vector<8x1xf32>
    %139 = arith.divf %137, %138 : vector<8x1xf32>
    %140 = vector.broadcast %132 : vector<8x1xf32> to vector<8x32xf32>
    %141 = arith.subf %128, %140 : vector<8x32xf32>
    %cst_66 = arith.constant 9.99999974E-6 : f32
    %142 = vector.broadcast %cst_66 : f32 to vector<8x1xf32>
    %143 = arith.addf %139, %142 : vector<8x1xf32>
    %144 = math.rsqrt %143 : vector<8x1xf32>
    %145 = vector.broadcast %144 : vector<8x1xf32> to vector<8x32xf32>
    %146 = arith.mulf %141, %145 : vector<8x32xf32>
    %147 = vector.broadcast %91 : vector<1x32xf32> to vector<8x32xf32>
    %148 = arith.mulf %146, %147 : vector<8x32xf32>
    %149 = vector.broadcast %92 : vector<1x32xf32> to vector<8x32xf32>
    %150 = arith.addf %148, %149 : vector<8x32xf32>
    %c0_67 = arith.constant 0 : index
    %c0_68 = arith.constant 0 : index
    %c0_69 = arith.constant 0 : index
    %151 = vector.load %arg16[%c0_67, %c0_68, %c0_69] : memref<1x8x32xf32, #tpu.memory_space<vmem>>, vector<1x8x32xf32>
    %152 = vector.shape_cast %151 : vector<1x8x32xf32> to vector<8x32xf32>
    %153 = vector.shape_cast %150 : vector<8x32xf32> to vector<1x8x32xf32>
    tpu.vector_store %arg16[%c0_67, %c0_68, %c0_69], %153 {strides = array<i32>} : memref<1x8x32xf32, #tpu.memory_space<vmem>>, vector<1x8x32xf32>,
    return
  }
  func.func @transform_0(%arg0: i32) -> (i32, i32, i32) {
    %c0_i32 = arith.constant 0 : i32
    %c0_i32_0 = arith.constant 0 : i32
    %c0_i32_1 = arith.constant 0 : i32
    return %arg0, %c0_i32, %c0_i32_0 : i32, i32, i32
  }
  func.func @transform_1(%arg0: i32) -> (i32, i32, i32) {
    %c0_i32 = arith.constant 0 : i32
    %c0_i32_0 = arith.constant 0 : i32
    %c0_i32_1 = arith.constant 0 : i32
    return %arg0, %c0_i32, %c0_i32_0 : i32, i32, i32
  }
  func.func @transform_2(%arg0: i32) -> (i32, i32) {
    %c0_i32 = arith.constant 0 : i32
    %c0_i32_0 = arith.constant 0 : i32
    %c0_i32_1 = arith.constant 0 : i32
    return %c0_i32, %c0_i32_0 : i32, i32
  }
  func.func @transform_3(%arg0: i32) -> (i32, i32) {
    %c0_i32 = arith.constant 0 : i32
    %c0_i32_0 = arith.constant 0 : i32
    %c0_i32_1 = arith.constant 0 : i32
    return %c0_i32, %c0_i32_0 : i32, i32
  }
  func.func @transform_4(%arg0: i32) -> (i32, i32) {
    %c0_i32 = arith.constant 0 : i32
    %c0_i32_0 = arith.constant 0 : i32
    %c0_i32_1 = arith.constant 0 : i32
    return %c0_i32, %c0_i32_0 : i32, i32
  }
  func.func @transform_5(%arg0: i32) -> (i32, i32) {
    %c0_i32 = arith.constant 0 : i32
    %c0_i32_0 = arith.constant 0 : i32
    %c0_i32_1 = arith.constant 0 : i32
    return %c0_i32, %c0_i32_0 : i32, i32
  }
  func.func @transform_6(%arg0: i32) -> (i32, i32) {
    %c0_i32 = arith.constant 0 : i32
    %c0_i32_0 = arith.constant 0 : i32
    %c0_i32_1 = arith.constant 0 : i32
    return %c0_i32, %c0_i32_0 : i32, i32
  }
  func.func @transform_7(%arg0: i32) -> (i32, i32) {
    %c0_i32 = arith.constant 0 : i32
    %c0_i32_0 = arith.constant 0 : i32
    %c0_i32_1 = arith.constant 0 : i32
    return %c0_i32, %c0_i32_0 : i32, i32
  }
  func.func @transform_8(%arg0: i32) -> (i32, i32) {
    %c0_i32 = arith.constant 0 : i32
    %c0_i32_0 = arith.constant 0 : i32
    %c0_i32_1 = arith.constant 0 : i32
    return %c0_i32, %c0_i32_0 : i32, i32
  }
  func.func @transform_9(%arg0: i32) -> (i32, i32) {
    %c0_i32 = arith.constant 0 : i32
    %c0_i32_0 = arith.constant 0 : i32
    %c0_i32_1 = arith.constant 0 : i32
    return %c0_i32, %c0_i32_0 : i32, i32
  }
  func.func @transform_10(%arg0: i32) -> (i32, i32) {
    %c0_i32 = arith.constant 0 : i32
    %c0_i32_0 = arith.constant 0 : i32
    %c0_i32_1 = arith.constant 0 : i32
    return %c0_i32, %c0_i32_0 : i32, i32
  }
  func.func @transform_11(%arg0: i32) -> (i32, i32) {
    %c0_i32 = arith.constant 0 : i32
    %c0_i32_0 = arith.constant 0 : i32
    %c0_i32_1 = arith.constant 0 : i32
    return %c0_i32, %c0_i32_0 : i32, i32
  }
  func.func @transform_12(%arg0: i32) -> (i32, i32) {
    %c0_i32 = arith.constant 0 : i32
    %c0_i32_0 = arith.constant 0 : i32
    %c0_i32_1 = arith.constant 0 : i32
    return %c0_i32, %c0_i32_0 : i32, i32
  }
  func.func @transform_13(%arg0: i32) -> (i32, i32) {
    %c0_i32 = arith.constant 0 : i32
    %c0_i32_0 = arith.constant 0 : i32
    %c0_i32_1 = arith.constant 0 : i32
    return %c0_i32, %c0_i32_0 : i32, i32
  }
  func.func @transform_14(%arg0: i32) -> (i32, i32, i32) {
    %c0_i32 = arith.constant 0 : i32
    %c0_i32_0 = arith.constant 0 : i32
    %c0_i32_1 = arith.constant 0 : i32
    return %arg0, %c0_i32, %c0_i32_0 : i32, i32, i32
  }
  func.func @transform_15(%arg0: i32) -> (i32, i32, i32) {
    %c0_i32 = arith.constant 0 : i32
    %c0_i32_0 = arith.constant 0 : i32
    %c0_i32_1 = arith.constant 0 : i32
    return %arg0, %c0_i32, %c0_i32_0 : i32, i32, i32
  }
}

</mosaic_0001>

<llo_original>
// kernel: tpu_custom_call.1
$region0: #{tpu_custom_call.1}
  #allocation0 [shape = 'u32[]', space=smem, size = 0x4, offset = 0x4, fixed_abs, tag = 'smem constant byte address 0x4 - core index']
  #allocation1 [shape = 'u32[144,128]{1,0:T(1,128)}', space=vmem, size = 0x12000, scoped, tag = 'internal scratch']
  %s0 = inlined_call_operand.vmem [shape: bf16[2,8,2048], index: 0, kind: input, shape index: {}]
  %s1 = inlined_call_operand.vmem [shape: bf16[2,8,32], index: 1, kind: input, shape index: {}]
  %s2 = inlined_call_operand.vmem [shape: bf16[2048,32], index: 2, kind: input, shape index: {}]
  %s3 = inlined_call_operand.vmem [shape: f32[1,32], index: 3, kind: input, shape index: {}]
  %s4 = inlined_call_operand.vmem [shape: bf16[32,32], index: 4, kind: input, shape index: {}]
  %s5 = inlined_call_operand.vmem [shape: f32[1,32], index: 5, kind: input, shape index: {}]
  %s6 = inlined_call_operand.vmem [shape: bf16[32,96], index: 6, kind: input, shape index: {}]
  %s7 = inlined_call_operand.vmem [shape: bf16[32,96], index: 7, kind: input, shape index: {}]
  %s8 = inlined_call_operand.vmem [shape: f32[32,32], index: 8, kind: input, shape index: {}]
  %s9 = inlined_call_operand.vmem [shape: f32[1,32], index: 9, kind: input, shape index: {}]
  %s10 = inlined_call_operand.vmem [shape: f32[1,32], index: 10, kind: input, shape index: {}]
  %s11 = inlined_call_operand.vmem [shape: f32[32,32], index: 11, kind: input, shape index: {}]
  %s12 = inlined_call_operand.vmem [shape: f32[1,32], index: 12, kind: input, shape index: {}]
  %s13 = inlined_call_operand.vmem [shape: f32[1,32], index: 13, kind: input, shape index: {}]
  %s14 = inlined_call_operand.hbm [shape: f32[2,8,32], index: 14, kind: output, shape index: {0}]
  %s15 = inlined_call_operand.hbm [shape: f32[2,8,32], index: 15, kind: output, shape index: {1}]
  %16 = xla_tuple %s14, %s15
  %s17 = sld [smem:[#allocation0]]
  $region97: #{tpu_custom_call.1} parent=0
    _
  %s19 = ssub.s32 1, %s17
  %s20 = scalar_select 0, %s19, %s17
  $region1: #{tpu_custom_call.1} parent=0
    #allocation2 [shape = 'u8[8192]{0}', space=vmem, size = 0x2000, scoped, tag = 'output window, operand 0']
    #allocation3 [shape = 's32[2]{0}', space=sflag, size = 0x8, scoped, tag = 'scoped memory for tpu_custom_call.1']
    #allocation4 [shape = 'u8[8192]{0}', space=vmem, size = 0x2000, scoped, tag = 'output window, operand 1']
    #allocation5 [shape = 's32[2]{0}', space=sflag, size = 0x8, scoped, tag = 'scoped memory for tpu_custom_call.1']
    %21 = vsyncpa [#allocation3], 0
    %s22 = scalar_lea.sflag [#allocation3], 1
    %23 = vsyncpa %s22, 0
    %24 = vsyncpa [#allocation5], 0
    %s25 = scalar_lea.sflag [#allocation5], 1
    %26 = vsyncpa %s25, 0
    loop: start=0, step=1, limit=4
    $region2: #{tpu_custom_call.1} parent=1 // loop_pre_header
      _
    $region3: #{tpu_custom_call.1} parent=1 // loop_header
      %s28 = sphi 0, %s32
      %p29 = scmp.ge.s32.totalorder %s28, 4
      %s38 = sphi 0, %s40
      %s41 = sphi 0, %s38
      %s42 = sphi 0, %s41
      %s58 = sphi 0, %s42
      %s64 = sphi 0, %s66
      %s67 = sphi 0, %s64
      %s68 = sphi 0, %s67
      %s84 = sphi 0, %s68
      %s88 = sphi 0, %s88
      %s90 = sphi 0, %s88
      %s91 = sphi 0, %s90
      %s105 = sphi 0, %s91
      %s109 = sphi 0, %s109
      %s111 = sphi 0, %s109
      %s112 = sphi 0, %s111
      %s126 = sphi 0, %s112
      %s130 = sphi 0, %s130
      %s132 = sphi 0, %s130
      %s133 = sphi 0, %s132
      %s147 = sphi 0, %s133
      %s151 = sphi 0, %s151
      %s153 = sphi 0, %s151
      %s154 = sphi 0, %s153
      %s168 = sphi 0, %s154
      %s172 = sphi 0, %s172
      %s174 = sphi 0, %s172
      %s175 = sphi 0, %s174
      %s189 = sphi 0, %s175
      %s193 = sphi 0, %s193
      %s195 = sphi 0, %s193
      %s196 = sphi 0, %s195
      %s210 = sphi 0, %s196
      %s214 = sphi 0, %s214
      %s216 = sphi 0, %s214
      %s217 = sphi 0, %s216
      %s231 = sphi 0, %s217
      %s235 = sphi 0, %s235
      %s237 = sphi 0, %s235
      %s238 = sphi 0, %s237
      %s252 = sphi 0, %s238
      %s256 = sphi 0, %s256
      %s258 = sphi 0, %s256
      %s259 = sphi 0, %s258
      %s273 = sphi 0, %s259
      %s277 = sphi 0, %s277
      %s279 = sphi 0, %s277
      %s280 = sphi 0, %s279
      %s294 = sphi 0, %s280
      %s298 = sphi 0, %s298
      %s300 = sphi 0, %s298
      %s301 = sphi 0, %s300
      %s315 = sphi 0, %s301
      %s319 = sphi 0, %s319
      %s321 = sphi 0, %s319
      %s322 = sphi 0, %s321
      %s336 = sphi 0, %s322
      %s342 = sphi 0, %s344
      %s345 = sphi 0, %s342
      %s346 = sphi 0, %s345
      %s362 = sphi 0, %s346
      %s368 = sphi 0, %s370
      %s371 = sphi 0, %s368
      %s372 = sphi 0, %s371
      %s388 = sphi 0, %s372
    $region4: #{tpu_custom_call.1} parent=1 // loop_header_branch
      %31 = sbr.rel (%p29) target = $region8
    $region5: #{tpu_custom_call.1} parent=1 // loop_body
      %s33 = ssub.s32 %s28, 1
      %s34 = ssub.s32 %s28, 2
      %s35 = sadd.s32 %s28, 1
      %s36 = ssub.s32 %s28, %s35
      %p37 = scmp.eq.s32.totalorder %s36, 0
      %s39 = sadd.s32 %s38, 1
      %s40 = scalar_select %p37, %s38, %s39
      %p43 = pneg %p37
      %p44 = scmp.eq.s32.totalorder %s28, 1
      %p45 = por %p43, %p44
      %p46 = scmp.ne.s32.totalorder %s38, %s41
      %p47 = scmp.eq.s32.totalorder %s28, 0
      %p48 = por %p46, %p47
      %p49 = scmp.ne.s32.totalorder %s38, %s41
      %p50 = scmp.eq.s32.totalorder %s33, 1
      %p51 = por %p49, %p50
      %p52 = scmp.ne.s32.totalorder %s41, %s42
      %p53 = scmp.eq.s32.totalorder %s33, 0
      %p54 = por %p52, %p53
      %p55 = scmp.ne.s32.totalorder %s41, %s42
      %p56 = scmp.eq.s32.totalorder %s34, 1
      %p57 = por %p55, %p56
      %p59 = scmp.ne.s32.totalorder %s42, %s58
      %p60 = scmp.eq.s32.totalorder %s34, 0
      %p61 = por %p59, %p60
      %s62 = ssub.s32 %s28, %s35
      %p63 = scmp.eq.s32.totalorder %s62, 0
      %s65 = sadd.s32 %s64, 1
      %s66 = scalar_select %p63, %s64, %s65
      %p69 = pneg %p63
      %p70 = scmp.eq.s32.totalorder %s28, 1
      %p71 = por %p69, %p70
      %p72 = scmp.ne.s32.totalorder %s64, %s67
      %p73 = scmp.eq.s32.totalorder %s28, 0
      %p74 = por %p72, %p73
      %p75 = scmp.ne.s32.totalorder %s64, %s67
      %p76 = scmp.eq.s32.totalorder %s33, 1
      %p77 = por %p75, %p76
      %p78 = scmp.ne.s32.totalorder %s67, %s68
      %p79 = scmp.eq.s32.totalorder %s33, 0
      %p80 = por %p78, %p79
      %p81 = scmp.ne.s32.totalorder %s67, %s68
      %p82 = scmp.eq.s32.totalorder %s34, 1
      %p83 = por %p81, %p82
      %p85 = scmp.ne.s32.totalorder %s68, %s84
      %p86 = scmp.eq.s32.totalorder %s34, 0
      %p87 = por %p85, %p86
      %s89 = sadd.s32 %s88, 1
      %p92 = scmp.eq.s32.totalorder %s28, 1
      %p93 = scmp.ne.s32.totalorder %s88, %s90
      %p94 = scmp.eq.s32.totalorder %s28, 0
      %p95 = por %p93, %p94
      %p96 = scmp.ne.s32.totalorder %s88, %s90
      %p97 = scmp.eq.s32.totalorder %s33, 1
      %p98 = por %p96, %p97
      %p99 = scmp.ne.s32.totalorder %s90, %s91
      %p100 = scmp.eq.s32.totalorder %s33, 0
      %p101 = por %p99, %p100
      %p102 = scmp.ne.s32.totalorder %s90, %s91
      %p103 = scmp.eq.s32.totalorder %s34, 1
      %p104 = por %p102, %p103
      %p106 = scmp.ne.s32.totalorder %s91, %s105
      %p107 = scmp.eq.s32.totalorder %s34, 0
      %p108 = por %p106, %p107
      %s110 = sadd.s32 %s109, 1
      %p113 = scmp.eq.s32.totalorder %s28, 1
      %p114 = scmp.ne.s32.totalorder %s109, %s111
      %p115 = scmp.eq.s32.totalorder %s28, 0
      %p116 = por %p114, %p115
      %p117 = scmp.ne.s32.totalorder %s109, %s111
      %p118 = scmp.eq.s32.totalorder %s33, 1
      %p119 = por %p117, %p118
      %p120 = scmp.ne.s32.totalorder %s111, %s112
      %p121 = scmp.eq.s32.totalorder %s33, 0
      %p122 = por %p120, %p121
      %p123 = scmp.ne.s32.totalorder %s111, %s112
      %p124 = scmp.eq.s32.totalorder %s34, 1
      %p125 = por %p123, %p124
      %p127 = scmp.ne.s32.totalorder %s112, %s126
      %p128 = scmp.eq.s32.totalorder %s34, 0
      %p129 = por %p127, %p128
      %s131 = sadd.s32 %s130, 1
      %p134 = scmp.eq.s32.totalorder %s28, 1
      %p135 = scmp.ne.s32.totalorder %s130, %s132
      %p136 = scmp.eq.s32.totalorder %s28, 0
      %p137 = por %p135, %p136
      %p138 = scmp.ne.s32.totalorder %s130, %s132
      %p139 = scmp.eq.s32.totalorder %s33, 1
      %p140 = por %p138, %p139
      %p141 = scmp.ne.s32.totalorder %s132, %s133
      %p142 = scmp.eq.s32.totalorder %s33, 0
      %p143 = por %p141, %p142
      %p144 = scmp.ne.s32.totalorder %s132, %s133
      %p145 = scmp.eq.s32.totalorder %s34, 1
      %p146 = por %p144, %p145
      %p148 = scmp.ne.s32.totalorder %s133, %s147
      %p149 = scmp.eq.s32.totalorder %s34, 0
      %p150 = por %p148, %p149
      %s152 = sadd.s32 %s151, 1
      %p155 = scmp.eq.s32.totalorder %s28, 1
      %p156 = scmp.ne.s32.totalorder %s151, %s153
      %p157 = scmp.eq.s32.totalorder %s28, 0
      %p158 = por %p156, %p157
      %p159 = scmp.ne.s32.totalorder %s151, %s153
      %p160 = scmp.eq.s32.totalorder %s33, 1
      %p161 = por %p159, %p160
      %p162 = scmp.ne.s32.totalorder %s153, %s154
      %p163 = scmp.eq.s32.totalorder %s33, 0
      %p164 = por %p162, %p163
      %p165 = scmp.ne.s32.totalorder %s153, %s154
      %p166 = scmp.eq.s32.totalorder %s34, 1
      %p167 = por %p165, %p166
      %p169 = scmp.ne.s32.totalorder %s154, %s168
      %p170 = scmp.eq.s32.totalorder %s34, 0
      %p171 = por %p169, %p170
      %s173 = sadd.s32 %s172, 1
      %p176 = scmp.eq.s32.totalorder %s28, 1
      %p177 = scmp.ne.s32.totalorder %s172, %s174
      %p178 = scmp.eq.s32.totalorder %s28, 0
      %p179 = por %p177, %p178
      %p180 = scmp.ne.s32.totalorder %s172, %s174
      %p181 = scmp.eq.s32.totalorder %s33, 1
      %p182 = por %p180, %p181
      %p183 = scmp.ne.s32.totalorder %s174, %s175
      %p184 = scmp.eq.s32.totalorder %s33, 0
      %p185 = por %p183, %p184
      %p186 = scmp.ne.s32.totalorder %s174, %s175
      %p187 = scmp.eq.s32.totalorder %s34, 1
      %p188 = por %p186, %p187
      %p190 = scmp.ne.s32.totalorder %s175, %s189
      %p191 = scmp.eq.s32.totalorder %s34, 0
      %p192 = por %p190, %p191
      %s194 = sadd.s32 %s193, 1
      %p197 = scmp.eq.s32.totalorder %s28, 1
      %p198 = scmp.ne.s32.totalorder %s193, %s195
      %p199 = scmp.eq.s32.totalorder %s28, 0
      %p200 = por %p198, %p199
      %p201 = scmp.ne.s32.totalorder %s193, %s195
      %p202 = scmp.eq.s32.totalorder %s33, 1
      %p203 = por %p201, %p202
      %p204 = scmp.ne.s32.totalorder %s195, %s196
      %p205 = scmp.eq.s32.totalorder %s33, 0
      %p206 = por %p204, %p205
      %p207 = scmp.ne.s32.totalorder %s195, %s196
      %p208 = scmp.eq.s32.totalorder %s34, 1
      %p209 = por %p207, %p208
      %p211 = scmp.ne.s32.totalorder %s196, %s210
      %p212 = scmp.eq.s32.totalorder %s34, 0
      %p213 = por %p211, %p212
      %s215 = sadd.s32 %s214, 1
      %p218 = scmp.eq.s32.totalorder %s28, 1
      %p219 = scmp.ne.s32.totalorder %s214, %s216
      %p220 = scmp.eq.s32.totalorder %s28, 0
      %p221 = por %p219, %p220
      %p222 = scmp.ne.s32.totalorder %s214, %s216
      %p223 = scmp.eq.s32.totalorder %s33, 1
      %p224 = por %p222, %p223
      %p225 = scmp.ne.s32.totalorder %s216, %s217
      %p226 = scmp.eq.s32.totalorder %s33, 0
      %p227 = por %p225, %p226
      %p228 = scmp.ne.s32.totalorder %s216, %s217
      %p229 = scmp.eq.s32.totalorder %s34, 1
      %p230 = por %p228, %p229
      %p232 = scmp.ne.s32.totalorder %s217, %s231
      %p233 = scmp.eq.s32.totalorder %s34, 0
      %p234 = por %p232, %p233
      %s236 = sadd.s32 %s235, 1
      %p239 = scmp.eq.s32.totalorder %s28, 1
      %p240 = scmp.ne.s32.totalorder %s235, %s237
      %p241 = scmp.eq.s32.totalorder %s28, 0
      %p242 = por %p240, %p241
      %p243 = scmp.ne.s32.totalorder %s235, %s237
      %p244 = scmp.eq.s32.totalorder %s33, 1
      %p245 = por %p243, %p244
      %p246 = scmp.ne.s32.totalorder %s237, %s238
      %p247 = scmp.eq.s32.totalorder %s33, 0
      %p248 = por %p246, %p247
      %p249 = scmp.ne.s32.totalorder %s237, %s238
      %p250 = scmp.eq.s32.totalorder %s34, 1
      %p251 = por %p249, %p250
      %p253 = scmp.ne.s32.totalorder %s238, %s252
      %p254 = scmp.eq.s32.totalorder %s34, 0
      %p255 = por %p253, %p254
      %s257 = sadd.s32 %s256, 1
      %p260 = scmp.eq.s32.totalorder %s28, 1
      %p261 = scmp.ne.s32.totalorder %s256, %s258
      %p262 = scmp.eq.s32.totalorder %s28, 0
      %p263 = por %p261, %p262
      %p264 = scmp.ne.s32.totalorder %s256, %s258
      %p265 = scmp.eq.s32.totalorder %s33, 1
      %p266 = por %p264, %p265
      %p267 = scmp.ne.s32.totalorder %s258, %s259
      %p268 = scmp.eq.s32.totalorder %s33, 0
      %p269 = por %p267, %p268
      %p270 = scmp.ne.s32.totalorder %s258, %s259
      %p271 = scmp.eq.s32.totalorder %s34, 1
      %p272 = por %p270, %p271
      %p274 = scmp.ne.s32.totalorder %s259, %s273
      %p275 = scmp.eq.s32.totalorder %s34, 0
      %p276 = por %p274, %p275
      %s278 = sadd.s32 %s277, 1
      %p281 = scmp.eq.s32.totalorder %s28, 1
      %p282 = scmp.ne.s32.totalorder %s277, %s279
      %p283 = scmp.eq.s32.totalorder %s28, 0
      %p284 = por %p282, %p283
      %p285 = scmp.ne.s32.totalorder %s277, %s279
      %p286 = scmp.eq.s32.totalorder %s33, 1
      %p287 = por %p285, %p286
      %p288 = scmp.ne.s32.totalorder %s279, %s280
      %p289 = scmp.eq.s32.totalorder %s33, 0
      %p290 = por %p288, %p289
      %p291 = scmp.ne.s32.totalorder %s279, %s280
      %p292 = scmp.eq.s32.totalorder %s34, 1
      %p293 = por %p291, %p292
      %p295 = scmp.ne.s32.totalorder %s280, %s294
      %p296 = scmp.eq.s32.totalorder %s34, 0
      %p297 = por %p295, %p296
      %s299 = sadd.s32 %s298, 1
      %p302 = scmp.eq.s32.totalorder %s28, 1
      %p303 = scmp.ne.s32.totalorder %s298, %s300
      %p304 = scmp.eq.s32.totalorder %s28, 0
      %p305 = por %p303, %p304
      %p306 = scmp.ne.s32.totalorder %s298, %s300
      %p307 = scmp.eq.s32.totalorder %s33, 1
      %p308 = por %p306, %p307
      %p309 = scmp.ne.s32.totalorder %s300, %s301
      %p310 = scmp.eq.s32.totalorder %s33, 0
      %p311 = por %p309, %p310
      %p312 = scmp.ne.s32.totalorder %s300, %s301
      %p313 = scmp.eq.s32.totalorder %s34, 1
      %p314 = por %p312, %p313
      %p316 = scmp.ne.s32.totalorder %s301, %s315
      %p317 = scmp.eq.s32.totalorder %s34, 0
      %p318 = por %p316, %p317
      %s320 = sadd.s32 %s319, 1
      %p323 = scmp.eq.s32.totalorder %s28, 1
      %p324 = scmp.ne.s32.totalorder %s319, %s321
      %p325 = scmp.eq.s32.totalorder %s28, 0
      %p326 = por %p324, %p325
      %p327 = scmp.ne.s32.totalorder %s319, %s321
      %p328 = scmp.eq.s32.totalorder %s33, 1
      %p329 = por %p327, %p328
      %p330 = scmp.ne.s32.totalorder %s321, %s322
      %p331 = scmp.eq.s32.totalorder %s33, 0
      %p332 = por %p330, %p331
      %p333 = scmp.ne.s32.totalorder %s321, %s322
      %p334 = scmp.eq.s32.totalorder %s34, 1
      %p335 = por %p333, %p334
      %p337 = scmp.ne.s32.totalorder %s322, %s336
      %p338 = scmp.eq.s32.totalorder %s34, 0
      %p339 = por %p337, %p338
      %s340 = ssub.s32 %s28, %s35
      %p341 = scmp.eq.s32.totalorder %s340, 0
      %s343 = sadd.s32 %s342, 1
      %s344 = scalar_select %p341, %s342, %s343
      %p347 = pneg %p341
      %p348 = scmp.eq.s32.totalorder %s28, 1
      %p349 = por %p347, %p348
      %p350 = scmp.ne.s32.totalorder %s342, %s345
      %p351 = scmp.eq.s32.totalorder %s28, 0
      %p352 = por %p350, %p351
      %p353 = scmp.ne.s32.totalorder %s342, %s345
      %p354 = scmp.eq.s32.totalorder %s33, 1
      %p355 = por %p353, %p354
      %p356 = scmp.ne.s32.totalorder %s345, %s346
      %p357 = scmp.eq.s32.totalorder %s33, 0
      %p358 = por %p356, %p357
      %p359 = scmp.ne.s32.totalorder %s345, %s346
      %p360 = scmp.eq.s32.totalorder %s34, 1
      %p361 = por %p359, %p360
      %p363 = scmp.ne.s32.totalorder %s346, %s362
      %p364 = scmp.eq.s32.totalorder %s34, 0
      %p365 = por %p363, %p364
      %s366 = ssub.s32 %s28, %s35
      %p367 = scmp.eq.s32.totalorder %s366, 0
      %s369 = sadd.s32 %s368, 1
      %s370 = scalar_select %p367, %s368, %s369
      %p373 = pneg %p367
      %p374 = scmp.eq.s32.totalorder %s28, 1
      %p375 = por %p373, %p374
      %p376 = scmp.ne.s32.totalorder %s368, %s371
      %p377 = scmp.eq.s32.totalorder %s28, 0
      %p378 = por %p376, %p377
      %p379 = scmp.ne.s32.totalorder %s368, %s371
      %p380 = scmp.eq.s32.totalorder %s33, 1
      %p381 = por %p379, %p380
      %p382 = scmp.ne.s32.totalorder %s371, %s372
      %p383 = scmp.eq.s32.totalorder %s33, 0
      %p384 = por %p382, %p383
      %p385 = scmp.ne.s32.totalorder %s371, %s372
      %p386 = scmp.eq.s32.totalorder %s34, 1
      %p387 = por %p385, %p386
      %p389 = scmp.ne.s32.totalorder %s372, %s388
      %p390 = scmp.eq.s32.totalorder %s34, 0
      %p391 = por %p389, %p390
      %p392 = scmp.le.s32.totalorder 1, %s28
      %p393 = scmp.lt.s32.totalorder %s28, 3
      %p394 = pnand %p392, %p393
      %p395 = pneg %p394
      // Predicated region
      $region9: #{tpu_custom_call.1} parent=5 // pred_check
        _
      $region10: #{tpu_custom_call.1} parent=5 // pred_check_branch
        %397 = sbr.rel (%p394) target = $region12
      $region11: #{tpu_custom_call.1} parent=5 // pred_region
        %s398 = ssub.s32 %s28, 1
        // Predicated region
        $region13: #{tpu_custom_call.1} parent=11 // pred_check
          %p399 = pneg %p101
        $region14: #{tpu_custom_call.1} parent=11 // pred_check_branch
          %401 = sbr.rel (%p399) target = $region16
        $region15: #{tpu_custom_call.1} parent=11 // pred_region
          _
        $region16: #{tpu_custom_call.1} parent=11 // pred_fallthru
          _
        // Predicated region
        $region17: #{tpu_custom_call.1} parent=11 // pred_check
          %p402 = pneg %p122
        $region18: #{tpu_custom_call.1} parent=11 // pred_check_branch
          %404 = sbr.rel (%p402) target = $region20
        $region19: #{tpu_custom_call.1} parent=11 // pred_region
          _
        $region20: #{tpu_custom_call.1} parent=11 // pred_fallthru
          _
        // Predicated region
        $region21: #{tpu_custom_call.1} parent=11 // pred_check
          %p405 = pneg %p143
        $region22: #{tpu_custom_call.1} parent=11 // pred_check_branch
          %407 = sbr.rel (%p405) target = $region24
        $region23: #{tpu_custom_call.1} parent=11 // pred_region
          _
        $region24: #{tpu_custom_call.1} parent=11 // pred_fallthru
          _
        // Predicated region
        $region25: #{tpu_custom_call.1} parent=11 // pred_check
          %p408 = pneg %p164
        $region26: #{tpu_custom_call.1} parent=11 // pred_check_branch
          %410 = sbr.rel (%p408) target = $region28
        $region27: #{tpu_custom_call.1} parent=11 // pred_region
          _
        $region28: #{tpu_custom_call.1} parent=11 // pred_fallthru
          _
        // Predicated region
        $region29: #{tpu_custom_call.1} parent=11 // pred_check
          %p411 = pneg %p185
        $region30: #{tpu_custom_call.1} parent=11 // pred_check_branch
          %413 = sbr.rel (%p411) target = $region32
        $region31: #{tpu_custom_call.1} parent=11 // pred_region
          _
        $region32: #{tpu_custom_call.1} parent=11 // pred_fallthru
          _
        // Predicated region
        $region33: #{tpu_custom_call.1} parent=11 // pred_check
          %p414 = pneg %p206
        $region34: #{tpu_custom_call.1} parent=11 // pred_check_branch
          %416 = sbr.rel (%p414) target = $region36
        $region35: #{tpu_custom_call.1} parent=11 // pred_region
          _
        $region36: #{tpu_custom_call.1} parent=11 // pred_fallthru
          _
        // Predicated region
        $region37: #{tpu_custom_call.1} parent=11 // pred_check
          %p417 = pneg %p227
        $region38: #{tpu_custom_call.1} parent=11 // pred_check_branch
          %419 = sbr.rel (%p417) target = $region40
        $region39: #{tpu_custom_call.1} parent=11 // pred_region
          _
        $region40: #{tpu_custom_call.1} parent=11 // pred_fallthru
          _
        // Predicated region
        $region41: #{tpu_custom_call.1} parent=11 // pred_check
          %p420 = pneg %p248
        $region42: #{tpu_custom_call.1} parent=11 // pred_check_branch
          %422 = sbr.rel (%p420) target = $region44
        $region43: #{tpu_custom_call.1} parent=11 // pred_region
          _
        $region44: #{tpu_custom_call.1} parent=11 // pred_fallthru
          _
        // Predicated region
        $region45: #{tpu_custom_call.1} parent=11 // pred_check
          %p423 = pneg %p269
        $region46: #{tpu_custom_call.1} parent=11 // pred_check_branch
          %425 = sbr.rel (%p423) target = $region48
        $region47: #{tpu_custom_call.1} parent=11 // pred_region
          _
        $region48: #{tpu_custom_call.1} parent=11 // pred_fallthru
          _
        // Predicated region
        $region49: #{tpu_custom_call.1} parent=11 // pred_check
          %p426 = pneg %p290
        $region50: #{tpu_custom_call.1} parent=11 // pred_check_branch
          %428 = sbr.rel (%p426) target = $region52
        $region51: #{tpu_custom_call.1} parent=11 // pred_region
          _
        $region52: #{tpu_custom_call.1} parent=11 // pred_fallthru
          _
        // Predicated region
        $region53: #{tpu_custom_call.1} parent=11 // pred_check
          %p429 = pneg %p311
        $region54: #{tpu_custom_call.1} parent=11 // pred_check_branch
          %431 = sbr.rel (%p429) target = $region56
        $region55: #{tpu_custom_call.1} parent=11 // pred_region
          _
        $region56: #{tpu_custom_call.1} parent=11 // pred_fallthru
          _
        // Predicated region
        $region57: #{tpu_custom_call.1} parent=11 // pred_check
          %p432 = pneg %p332
        $region58: #{tpu_custom_call.1} parent=11 // pred_check_branch
          %434 = sbr.rel (%p432) target = $region60
        $region59: #{tpu_custom_call.1} parent=11 // pred_region
          _
        $region60: #{tpu_custom_call.1} parent=11 // pred_fallthru
          _
      $region12: #{tpu_custom_call.1} parent=5 // pred_fallthru
        _
      %p435 = scmp.lt.s32.totalorder %s28, 2
      // Predicated region
      $region61: #{tpu_custom_call.1} parent=5 // pred_check
        %p436 = pneg %p435
      $region62: #{tpu_custom_call.1} parent=5 // pred_check_branch
        %438 = sbr.rel (%p436) target = $region64
      $region63: #{tpu_custom_call.1} parent=5 // pred_region
        // Predicated region
        $region65: #{tpu_custom_call.1} parent=63 // pred_check
          %p439 = pneg %p48
        $region66: #{tpu_custom_call.1} parent=63 // pred_check_branch
          %441 = sbr.rel (%p439) target = $region68
        $region67: #{tpu_custom_call.1} parent=63 // pred_region
          %p442 = scmp.lt.s32.totalorder %s28, 1
          %s443 = scalar_select %p442, %s28, 1
          %s444 = smul.addr %s443, 16
          %s445 = smul.addr %s444, 4
          %s446 = scalar_lea.vmem %s0, %s445
        $region68: #{tpu_custom_call.1} parent=63 // pred_fallthru
          _
        // Predicated region
        $region69: #{tpu_custom_call.1} parent=63 // pred_check
          %p447 = pneg %p74
        $region70: #{tpu_custom_call.1} parent=63 // pred_check_branch
          %449 = sbr.rel (%p447) target = $region72
        $region71: #{tpu_custom_call.1} parent=63 // pred_region
          %p450 = scmp.lt.s32.totalorder %s28, 1
          %s451 = scalar_select %p450, %s28, 1
          %s452 = smul.addr %s451, 4
          %s453 = scalar_lea.vmem %s1, %s452
        $region72: #{tpu_custom_call.1} parent=63 // pred_fallthru
          _
      $region64: #{tpu_custom_call.1} parent=5 // pred_fallthru
        _
      %p454 = scmp.le.s32.totalorder 1, %s28
      %p455 = scmp.lt.s32.totalorder %s28, 3
      %p456 = pnand %p454, %p455
      %p457 = pneg %p456
      // Predicated region
      $region73: #{tpu_custom_call.1} parent=5 // pred_check
        _
      $region74: #{tpu_custom_call.1} parent=5 // pred_check_branch
        %459 = sbr.rel (%p456) target = $region76
      $region75: #{tpu_custom_call.1} parent=5 // pred_region
        %s460 = ssub.s32 %s28, 1
        %p461 = scmp.lt.s32.totalorder %s33, 1
        %s462 = scalar_select %p461, %s33, 1
        %s463 = smul.addr %s462, 16
        %s464 = smul.addr %s463, 4
        %s465 = scalar_lea.vmem %s0, %s464
        %p466 = pneg %p54
        %p467 = pneg %p51
        %p468 = scmp.lt.s32.totalorder %s33, 1
        %s469 = scalar_select %p468, %s33, 1
        %s470 = smul.addr %s469, 4
        %s471 = scalar_lea.vmem %s1, %s470
        %p472 = pneg %p80
        %p473 = pneg %p77
        %p474 = pneg %p101
        %p475 = pneg %p98
        %p476 = pneg %p122
        %p477 = pneg %p119
        %p478 = pneg %p143
        %p479 = pneg %p140
        %p480 = pneg %p164
        %p481 = pneg %p161
        %p482 = pneg %p185
        %p483 = pneg %p182
        %p484 = pneg %p206
        %p485 = pneg %p203
        %p486 = pneg %p227
        %p487 = pneg %p224
        %p488 = pneg %p248
        %p489 = pneg %p245
        %p490 = pneg %p269
        %p491 = pneg %p266
        %p492 = pneg %p290
        %p493 = pneg %p287
        %p494 = pneg %p311
        %p495 = pneg %p308
        %p496 = pneg %p332
        %p497 = pneg %p329
        %p498 = pneg %p358
        %p499 = pneg %p355
        %s500 = sand.u32 %s345, 1
        %s501 = scalar_lea.sflag [#allocation3], %s500
        %s502 = sand.u32 %s345, 1
        %s503 = smul.addr %s502, 8
        %s504 = scalar_lea.vmem [#allocation2], %s503
        %p505 = pneg %p384
        %p506 = pneg %p381
        %s507 = sand.u32 %s371, 1
        %s508 = scalar_lea.sflag [#allocation5], %s507
        %s509 = sand.u32 %s371, 1
        %s510 = smul.addr %s509, 8
        %s511 = scalar_lea.vmem [#allocation4], %s510
        %p512 = scmp.lt.s32.totalorder %s33, 1
        %s513 = scalar_select %p512, %s33, 1
        %s514 = smul.addr %s513, 16
        %s515 = smul.addr %s514, 4
        %s516 = scalar_lea.vmem %s0, %s515
        %p517 = scmp.lt.s32.totalorder %s33, 1
        %s518 = scalar_select %p517, %s33, 1
        %s519 = smul.addr %s518, 4
        %s520 = scalar_lea.vmem %s1, %s519
        %v522 = vld [vmem:[%s516] sm:$0xff]
        %v523 = vld [vmem:[%s516 + $0x8] sm:$0xff]
        %v524 = vld [vmem:[%s516 + $0x10] sm:$0xff]
        %v525 = vld [vmem:[%s516 + $0x18] sm:$0xff]
        %v526 = vld [vmem:[%s516 + $0x20] sm:$0xff]
        %v527 = vld [vmem:[%s516 + $0x28] sm:$0xff]
        %v528 = vld [vmem:[%s516 + $0x30] sm:$0xff]
        %v529 = vld [vmem:[%s516 + $0x38] sm:$0xff]
        %v530 = vld [vmem:[%s520] sm:$0xf]
        %v531 = vld [vmem:[%s2] sm:$0xf]
        %v532 = vld [vmem:[%s2 + $0x4] sm:$0xf]
        %v533 = vld [vmem:[%s2 + $0x8] sm:$0xf]
        %v534 = vld [vmem:[%s2 + $0xc] sm:$0xf]
        %v535 = vld [vmem:[%s2 + $0x10] sm:$0xf]
        %v536 = vld [vmem:[%s2 + $0x14] sm:$0xf]
        %v537 = vld [vmem:[%s2 + $0x18] sm:$0xf]
        %v538 = vld [vmem:[%s2 + $0x1c] sm:$0xf]
        %v539 = vld [vmem:[%s2 + $0x20] sm:$0xf]
        %v540 = vld [vmem:[%s2 + $0x24] sm:$0xf]
        %v541 = vld [vmem:[%s2 + $0x28] sm:$0xf]
        %v542 = vld [vmem:[%s2 + $0x2c] sm:$0xf]
        %v543 = vld [vmem:[%s2 + $0x30] sm:$0xf]
        %v544 = vld [vmem:[%s2 + $0x34] sm:$0xf]
        %v545 = vld [vmem:[%s2 + $0x38] sm:$0xf]
        %v546 = vld [vmem:[%s2 + $0x3c] sm:$0xf]
        %v547 = vld [vmem:[%s2 + $0x40] sm:$0xf]
        %v548 = vld [vmem:[%s2 + $0x44] sm:$0xf]
        %v549 = vld [vmem:[%s2 + $0x48] sm:$0xf]
        %v550 = vld [vmem:[%s2 + $0x4c] sm:$0xf]
        %v551 = vld [vmem:[%s2 + $0x50] sm:$0xf]
        %v552 = vld [vmem:[%s2 + $0x54] sm:$0xf]
        %v553 = vld [vmem:[%s2 + $0x58] sm:$0xf]
        %v554 = vld [vmem:[%s2 + $0x5c] sm:$0xf]
        %v555 = vld [vmem:[%s2 + $0x60] sm:$0xf]
        %v556 = vld [vmem:[%s2 + $0x64] sm:$0xf]
        %v557 = vld [vmem:[%s2 + $0x68] sm:$0xf]
        %v558 = vld [vmem:[%s2 + $0x6c] sm:$0xf]
        %v559 = vld [vmem:[%s2 + $0x70] sm:$0xf]
        %v560 = vld [vmem:[%s2 + $0x74] sm:$0xf]
        %v561 = vld [vmem:[%s2 + $0x78] sm:$0xf]
        %v562 = vld [vmem:[%s2 + $0x7c] sm:$0xf]
        %v563 = vld [vmem:[%s2 + $0x80] sm:$0xf]
        %v564 = vld [vmem:[%s2 + $0x84] sm:$0xf]
        %v565 = vld [vmem:[%s2 + $0x88] sm:$0xf]
        %v566 = vld [vmem:[%s2 + $0x8c] sm:$0xf]
        %v567 = vld [vmem:[%s2 + $0x90] sm:$0xf]
        %v568 = vld [vmem:[%s2 + $0x94] sm:$0xf]
        %v569 = vld [vmem:[%s2 + $0x98] sm:$0xf]
        %v570 = vld [vmem:[%s2 + $0x9c] sm:$0xf]
        %v571 = vld [vmem:[%s2 + $0xa0] sm:$0xf]
        %v572 = vld [vmem:[%s2 + $0xa4] sm:$0xf]
        %v573 = vld [vmem:[%s2 + $0xa8] sm:$0xf]
        %v574 = vld [vmem:[%s2 + $0xac] sm:$0xf]
        %v575 = vld [vmem:[%s2 + $0xb0] sm:$0xf]
        %v576 = vld [vmem:[%s2 + $0xb4] sm:$0xf]
        %v577 = vld [vmem:[%s2 + $0xb8] sm:$0xf]
        %v578 = vld [vmem:[%s2 + $0xbc] sm:$0xf]
        %v579 = vld [vmem:[%s2 + $0xc0] sm:$0xf]
        %v580 = vld [vmem:[%s2 + $0xc4] sm:$0xf]
        %v581 = vld [vmem:[%s2 + $0xc8] sm:$0xf]
        %v582 = vld [vmem:[%s2 + $0xcc] sm:$0xf]
        %v583 = vld [vmem:[%s2 + $0xd0] sm:$0xf]
        %v584 = vld [vmem:[%s2 + $0xd4] sm:$0xf]
        %v585 = vld [vmem:[%s2 + $0xd8] sm:$0xf]
        %v586 = vld [vmem:[%s2 + $0xdc] sm:$0xf]
        %v587 = vld [vmem:[%s2 + $0xe0] sm:$0xf]
        %v588 = vld [vmem:[%s2 + $0xe4] sm:$0xf]
        %v589 = vld [vmem:[%s2 + $0xe8] sm:$0xf]
        %v590 = vld [vmem:[%s2 + $0xec] sm:$0xf]
        %v591 = vld [vmem:[%s2 + $0xf0] sm:$0xf]
        %v592 = vld [vmem:[%s2 + $0xf4] sm:$0xf]
        %v593 = vld [vmem:[%s2 + $0xf8] sm:$0xf]
        %v594 = vld [vmem:[%s2 + $0xfc] sm:$0xf]
        %v595 = vld [vmem:[%s2 + $0x100] sm:$0xf]
        %v596 = vld [vmem:[%s2 + $0x104] sm:$0xf]
        %v597 = vld [vmem:[%s2 + $0x108] sm:$0xf]
        %v598 = vld [vmem:[%s2 + $0x10c] sm:$0xf]
        %v599 = vld [vmem:[%s2 + $0x110] sm:$0xf]
        %v600 = vld [vmem:[%s2 + $0x114] sm:$0xf]
        %v601 = vld [vmem:[%s2 + $0x118] sm:$0xf]
        %v602 = vld [vmem:[%s2 + $0x11c] sm:$0xf]
        %v603 = vld [vmem:[%s2 + $0x120] sm:$0xf]
        %v604 = vld [vmem:[%s2 + $0x124] sm:$0xf]
        %v605 = vld [vmem:[%s2 + $0x128] sm:$0xf]
        %v606 = vld [vmem:[%s2 + $0x12c] sm:$0xf]
        %v607 = vld [vmem:[%s2 + $0x130] sm:$0xf]
        %v608 = vld [vmem:[%s2 + $0x134] sm:$0xf]
        %v609 = vld [vmem:[%s2 + $0x138] sm:$0xf]
        %v610 = vld [vmem:[%s2 + $0x13c] sm:$0xf]
        %v611 = vld [vmem:[%s2 + $0x140] sm:$0xf]
        %v612 = vld [vmem:[%s2 + $0x144] sm:$0xf]
        %v613 = vld [vmem:[%s2 + $0x148] sm:$0xf]
        %v614 = vld [vmem:[%s2 + $0x14c] sm:$0xf]
        %v615 = vld [vmem:[%s2 + $0x150] sm:$0xf]
        %v616 = vld [vmem:[%s2 + $0x154] sm:$0xf]
        %v617 = vld [vmem:[%s2 + $0x158] sm:$0xf]
        %v618 = vld [vmem:[%s2 + $0x15c] sm:$0xf]
        %v619 = vld [vmem:[%s2 + $0x160] sm:$0xf]
        %v620 = vld [vmem:[%s2 + $0x164] sm:$0xf]
        %v621 = vld [vmem:[%s2 + $0x168] sm:$0xf]
        %v622 = vld [vmem:[%s2 + $0x16c] sm:$0xf]
        %v623 = vld [vmem:[%s2 + $0x170] sm:$0xf]
        %v624 = vld [vmem:[%s2 + $0x174] sm:$0xf]
        %v625 = vld [vmem:[%s2 + $0x178] sm:$0xf]
        %v626 = vld [vmem:[%s2 + $0x17c] sm:$0xf]
        %v627 = vld [vmem:[%s2 + $0x180] sm:$0xf]
        %v628 = vld [vmem:[%s2 + $0x184] sm:$0xf]
        %v629 = vld [vmem:[%s2 + $0x188] sm:$0xf]
        %v630 = vld [vmem:[%s2 + $0x18c] sm:$0xf]
        %v631 = vld [vmem:[%s2 + $0x190] sm:$0xf]
        %v632 = vld [vmem:[%s2 + $0x194] sm:$0xf]
        %v633 = vld [vmem:[%s2 + $0x198] sm:$0xf]
        %v634 = vld [vmem:[%s2 + $0x19c] sm:$0xf]
        %v635 = vld [vmem:[%s2 + $0x1a0] sm:$0xf]
        %v636 = vld [vmem:[%s2 + $0x1a4] sm:$0xf]
        %v637 = vld [vmem:[%s2 + $0x1a8] sm:$0xf]
        %v638 = vld [vmem:[%s2 + $0x1ac] sm:$0xf]
        %v639 = vld [vmem:[%s2 + $0x1b0] sm:$0xf]
        %v640 = vld [vmem:[%s2 + $0x1b4] sm:$0xf]
        %v641 = vld [vmem:[%s2 + $0x1b8] sm:$0xf]
        %v642 = vld [vmem:[%s2 + $0x1bc] sm:$0xf]
        %v643 = vld [vmem:[%s2 + $0x1c0] sm:$0xf]
        %v644 = vld [vmem:[%s2 + $0x1c4] sm:$0xf]
        %v645 = vld [vmem:[%s2 + $0x1c8] sm:$0xf]
        %v646 = vld [vmem:[%s2 + $0x1cc] sm:$0xf]
        %v647 = vld [vmem:[%s2 + $0x1d0] sm:$0xf]
        %v648 = vld [vmem:[%s2 + $0x1d4] sm:$0xf]
        %v649 = vld [vmem:[%s2 + $0x1d8] sm:$0xf]
        %v650 = vld [vmem:[%s2 + $0x1dc] sm:$0xf]
        %v651 = vld [vmem:[%s2 + $0x1e0] sm:$0xf]
        %v652 = vld [vmem:[%s2 + $0x1e4] sm:$0xf]
        %v653 = vld [vmem:[%s2 + $0x1e8] sm:$0xf]
        %v654 = vld [vmem:[%s2 + $0x1ec] sm:$0xf]
        %v655 = vld [vmem:[%s2 + $0x1f0] sm:$0xf]
        %v656 = vld [vmem:[%s2 + $0x1f4] sm:$0xf]
        %v657 = vld [vmem:[%s2 + $0x1f8] sm:$0xf]
        %v658 = vld [vmem:[%s2 + $0x1fc] sm:$0xf]
        %v659 = vld [vmem:[%s2 + $0x200] sm:$0xf]
        %v660 = vld [vmem:[%s2 + $0x204] sm:$0xf]
        %v661 = vld [vmem:[%s2 + $0x208] sm:$0xf]
        %v662 = vld [vmem:[%s2 + $0x20c] sm:$0xf]
        %v663 = vld [vmem:[%s2 + $0x210] sm:$0xf]
        %v664 = vld [vmem:[%s2 + $0x214] sm:$0xf]
        %v665 = vld [vmem:[%s2 + $0x218] sm:$0xf]
        %v666 = vld [vmem:[%s2 + $0x21c] sm:$0xf]
        %v667 = vld [vmem:[%s2 + $0x220] sm:$0xf]
        %v668 = vld [vmem:[%s2 + $0x224] sm:$0xf]
        %v669 = vld [vmem:[%s2 + $0x228] sm:$0xf]
        %v670 = vld [vmem:[%s2 + $0x22c] sm:$0xf]
        %v671 = vld [vmem:[%s2 + $0x230] sm:$0xf]
        %v672 = vld [vmem:[%s2 + $0x234] sm:$0xf]
        %v673 = vld [vmem:[%s2 + $0x238] sm:$0xf]
        %v674 = vld [vmem:[%s2 + $0x23c] sm:$0xf]
        %v675 = vld [vmem:[%s2 + $0x240] sm:$0xf]
        %v676 = vld [vmem:[%s2 + $0x244] sm:$0xf]
        %v677 = vld [vmem:[%s2 + $0x248] sm:$0xf]
        %v678 = vld [vmem:[%s2 + $0x24c] sm:$0xf]
        %v679 = vld [vmem:[%s2 + $0x250] sm:$0xf]
        %v680 = vld [vmem:[%s2 + $0x254] sm:$0xf]
        %v681 = vld [vmem:[%s2 + $0x258] sm:$0xf]
        %v682 = vld [vmem:[%s2 + $0x25c] sm:$0xf]
        %v683 = vld [vmem:[%s2 + $0x260] sm:$0xf]
        %v684 = vld [vmem:[%s2 + $0x264] sm:$0xf]
        %v685 = vld [vmem:[%s2 + $0x268] sm:$0xf]
        %v686 = vld [vmem:[%s2 + $0x26c] sm:$0xf]
        %v687 = vld [vmem:[%s2 + $0x270] sm:$0xf]
        %v688 = vld [vmem:[%s2 + $0x274] sm:$0xf]
        %v689 = vld [vmem:[%s2 + $0x278] sm:$0xf]
        %v690 = vld [vmem:[%s2 + $0x27c] sm:$0xf]
        %v691 = vld [vmem:[%s2 + $0x280] sm:$0xf]
        %v692 = vld [vmem:[%s2 + $0x284] sm:$0xf]
        %v693 = vld [vmem:[%s2 + $0x288] sm:$0xf]
        %v694 = vld [vmem:[%s2 + $0x28c] sm:$0xf]
        %v695 = vld [vmem:[%s2 + $0x290] sm:$0xf]
        %v696 = vld [vmem:[%s2 + $0x294] sm:$0xf]
        %v697 = vld [vmem:[%s2 + $0x298] sm:$0xf]
        %v698 = vld [vmem:[%s2 + $0x29c] sm:$0xf]
        %v699 = vld [vmem:[%s2 + $0x2a0] sm:$0xf]
        %v700 = vld [vmem:[%s2 + $0x2a4] sm:$0xf]
        %v701 = vld [vmem:[%s2 + $0x2a8] sm:$0xf]
        %v702 = vld [vmem:[%s2 + $0x2ac] sm:$0xf]
        %v703 = vld [vmem:[%s2 + $0x2b0] sm:$0xf]
        %v704 = vld [vmem:[%s2 + $0x2b4] sm:$0xf]
        %v705 = vld [vmem:[%s2 + $0x2b8] sm:$0xf]
        %v706 = vld [vmem:[%s2 + $0x2bc] sm:$0xf]
        %v707 = vld [vmem:[%s2 + $0x2c0] sm:$0xf]
        %v708 = vld [vmem:[%s2 + $0x2c4] sm:$0xf]
        %v709 = vld [vmem:[%s2 + $0x2c8] sm:$0xf]
        %v710 = vld [vmem:[%s2 + $0x2cc] sm:$0xf]
        %v711 = vld [vmem:[%s2 + $0x2d0] sm:$0xf]
        %v712 = vld [vmem:[%s2 + $0x2d4] sm:$0xf]
        %v713 = vld [vmem:[%s2 + $0x2d8] sm:$0xf]
        %v714 = vld [vmem:[%s2 + $0x2dc] sm:$0xf]
        %v715 = vld [vmem:[%s2 + $0x2e0] sm:$0xf]
        %v716 = vld [vmem:[%s2 + $0x2e4] sm:$0xf]
        %v717 = vld [vmem:[%s2 + $0x2e8] sm:$0xf]
        %v718 = vld [vmem:[%s2 + $0x2ec] sm:$0xf]
        %v719 = vld [vmem:[%s2 + $0x2f0] sm:$0xf]
        %v720 = vld [vmem:[%s2 + $0x2f4] sm:$0xf]
        %v721 = vld [vmem:[%s2 + $0x2f8] sm:$0xf]
        %v722 = vld [vmem:[%s2 + $0x2fc] sm:$0xf]
        %v723 = vld [vmem:[%s2 + $0x300] sm:$0xf]
        %v724 = vld [vmem:[%s2 + $0x304] sm:$0xf]
        %v725 = vld [vmem:[%s2 + $0x308] sm:$0xf]
        %v726 = vld [vmem:[%s2 + $0x30c] sm:$0xf]
        %v727 = vld [vmem:[%s2 + $0x310] sm:$0xf]
        %v728 = vld [vmem:[%s2 + $0x314] sm:$0xf]
        %v729 = vld [vmem:[%s2 + $0x318] sm:$0xf]
        %v730 = vld [vmem:[%s2 + $0x31c] sm:$0xf]
        %v731 = vld [vmem:[%s2 + $0x320] sm:$0xf]
        %v732 = vld [vmem:[%s2 + $0x324] sm:$0xf]
        %v733 = vld [vmem:[%s2 + $0x328] sm:$0xf]
        %v734 = vld [vmem:[%s2 + $0x32c] sm:$0xf]
        %v735 = vld [vmem:[%s2 + $0x330] sm:$0xf]
        %v736 = vld [vmem:[%s2 + $0x334] sm:$0xf]
        %v737 = vld [vmem:[%s2 + $0x338] sm:$0xf]
        %v738 = vld [vmem:[%s2 + $0x33c] sm:$0xf]
        %v739 = vld [vmem:[%s2 + $0x340] sm:$0xf]
        %v740 = vld [vmem:[%s2 + $0x344] sm:$0xf]
        %v741 = vld [vmem:[%s2 + $0x348] sm:$0xf]
        %v742 = vld [vmem:[%s2 + $0x34c] sm:$0xf]
        %v743 = vld [vmem:[%s2 + $0x350] sm:$0xf]
        %v744 = vld [vmem:[%s2 + $0x354] sm:$0xf]
        %v745 = vld [vmem:[%s2 + $0x358] sm:$0xf]
        %v746 = vld [vmem:[%s2 + $0x35c] sm:$0xf]
        %v747 = vld [vmem:[%s2 + $0x360] sm:$0xf]
        %v748 = vld [vmem:[%s2 + $0x364] sm:$0xf]
        %v749 = vld [vmem:[%s2 + $0x368] sm:$0xf]
        %v750 = vld [vmem:[%s2 + $0x36c] sm:$0xf]
        %v751 = vld [vmem:[%s2 + $0x370] sm:$0xf]
        %v752 = vld [vmem:[%s2 + $0x374] sm:$0xf]
        %v753 = vld [vmem:[%s2 + $0x378] sm:$0xf]
        %v754 = vld [vmem:[%s2 + $0x37c] sm:$0xf]
        %v755 = vld [vmem:[%s2 + $0x380] sm:$0xf]
        %v756 = vld [vmem:[%s2 + $0x384] sm:$0xf]
        %v757 = vld [vmem:[%s2 + $0x388] sm:$0xf]
        %v758 = vld [vmem:[%s2 + $0x38c] sm:$0xf]
        %v759 = vld [vmem:[%s2 + $0x390] sm:$0xf]
        %v760 = vld [vmem:[%s2 + $0x394] sm:$0xf]
        %v761 = vld [vmem:[%s2 + $0x398] sm:$0xf]
        %v762 = vld [vmem:[%s2 + $0x39c] sm:$0xf]
        %v763 = vld [vmem:[%s2 + $0x3a0] sm:$0xf]
        %v764 = vld [vmem:[%s2 + $0x3a4] sm:$0xf]
        %v765 = vld [vmem:[%s2 + $0x3a8] sm:$0xf]
        %v766 = vld [vmem:[%s2 + $0x3ac] sm:$0xf]
        %v767 = vld [vmem:[%s2 + $0x3b0] sm:$0xf]
        %v768 = vld [vmem:[%s2 + $0x3b4] sm:$0xf]
        %v769 = vld [vmem:[%s2 + $0x3b8] sm:$0xf]
        %v770 = vld [vmem:[%s2 + $0x3bc] sm:$0xf]
        %v771 = vld [vmem:[%s2 + $0x3c0] sm:$0xf]
        %v772 = vld [vmem:[%s2 + $0x3c4] sm:$0xf]
        %v773 = vld [vmem:[%s2 + $0x3c8] sm:$0xf]
        %v774 = vld [vmem:[%s2 + $0x3cc] sm:$0xf]
        %v775 = vld [vmem:[%s2 + $0x3d0] sm:$0xf]
        %v776 = vld [vmem:[%s2 + $0x3d4] sm:$0xf]
        %v777 = vld [vmem:[%s2 + $0x3d8] sm:$0xf]
        %v778 = vld [vmem:[%s2 + $0x3dc] sm:$0xf]
        %v779 = vld [vmem:[%s2 + $0x3e0] sm:$0xf]
        %v780 = vld [vmem:[%s2 + $0x3e4] sm:$0xf]
        %v781 = vld [vmem:[%s2 + $0x3e8] sm:$0xf]
        %v782 = vld [vmem:[%s2 + $0x3ec] sm:$0xf]
        %v783 = vld [vmem:[%s2 + $0x3f0] sm:$0xf]
        %v784 = vld [vmem:[%s2 + $0x3f4] sm:$0xf]
        %v785 = vld [vmem:[%s2 + $0x3f8] sm:$0xf]
        %v786 = vld [vmem:[%s2 + $0x3fc] sm:$0xf]
        %v787 = vld [vmem:[%s3] sm:$0x1]
        %v789 = vlaneseq
        %v790 = vshrl.u32 %v789, 7
        %v791 = vsub.s32 0, %v790
        %v792 = vrot.slane %v787, %v791
        %v802 = vunpack.c.l.b16 %v522
        %v803 = vunpack.c.h.b16 %v522
        %v804 = vunpack.c.l.b16 %v523
        %v805 = vunpack.c.h.b16 %v523
        %v806 = vunpack.c.l.b16 %v524
        %v807 = vunpack.c.h.b16 %v524
        %v808 = vunpack.c.l.b16 %v525
        %v809 = vunpack.c.h.b16 %v525
        %v810 = vunpack.c.l.b16 %v526
        %v811 = vunpack.c.h.b16 %v526
        %v812 = vunpack.c.l.b16 %v527
        %v813 = vunpack.c.h.b16 %v527
        %v814 = vunpack.c.l.b16 %v528
        %v815 = vunpack.c.h.b16 %v528
        %v816 = vunpack.c.l.b16 %v529
        %v817 = vunpack.c.h.b16 %v529
        %v818 = vpack.c.b16 %v802, %v802
        %v819 = vpack.c.b16 %v803, %v803
        %v820 = vpack.c.b16 %v804, %v804
        %v821 = vpack.c.b16 %v805, %v805
        %v822 = vpack.c.b16 %v806, %v806
        %v823 = vpack.c.b16 %v807, %v807
        %v824 = vpack.c.b16 %v808, %v808
        %v825 = vpack.c.b16 %v809, %v809
        %v826 = vpack.c.b16 %v810, %v810
        %v827 = vpack.c.b16 %v811, %v811
        %v828 = vpack.c.b16 %v812, %v812
        %v829 = vpack.c.b16 %v813, %v813
        %v830 = vpack.c.b16 %v814, %v814
        %v831 = vpack.c.b16 %v815, %v815
        %v832 = vpack.c.b16 %v816, %v816
        %v833 = vpack.c.b16 %v817, %v817
        %v1106 = vunpack.c.l.b16 %v531
        %v1107 = vunpack.c.l.b16 %v532
        %v1108 = vunpack.c.l.b16 %v533
        %v1109 = vunpack.c.l.b16 %v534
        %v1110 = vunpack.c.l.b16 %v535
        %v1111 = vunpack.c.l.b16 %v536
        %v1112 = vunpack.c.l.b16 %v537
        %v1113 = vunpack.c.l.b16 %v538
        %v1114 = vunpack.c.l.b16 %v539
        %v1115 = vunpack.c.l.b16 %v540
        %v1116 = vunpack.c.l.b16 %v541
        %v1117 = vunpack.c.l.b16 %v542
        %v1118 = vunpack.c.l.b16 %v543
        %v1119 = vunpack.c.l.b16 %v544
        %v1120 = vunpack.c.l.b16 %v545
        %v1121 = vunpack.c.l.b16 %v546
        %v1122 = vunpack.c.l.b16 %v547
        %v1123 = vunpack.c.l.b16 %v548
        %v1124 = vunpack.c.l.b16 %v549
        %v1125 = vunpack.c.l.b16 %v550
        %v1126 = vunpack.c.l.b16 %v551
        %v1127 = vunpack.c.l.b16 %v552
        %v1128 = vunpack.c.l.b16 %v553
        %v1129 = vunpack.c.l.b16 %v554
        %v1130 = vunpack.c.l.b16 %v555
        %v1131 = vunpack.c.l.b16 %v556
        %v1132 = vunpack.c.l.b16 %v557
        %v1133 = vunpack.c.l.b16 %v558
        %v1134 = vunpack.c.l.b16 %v559
        %v1135 = vunpack.c.l.b16 %v560
        %v1136 = vunpack.c.l.b16 %v561
        %v1137 = vunpack.c.l.b16 %v562
        %v1138 = vunpack.c.l.b16 %v563
        %v1139 = vunpack.c.l.b16 %v564
        %v1140 = vunpack.c.l.b16 %v565
        %v1141 = vunpack.c.l.b16 %v566
        %v1142 = vunpack.c.l.b16 %v567
        %v1143 = vunpack.c.l.b16 %v568
        %v1144 = vunpack.c.l.b16 %v569
        %v1145 = vunpack.c.l.b16 %v570
        %v1146 = vunpack.c.l.b16 %v571
        %v1147 = vunpack.c.l.b16 %v572
        %v1148 = vunpack.c.l.b16 %v573
        %v1149 = vunpack.c.l.b16 %v574
        %v1150 = vunpack.c.l.b16 %v575
        %v1151 = vunpack.c.l.b16 %v576
        %v1152 = vunpack.c.l.b16 %v577
        %v1153 = vunpack.c.l.b16 %v578
        %v1154 = vunpack.c.l.b16 %v579
        %v1155 = vunpack.c.l.b16 %v580
        %v1156 = vunpack.c.l.b16 %v581
        %v1157 = vunpack.c.l.b16 %v582
        %v1158 = vunpack.c.l.b16 %v583
        %v1159 = vunpack.c.l.b16 %v584
        %v1160 = vunpack.c.l.b16 %v585
        %v1161 = vunpack.c.l.b16 %v586
        %v1162 = vunpack.c.l.b16 %v587
        %v1163 = vunpack.c.l.b16 %v588
        %v1164 = vunpack.c.l.b16 %v589
        %v1165 = vunpack.c.l.b16 %v590
        %v1166 = vunpack.c.l.b16 %v591
        %v1167 = vunpack.c.l.b16 %v592
        %v1168 = vunpack.c.l.b16 %v593
        %v1169 = vunpack.c.l.b16 %v594
        %v1170 = vunpack.c.l.b16 %v595
        %v1171 = vunpack.c.l.b16 %v596
        %v1172 = vunpack.c.l.b16 %v597
        %v1173 = vunpack.c.l.b16 %v598
        %v1174 = vunpack.c.l.b16 %v599
        %v1175 = vunpack.c.l.b16 %v600
        %v1176 = vunpack.c.l.b16 %v601
        %v1177 = vunpack.c.l.b16 %v602
        %v1178 = vunpack.c.l.b16 %v603
        %v1179 = vunpack.c.l.b16 %v604
        %v1180 = vunpack.c.l.b16 %v605
        %v1181 = vunpack.c.l.b16 %v606
        %v1182 = vunpack.c.l.b16 %v607
        %v1183 = vunpack.c.l.b16 %v608
        %v1184 = vunpack.c.l.b16 %v609
        %v1185 = vunpack.c.l.b16 %v610
        %v1186 = vunpack.c.l.b16 %v611
        %v1187 = vunpack.c.l.b16 %v612
        %v1188 = vunpack.c.l.b16 %v613
        %v1189 = vunpack.c.l.b16 %v614
        %v1190 = vunpack.c.l.b16 %v615
        %v1191 = vunpack.c.l.b16 %v616
        %v1192 = vunpack.c.l.b16 %v617
        %v1193 = vunpack.c.l.b16 %v618
        %v1194 = vunpack.c.l.b16 %v619
        %v1195 = vunpack.c.l.b16 %v620
        %v1196 = vunpack.c.l.b16 %v621
        %v1197 = vunpack.c.l.b16 %v622
        %v1198 = vunpack.c.l.b16 %v623
        %v1199 = vunpack.c.l.b16 %v624
        %v1200 = vunpack.c.l.b16 %v625
        %v1201 = vunpack.c.l.b16 %v626
        %v1202 = vunpack.c.l.b16 %v627
        %v1203 = vunpack.c.l.b16 %v628
        %v1204 = vunpack.c.l.b16 %v629
        %v1205 = vunpack.c.l.b16 %v630
        %v1206 = vunpack.c.l.b16 %v631
        %v1207 = vunpack.c.l.b16 %v632
        %v1208 = vunpack.c.l.b16 %v633
        %v1209 = vunpack.c.l.b16 %v634
        %v1210 = vunpack.c.l.b16 %v635
        %v1211 = vunpack.c.l.b16 %v636
        %v1212 = vunpack.c.l.b16 %v637
        %v1213 = vunpack.c.l.b16 %v638
        %v1214 = vunpack.c.l.b16 %v639
        %v1215 = vunpack.c.l.b16 %v640
        %v1216 = vunpack.c.l.b16 %v641
        %v1217 = vunpack.c.l.b16 %v642
        %v1218 = vunpack.c.l.b16 %v643
        %v1219 = vunpack.c.l.b16 %v644
        %v1220 = vunpack.c.l.b16 %v645
        %v1221 = vunpack.c.l.b16 %v646
        %v1222 = vunpack.c.l.b16 %v647
        %v1223 = vunpack.c.l.b16 %v648
        %v1224 = vunpack.c.l.b16 %v649
        %v1225 = vunpack.c.l.b16 %v650
        %v1226 = vunpack.c.l.b16 %v651
        %v1227 = vunpack.c.l.b16 %v652
        %v1228 = vunpack.c.l.b16 %v653
        %v1229 = vunpack.c.l.b16 %v654
        %v1230 = vunpack.c.l.b16 %v655
        %v1231 = vunpack.c.l.b16 %v656
        %v1232 = vunpack.c.l.b16 %v657
        %v1233 = vunpack.c.l.b16 %v658
        %v1234 = vunpack.c.l.b16 %v659
        %v1235 = vunpack.c.l.b16 %v660
        %v1236 = vunpack.c.l.b16 %v661
        %v1237 = vunpack.c.l.b16 %v662
        %v1238 = vunpack.c.l.b16 %v663
        %v1239 = vunpack.c.l.b16 %v664
        %v1240 = vunpack.c.l.b16 %v665
        %v1241 = vunpack.c.l.b16 %v666
        %v1242 = vunpack.c.l.b16 %v667
        %v1243 = vunpack.c.l.b16 %v668
        %v1244 = vunpack.c.l.b16 %v669
        %v1245 = vunpack.c.l.b16 %v670
        %v1246 = vunpack.c.l.b16 %v671
        %v1247 = vunpack.c.l.b16 %v672
        %v1248 = vunpack.c.l.b16 %v673
        %v1249 = vunpack.c.l.b16 %v674
        %v1250 = vunpack.c.l.b16 %v675
        %v1251 = vunpack.c.l.b16 %v676
        %v1252 = vunpack.c.l.b16 %v677
        %v1253 = vunpack.c.l.b16 %v678
        %v1254 = vunpack.c.l.b16 %v679
        %v1255 = vunpack.c.l.b16 %v680
        %v1256 = vunpack.c.l.b16 %v681
        %v1257 = vunpack.c.l.b16 %v682
        %v1258 = vunpack.c.l.b16 %v683
        %v1259 = vunpack.c.l.b16 %v684
        %v1260 = vunpack.c.l.b16 %v685
        %v1261 = vunpack.c.l.b16 %v686
        %v1262 = vunpack.c.l.b16 %v687
        %v1263 = vunpack.c.l.b16 %v688
        %v1264 = vunpack.c.l.b16 %v689
        %v1265 = vunpack.c.l.b16 %v690
        %v1266 = vunpack.c.l.b16 %v691
        %v1267 = vunpack.c.l.b16 %v692
        %v1268 = vunpack.c.l.b16 %v693
        %v1269 = vunpack.c.l.b16 %v694
        %v1270 = vunpack.c.l.b16 %v695
        %v1271 = vunpack.c.l.b16 %v696
        %v1272 = vunpack.c.l.b16 %v697
        %v1273 = vunpack.c.l.b16 %v698
        %v1274 = vunpack.c.l.b16 %v699
        %v1275 = vunpack.c.l.b16 %v700
        %v1276 = vunpack.c.l.b16 %v701
        %v1277 = vunpack.c.l.b16 %v702
        %v1278 = vunpack.c.l.b16 %v703
        %v1279 = vunpack.c.l.b16 %v704
        %v1280 = vunpack.c.l.b16 %v705
        %v1281 = vunpack.c.l.b16 %v706
        %v1282 = vunpack.c.l.b16 %v707
        %v1283 = vunpack.c.l.b16 %v708
        %v1284 = vunpack.c.l.b16 %v709
        %v1285 = vunpack.c.l.b16 %v710
        %v1286 = vunpack.c.l.b16 %v711
        %v1287 = vunpack.c.l.b16 %v712
        %v1288 = vunpack.c.l.b16 %v713
        %v1289 = vunpack.c.l.b16 %v714
        %v1290 = vunpack.c.l.b16 %v715
        %v1291 = vunpack.c.l.b16 %v716
        %v1292 = vunpack.c.l.b16 %v717
        %v1293 = vunpack.c.l.b16 %v718
        %v1294 = vunpack.c.l.b16 %v719
        %v1295 = vunpack.c.l.b16 %v720
        %v1296 = vunpack.c.l.b16 %v721
        %v1297 = vunpack.c.l.b16 %v722
        %v1298 = vunpack.c.l.b16 %v723
        %v1299 = vunpack.c.l.b16 %v724
        %v1300 = vunpack.c.l.b16 %v725
        %v1301 = vunpack.c.l.b16 %v726
        %v1302 = vunpack.c.l.b16 %v727
        %v1303 = vunpack.c.l.b16 %v728
        %v1304 = vunpack.c.l.b16 %v729
        %v1305 = vunpack.c.l.b16 %v730
        %v1306 = vunpack.c.l.b16 %v731
        %v1307 = vunpack.c.l.b16 %v732
        %v1308 = vunpack.c.l.b16 %v733
        %v1309 = vunpack.c.l.b16 %v734
        %v1310 = vunpack.c.l.b16 %v735
        %v1311 = vunpack.c.l.b16 %v736
        %v1312 = vunpack.c.l.b16 %v737
        %v1313 = vunpack.c.l.b16 %v738
        %v1314 = vunpack.c.l.b16 %v739
        %v1315 = vunpack.c.l.b16 %v740
        %v1316 = vunpack.c.l.b16 %v741
        %v1317 = vunpack.c.l.b16 %v742
        %v1318 = vunpack.c.l.b16 %v743
        %v1319 = vunpack.c.l.b16 %v744
        %v1320 = vunpack.c.l.b16 %v745
        %v1321 = vunpack.c.l.b16 %v746
        %v1322 = vunpack.c.l.b16 %v747
        %v1323 = vunpack.c.l.b16 %v748
        %v1324 = vunpack.c.l.b16 %v749
        %v1325 = vunpack.c.l.b16 %v750
        %v1326 = vunpack.c.l.b16 %v751
        %v1327 = vunpack.c.l.b16 %v752
        %v1328 = vunpack.c.l.b16 %v753
        %v1329 = vunpack.c.l.b16 %v754
        %v1330 = vunpack.c.l.b16 %v755
        %v1331 = vunpack.c.l.b16 %v756
        %v1332 = vunpack.c.l.b16 %v757
        %v1333 = vunpack.c.l.b16 %v758
        %v1334 = vunpack.c.l.b16 %v759
        %v1335 = vunpack.c.l.b16 %v760
        %v1336 = vunpack.c.l.b16 %v761
        %v1337 = vunpack.c.l.b16 %v762
        %v1338 = vunpack.c.l.b16 %v763
        %v1339 = vunpack.c.l.b16 %v764
        %v1340 = vunpack.c.l.b16 %v765
        %v1341 = vunpack.c.l.b16 %v766
        %v1342 = vunpack.c.l.b16 %v767
        %v1343 = vunpack.c.l.b16 %v768
        %v1344 = vunpack.c.l.b16 %v769
        %v1345 = vunpack.c.l.b16 %v770
        %v1346 = vunpack.c.l.b16 %v771
        %v1347 = vunpack.c.l.b16 %v772
        %v1348 = vunpack.c.l.b16 %v773
        %v1349 = vunpack.c.l.b16 %v774
        %v1350 = vunpack.c.l.b16 %v775
        %v1351 = vunpack.c.l.b16 %v776
        %v1352 = vunpack.c.l.b16 %v777
        %v1353 = vunpack.c.l.b16 %v778
        %v1354 = vunpack.c.l.b16 %v779
        %v1355 = vunpack.c.l.b16 %v780
        %v1356 = vunpack.c.l.b16 %v781
        %v1357 = vunpack.c.l.b16 %v782
        %v1358 = vunpack.c.l.b16 %v783
        %v1359 = vunpack.c.l.b16 %v784
        %v1360 = vunpack.c.l.b16 %v785
        %v1361 = vunpack.c.l.b16 %v786
        %v1362 = vpack.c.b16 %v1107, %v1106
        %v1363 = vpack.c.b16 %v1109, %v1108
        %v1364 = vpack.c.b16 %v1111, %v1110
        %v1365 = vpack.c.b16 %v1113, %v1112
        %v1366 = vpack.c.b16 %v1115, %v1114
        %v1367 = vpack.c.b16 %v1117, %v1116
        %v1368 = vpack.c.b16 %v1119, %v1118
        %v1369 = vpack.c.b16 %v1121, %v1120
        %v1370 = vpack.c.b16 %v1123, %v1122
        %v1371 = vpack.c.b16 %v1125, %v1124
        %v1372 = vpack.c.b16 %v1127, %v1126
        %v1373 = vpack.c.b16 %v1129, %v1128
        %v1374 = vpack.c.b16 %v1131, %v1130
        %v1375 = vpack.c.b16 %v1133, %v1132
        %v1376 = vpack.c.b16 %v1135, %v1134
        %v1377 = vpack.c.b16 %v1137, %v1136
        %v1378 = vpack.c.b16 %v1139, %v1138
        %v1379 = vpack.c.b16 %v1141, %v1140
        %v1380 = vpack.c.b16 %v1143, %v1142
        %v1381 = vpack.c.b16 %v1145, %v1144
        %v1382 = vpack.c.b16 %v1147, %v1146
        %v1383 = vpack.c.b16 %v1149, %v1148
        %v1384 = vpack.c.b16 %v1151, %v1150
        %v1385 = vpack.c.b16 %v1153, %v1152
        %v1386 = vpack.c.b16 %v1155, %v1154
        %v1387 = vpack.c.b16 %v1157, %v1156
        %v1388 = vpack.c.b16 %v1159, %v1158
        %v1389 = vpack.c.b16 %v1161, %v1160
        %v1390 = vpack.c.b16 %v1163, %v1162
        %v1391 = vpack.c.b16 %v1165, %v1164
        %v1392 = vpack.c.b16 %v1167, %v1166
        %v1393 = vpack.c.b16 %v1169, %v1168
        %v1394 = vpack.c.b16 %v1171, %v1170
        %v1395 = vpack.c.b16 %v1173, %v1172
        %v1396 = vpack.c.b16 %v1175, %v1174
        %v1397 = vpack.c.b16 %v1177, %v1176
        %v1398 = vpack.c.b16 %v1179, %v1178
        %v1399 = vpack.c.b16 %v1181, %v1180
        %v1400 = vpack.c.b16 %v1183, %v1182
        %v1401 = vpack.c.b16 %v1185, %v1184
        %v1402 = vpack.c.b16 %v1187, %v1186
        %v1403 = vpack.c.b16 %v1189, %v1188
        %v1404 = vpack.c.b16 %v1191, %v1190
        %v1405 = vpack.c.b16 %v1193, %v1192
        %v1406 = vpack.c.b16 %v1195, %v1194
        %v1407 = vpack.c.b16 %v1197, %v1196
        %v1408 = vpack.c.b16 %v1199, %v1198
        %v1409 = vpack.c.b16 %v1201, %v1200
        %v1410 = vpack.c.b16 %v1203, %v1202
        %v1411 = vpack.c.b16 %v1205, %v1204
        %v1412 = vpack.c.b16 %v1207, %v1206
        %v1413 = vpack.c.b16 %v1209, %v1208
        %v1414 = vpack.c.b16 %v1211, %v1210
        %v1415 = vpack.c.b16 %v1213, %v1212
        %v1416 = vpack.c.b16 %v1215, %v1214
        %v1417 = vpack.c.b16 %v1217, %v1216
        %v1418 = vpack.c.b16 %v1219, %v1218
        %v1419 = vpack.c.b16 %v1221, %v1220
        %v1420 = vpack.c.b16 %v1223, %v1222
        %v1421 = vpack.c.b16 %v1225, %v1224
        %v1422 = vpack.c.b16 %v1227, %v1226
        %v1423 = vpack.c.b16 %v1229, %v1228
        %v1424 = vpack.c.b16 %v1231, %v1230
        %v1425 = vpack.c.b16 %v1233, %v1232
        %v1426 = vpack.c.b16 %v1235, %v1234
        %v1427 = vpack.c.b16 %v1237, %v1236
        %v1428 = vpack.c.b16 %v1239, %v1238
        %v1429 = vpack.c.b16 %v1241, %v1240
        %v1430 = vpack.c.b16 %v1243, %v1242
        %v1431 = vpack.c.b16 %v1245, %v1244
        %v1432 = vpack.c.b16 %v1247, %v1246
        %v1433 = vpack.c.b16 %v1249, %v1248
        %v1434 = vpack.c.b16 %v1251, %v1250
        %v1435 = vpack.c.b16 %v1253, %v1252
        %v1436 = vpack.c.b16 %v1255, %v1254
        %v1437 = vpack.c.b16 %v1257, %v1256
        %v1438 = vpack.c.b16 %v1259, %v1258
        %v1439 = vpack.c.b16 %v1261, %v1260
        %v1440 = vpack.c.b16 %v1263, %v1262
        %v1441 = vpack.c.b16 %v1265, %v1264
        %v1442 = vpack.c.b16 %v1267, %v1266
        %v1443 = vpack.c.b16 %v1269, %v1268
        %v1444 = vpack.c.b16 %v1271, %v1270
        %v1445 = vpack.c.b16 %v1273, %v1272
        %v1446 = vpack.c.b16 %v1275, %v1274
        %v1447 = vpack.c.b16 %v1277, %v1276
        %v1448 = vpack.c.b16 %v1279, %v1278
        %v1449 = vpack.c.b16 %v1281, %v1280
        %v1450 = vpack.c.b16 %v1283, %v1282
        %v1451 = vpack.c.b16 %v1285, %v1284
        %v1452 = vpack.c.b16 %v1287, %v1286
        %v1453 = vpack.c.b16 %v1289, %v1288
        %v1454 = vpack.c.b16 %v1291, %v1290
        %v1455 = vpack.c.b16 %v1293, %v1292
        %v1456 = vpack.c.b16 %v1295, %v1294
        %v1457 = vpack.c.b16 %v1297, %v1296
        %v1458 = vpack.c.b16 %v1299, %v1298
        %v1459 = vpack.c.b16 %v1301, %v1300
        %v1460 = vpack.c.b16 %v1303, %v1302
        %v1461 = vpack.c.b16 %v1305, %v1304
        %v1462 = vpack.c.b16 %v1307, %v1306
        %v1463 = vpack.c.b16 %v1309, %v1308
        %v1464 = vpack.c.b16 %v1311, %v1310
        %v1465 = vpack.c.b16 %v1313, %v1312
        %v1466 = vpack.c.b16 %v1315, %v1314
        %v1467 = vpack.c.b16 %v1317, %v1316
        %v1468 = vpack.c.b16 %v1319, %v1318
        %v1469 = vpack.c.b16 %v1321, %v1320
        %v1470 = vpack.c.b16 %v1323, %v1322
        %v1471 = vpack.c.b16 %v1325, %v1324
        %v1472 = vpack.c.b16 %v1327, %v1326
        %v1473 = vpack.c.b16 %v1329, %v1328
        %v1474 = vpack.c.b16 %v1331, %v1330
        %v1475 = vpack.c.b16 %v1333, %v1332
        %v1476 = vpack.c.b16 %v1335, %v1334
        %v1477 = vpack.c.b16 %v1337, %v1336
        %v1478 = vpack.c.b16 %v1339, %v1338
        %v1479 = vpack.c.b16 %v1341, %v1340
        %v1480 = vpack.c.b16 %v1343, %v1342
        %v1481 = vpack.c.b16 %v1345, %v1344
        %v1482 = vpack.c.b16 %v1347, %v1346
        %v1483 = vpack.c.b16 %v1349, %v1348
        %v1484 = vpack.c.b16 %v1351, %v1350
        %v1485 = vpack.c.b16 %v1353, %v1352
        %v1486 = vpack.c.b16 %v1355, %v1354
        %v1487 = vpack.c.b16 %v1357, %v1356
        %v1488 = vpack.c.b16 %v1359, %v1358
        %v1489 = vpack.c.b16 %v1361, %v1360
        %1618 = vmatprep.subr.bf16.mxu0 0
        %1619 = vmatpush1.bf16.msra.mxu0 %v1362
        %1620 = vmatprep.subr.bf16.mxu0 0
        %1621 = vmatpush1.bf16.msra.mxu0 %v1363
        %1622 = vmatprep.subr.bf16.mxu0 0
        %1623 = vmatpush1.bf16.msra.mxu0 %v1364
        %1624 = vmatprep.subr.bf16.mxu0 0
        %1625 = vmatpush1.bf16.msra.mxu0 %v1365
        %1626 = vmatprep.subr.bf16.mxu0 0
        %1627 = vmatpush1.bf16.msra.mxu0 %v1366
        %1628 = vmatprep.subr.bf16.mxu0 0
        %1629 = vmatpush1.bf16.msra.mxu0 %v1367
        %1630 = vmatprep.subr.bf16.mxu0 0
        %1631 = vmatpush1.bf16.msra.mxu0 %v1368
        %1632 = vmatprep.subr.bf16.mxu0 0
        %1633 = vmatpush1.bf16.msra.mxu0 %v1369
        %1634 = vmatprep.subr.bf16.mxu0 0
        %1635 = vmatpush1.bf16.msra.mxu0 %v1370
        %1636 = vmatprep.subr.bf16.mxu0 0
        %1637 = vmatpush1.bf16.msra.mxu0 %v1371
        %1638 = vmatprep.subr.bf16.mxu0 0
        %1639 = vmatpush1.bf16.msra.mxu0 %v1372
        %1640 = vmatprep.subr.bf16.mxu0 0
        %1641 = vmatpush1.bf16.msra.mxu0 %v1373
        %1642 = vmatprep.subr.bf16.mxu0 0
        %1643 = vmatpush1.bf16.msra.mxu0 %v1374
        %1644 = vmatprep.subr.bf16.mxu0 0
        %1645 = vmatpush1.bf16.msra.mxu0 %v1375
        %1646 = vmatprep.subr.bf16.mxu0 0
        %1647 = vmatpush1.bf16.msra.mxu0 %v1376
        %1648 = vmatprep.subr.bf16.mxu0 0
        %1649 = vmatpush1.bf16.msra.mxu0 %v1377
        %1650 = vmatprep.mubr.bf16.mxu0 %v819
        %1651 = vmatmul.mubr.bf16.gmra.mrb[0].mxu0 %v818
        %v1652 = vpop.f32.mrb[0].mxu0
        %v1653 = vadd.f32 %v792, %v1652
        %v1654 = vpop.f32.mrb[0].mxu0
        %v1655 = vpop.f32.mrb[0].mxu0
        %v1656 = vpop.f32.mrb[0].mxu0
        %1657 = vdwg.mxu0
        %1658 = vmatprep.subr.bf16.mxu0 0
        %1659 = vmatpush1.bf16.msra.mxu0 %v1378
        %1660 = vmatprep.subr.bf16.mxu0 0
        %1661 = vmatpush1.bf16.msra.mxu0 %v1379
        %1662 = vmatprep.subr.bf16.mxu0 0
        %1663 = vmatpush1.bf16.msra.mxu0 %v1380
        %1664 = vmatprep.subr.bf16.mxu0 0
        %1665 = vmatpush1.bf16.msra.mxu0 %v1381
        %1666 = vmatprep.subr.bf16.mxu0 0
        %1667 = vmatpush1.bf16.msra.mxu0 %v1382
        %1668 = vmatprep.subr.bf16.mxu0 0
        %1669 = vmatpush1.bf16.msra.mxu0 %v1383
        %1670 = vmatprep.subr.bf16.mxu0 0
        %1671 = vmatpush1.bf16.msra.mxu0 %v1384
        %1672 = vmatprep.subr.bf16.mxu0 0
        %1673 = vmatpush1.bf16.msra.mxu0 %v1385
        %1674 = vmatprep.subr.bf16.mxu0 0
        %1675 = vmatpush1.bf16.msra.mxu0 %v1386
        %1676 = vmatprep.subr.bf16.mxu0 0
        %1677 = vmatpush1.bf16.msra.mxu0 %v1387
        %1678 = vmatprep.subr.bf16.mxu0 0
        %1679 = vmatpush1.bf16.msra.mxu0 %v1388
        %1680 = vmatprep.subr.bf16.mxu0 0
        %1681 = vmatpush1.bf16.msra.mxu0 %v1389
        %1682 = vmatprep.subr.bf16.mxu0 0
        %1683 = vmatpush1.bf16.msra.mxu0 %v1390
        %1684 = vmatprep.subr.bf16.mxu0 0
        %1685 = vmatpush1.bf16.msra.mxu0 %v1391
        %1686 = vmatprep.subr.bf16.mxu0 0
        %1687 = vmatpush1.bf16.msra.mxu0 %v1392
        %1688 = vmatprep.subr.bf16.mxu0 0
        %1689 = vmatpush1.bf16.msra.mxu0 %v1393
        %1690 = vmatprep.mubr.bf16.mxu0 %v821
        %1691 = vmatmul.mubr.bf16.gmra.mrb[0].mxu0 %v820
        %v1692 = vpop.f32.mrb[0].mxu0
        %v1693 = vadd.f32 %v1653, %v1692
        %v1694 = vpop.f32.mrb[0].mxu0
        %v1695 = vpop.f32.mrb[0].mxu0
        %v1696 = vpop.f32.mrb[0].mxu0
        %1697 = vdwg.mxu0
        %1698 = vmatprep.subr.bf16.mxu0 0
        %1699 = vmatpush1.bf16.msra.mxu0 %v1394
        %1700 = vmatprep.subr.bf16.mxu0 0
        %1701 = vmatpush1.bf16.msra.mxu0 %v1395
        %1702 = vmatprep.subr.bf16.mxu0 0
        %1703 = vmatpush1.bf16.msra.mxu0 %v1396
        %1704 = vmatprep.subr.bf16.mxu0 0
        %1705 = vmatpush1.bf16.msra.mxu0 %v1397
        %1706 = vmatprep.subr.bf16.mxu0 0
        %1707 = vmatpush1.bf16.msra.mxu0 %v1398
        %1708 = vmatprep.subr.bf16.mxu0 0
        %1709 = vmatpush1.bf16.msra.mxu0 %v1399
        %1710 = vmatprep.subr.bf16.mxu0 0
        %1711 = vmatpush1.bf16.msra.mxu0 %v1400
        %1712 = vmatprep.subr.bf16.mxu0 0
        %1713 = vmatpush1.bf16.msra.mxu0 %v1401
        %1714 = vmatprep.subr.bf16.mxu0 0
        %1715 = vmatpush1.bf16.msra.mxu0 %v1402
        %1716 = vmatprep.subr.bf16.mxu0 0
        %1717 = vmatpush1.bf16.msra.mxu0 %v1403
        %1718 = vmatprep.subr.bf16.mxu0 0
        %1719 = vmatpush1.bf16.msra.mxu0 %v1404
        %1720 = vmatprep.subr.bf16.mxu0 0
        %1721 = vmatpush1.bf16.msra.mxu0 %v1405
        %1722 = vmatprep.subr.bf16.mxu0 0
        %1723 = vmatpush1.bf16.msra.mxu0 %v1406
        %1724 = vmatprep.subr.bf16.mxu0 0
        %1725 = vmatpush1.bf16.msra.mxu0 %v1407
        %1726 = vmatprep.subr.bf16.mxu0 0
        %1727 = vmatpush1.bf16.msra.mxu0 %v1408
        %1728 = vmatprep.subr.bf16.mxu0 0
        %1729 = vmatpush1.bf16.msra.mxu0 %v1409
        %1730 = vmatprep.mubr.bf16.mxu0 %v823
        %1731 = vmatmul.mubr.bf16.gmra.mrb[0].mxu0 %v822
        %v1732 = vpop.f32.mrb[0].mxu0
        %v1733 = vadd.f32 %v1693, %v1732
        %v1734 = vpop.f32.mrb[0].mxu0
        %v1735 = vpop.f32.mrb[0].mxu0
        %v1736 = vpop.f32.mrb[0].mxu0
        %1737 = vdwg.mxu0
        %1738 = vmatprep.subr.bf16.mxu0 0
        %1739 = vmatpush1.bf16.msra.mxu0 %v1410
        %1740 = vmatprep.subr.bf16.mxu0 0
        %1741 = vmatpush1.bf16.msra.mxu0 %v1411
        %1742 = vmatprep.subr.bf16.mxu0 0
        %1743 = vmatpush1.bf16.msra.mxu0 %v1412
        %1744 = vmatprep.subr.bf16.mxu0 0
        %1745 = vmatpush1.bf16.msra.mxu0 %v1413
        %1746 = vmatprep.subr.bf16.mxu0 0
        %1747 = vmatpush1.bf16.msra.mxu0 %v1414
        %1748 = vmatprep.subr.bf16.mxu0 0
        %1749 = vmatpush1.bf16.msra.mxu0 %v1415
        %1750 = vmatprep.subr.bf16.mxu0 0
        %1751 = vmatpush1.bf16.msra.mxu0 %v1416
        %1752 = vmatprep.subr.bf16.mxu0 0
        %1753 = vmatpush1.bf16.msra.mxu0 %v1417
        %1754 = vmatprep.subr.bf16.mxu0 0
        %1755 = vmatpush1.bf16.msra.mxu0 %v1418
        %1756 = vmatprep.subr.bf16.mxu0 0
        %1757 = vmatpush1.bf16.msra.mxu0 %v1419
        %1758 = vmatprep.subr.bf16.mxu0 0
        %1759 = vmatpush1.bf16.msra.mxu0 %v1420
        %1760 = vmatprep.subr.bf16.mxu0 0
        %1761 = vmatpush1.bf16.msra.mxu0 %v1421
        %1762 = vmatprep.subr.bf16.mxu0 0
        %1763 = vmatpush1.bf16.msra.mxu0 %v1422
        %1764 = vmatprep.subr.bf16.mxu0 0
        %1765 = vmatpush1.bf16.msra.mxu0 %v1423
        %1766 = vmatprep.subr.bf16.mxu0 0
        %1767 = vmatpush1.bf16.msra.mxu0 %v1424
        %1768 = vmatprep.subr.bf16.mxu0 0
        %1769 = vmatpush1.bf16.msra.mxu0 %v1425
        %1770 = vmatprep.mubr.bf16.mxu0 %v825
        %1771 = vmatmul.mubr.bf16.gmra.mrb[0].mxu0 %v824
        %v1772 = vpop.f32.mrb[0].mxu0
        %v1773 = vadd.f32 %v1733, %v1772
        %v1774 = vpop.f32.mrb[0].mxu0
        %v1775 = vpop.f32.mrb[0].mxu0
        %v1776 = vpop.f32.mrb[0].mxu0
        %1777 = vdwg.mxu0
        %1778 = vmatprep.subr.bf16.mxu0 0
        %1779 = vmatpush1.bf16.msra.mxu0 %v1426
        %1780 = vmatprep.subr.bf16.mxu0 0
        %1781 = vmatpush1.bf16.msra.mxu0 %v1427
        %1782 = vmatprep.subr.bf16.mxu0 0
        %1783 = vmatpush1.bf16.msra.mxu0 %v1428
        %1784 = vmatprep.subr.bf16.mxu0 0
        %1785 = vmatpush1.bf16.msra.mxu0 %v1429
        %1786 = vmatprep.subr.bf16.mxu0 0
        %1787 = vmatpush1.bf16.msra.mxu0 %v1430
        %1788 = vmatprep.subr.bf16.mxu0 0
        %1789 = vmatpush1.bf16.msra.mxu0 %v1431
        %1790 = vmatprep.subr.bf16.mxu0 0
        %1791 = vmatpush1.bf16.msra.mxu0 %v1432
        %1792 = vmatprep.subr.bf16.mxu0 0
        %1793 = vmatpush1.bf16.msra.mxu0 %v1433
        %1794 = vmatprep.subr.bf16.mxu0 0
        %1795 = vmatpush1.bf16.msra.mxu0 %v1434
        %1796 = vmatprep.subr.bf16.mxu0 0
        %1797 = vmatpush1.bf16.msra.mxu0 %v1435
        %1798 = vmatprep.subr.bf16.mxu0 0
        %1799 = vmatpush1.bf16.msra.mxu0 %v1436
        %1800 = vmatprep.subr.bf16.mxu0 0
        %1801 = vmatpush1.bf16.msra.mxu0 %v1437
        %1802 = vmatprep.subr.bf16.mxu0 0
        %1803 = vmatpush1.bf16.msra.mxu0 %v1438
        %1804 = vmatprep.subr.bf16.mxu0 0
        %1805 = vmatpush1.bf16.msra.mxu0 %v1439
        %1806 = vmatprep.subr.bf16.mxu0 0
        %1807 = vmatpush1.bf16.msra.mxu0 %v1440
        %1808 = vmatprep.subr.bf16.mxu0 0
        %1809 = vmatpush1.bf16.msra.mxu0 %v1441
        %1810 = vmatprep.mubr.bf16.mxu0 %v827
        %1811 = vmatmul.mubr.bf16.gmra.mrb[0].mxu0 %v826
        %v1812 = vpop.f32.mrb[0].mxu0
        %v1813 = vadd.f32 %v1773, %v1812
        %v1814 = vpop.f32.mrb[0].mxu0
        %v1815 = vpop.f32.mrb[0].mxu0
        %v1816 = vpop.f32.mrb[0].mxu0
        %1817 = vdwg.mxu0
        %1818 = vmatprep.subr.bf16.mxu0 0
        %1819 = vmatpush1.bf16.msra.mxu0 %v1442
        %1820 = vmatprep.subr.bf16.mxu0 0
        %1821 = vmatpush1.bf16.msra.mxu0 %v1443
        %1822 = vmatprep.subr.bf16.mxu0 0
        %1823 = vmatpush1.bf16.msra.mxu0 %v1444
        %1824 = vmatprep.subr.bf16.mxu0 0
        %1825 = vmatpush1.bf16.msra.mxu0 %v1445
        %1826 = vmatprep.subr.bf16.mxu0 0
        %1827 = vmatpush1.bf16.msra.mxu0 %v1446
        %1828 = vmatprep.subr.bf16.mxu0 0
        %1829 = vmatpush1.bf16.msra.mxu0 %v1447
        %1830 = vmatprep.subr.bf16.mxu0 0
        %1831 = vmatpush1.bf16.msra.mxu0 %v1448
        %1832 = vmatprep.subr.bf16.mxu0 0
        %1833 = vmatpush1.bf16.msra.mxu0 %v1449
        %1834 = vmatprep.subr.bf16.mxu0 0
        %1835 = vmatpush1.bf16.msra.mxu0 %v1450
        %1836 = vmatprep.subr.bf16.mxu0 0
        %1837 = vmatpush1.bf16.msra.mxu0 %v1451
        %1838 = vmatprep.subr.bf16.mxu0 0
        %1839 = vmatpush1.bf16.msra.mxu0 %v1452
        %1840 = vmatprep.subr.bf16.mxu0 0
        %1841 = vmatpush1.bf16.msra.mxu0 %v1453
        %1842 = vmatprep.subr.bf16.mxu0 0
        %1843 = vmatpush1.bf16.msra.mxu0 %v1454
        %1844 = vmatprep.subr.bf16.mxu0 0
        %1845 = vmatpush1.bf16.msra.mxu0 %v1455
        %1846 = vmatprep.subr.bf16.mxu0 0
        %1847 = vmatpush1.bf16.msra.mxu0 %v1456
        %1848 = vmatprep.subr.bf16.mxu0 0
        %1849 = vmatpush1.bf16.msra.mxu0 %v1457
        %1850 = vmatprep.mubr.bf16.mxu0 %v829
        %1851 = vmatmul.mubr.bf16.gmra.mrb[0].mxu0 %v828
        %v1852 = vpop.f32.mrb[0].mxu0
        %v1853 = vadd.f32 %v1813, %v1852
        %v1854 = vpop.f32.mrb[0].mxu0
        %v1855 = vpop.f32.mrb[0].mxu0
        %v1856 = vpop.f32.mrb[0].mxu0
        %1857 = vdwg.mxu0
        %1858 = vmatprep.subr.bf16.mxu0 0
        %1859 = vmatpush1.bf16.msra.mxu0 %v1458
        %1860 = vmatprep.subr.bf16.mxu0 0
        %1861 = vmatpush1.bf16.msra.mxu0 %v1459
        %1862 = vmatprep.subr.bf16.mxu0 0
        %1863 = vmatpush1.bf16.msra.mxu0 %v1460
        %1864 = vmatprep.subr.bf16.mxu0 0
        %1865 = vmatpush1.bf16.msra.mxu0 %v1461
        %1866 = vmatprep.subr.bf16.mxu0 0
        %1867 = vmatpush1.bf16.msra.mxu0 %v1462
        %1868 = vmatprep.subr.bf16.mxu0 0
        %1869 = vmatpush1.bf16.msra.mxu0 %v1463
        %1870 = vmatprep.subr.bf16.mxu0 0
        %1871 = vmatpush1.bf16.msra.mxu0 %v1464
        %1872 = vmatprep.subr.bf16.mxu0 0
        %1873 = vmatpush1.bf16.msra.mxu0 %v1465
        %1874 = vmatprep.subr.bf16.mxu0 0
        %1875 = vmatpush1.bf16.msra.mxu0 %v1466
        %1876 = vmatprep.subr.bf16.mxu0 0
        %1877 = vmatpush1.bf16.msra.mxu0 %v1467
        %1878 = vmatprep.subr.bf16.mxu0 0
        %1879 = vmatpush1.bf16.msra.mxu0 %v1468
        %1880 = vmatprep.subr.bf16.mxu0 0
        %1881 = vmatpush1.bf16.msra.mxu0 %v1469
        %1882 = vmatprep.subr.bf16.mxu0 0
        %1883 = vmatpush1.bf16.msra.mxu0 %v1470
        %1884 = vmatprep.subr.bf16.mxu0 0
        %1885 = vmatpush1.bf16.msra.mxu0 %v1471
        %1886 = vmatprep.subr.bf16.mxu0 0
        %1887 = vmatpush1.bf16.msra.mxu0 %v1472
        %1888 = vmatprep.subr.bf16.mxu0 0
        %1889 = vmatpush1.bf16.msra.mxu0 %v1473
        %1890 = vmatprep.mubr.bf16.mxu0 %v831
        %1891 = vmatmul.mubr.bf16.gmra.mrb[0].mxu0 %v830
        %v1892 = vpop.f32.mrb[0].mxu0
        %v1893 = vadd.f32 %v1853, %v1892
        %v1894 = vpop.f32.mrb[0].mxu0
        %v1895 = vpop.f32.mrb[0].mxu0
        %v1896 = vpop.f32.mrb[0].mxu0
        %1897 = vdwg.mxu0
        %1898 = vmatprep.subr.bf16.mxu0 0
        %1899 = vmatpush1.bf16.msra.mxu0 %v1474
        %1900 = vmatprep.subr.bf16.mxu0 0
        %1901 = vmatpush1.bf16.msra.mxu0 %v1475
        %1902 = vmatprep.subr.bf16.mxu0 0
        %1903 = vmatpush1.bf16.msra.mxu0 %v1476
        %1904 = vmatprep.subr.bf16.mxu0 0
        %1905 = vmatpush1.bf16.msra.mxu0 %v1477
        %1906 = vmatprep.subr.bf16.mxu0 0
        %1907 = vmatpush1.bf16.msra.mxu0 %v1478
        %1908 = vmatprep.subr.bf16.mxu0 0
        %1909 = vmatpush1.bf16.msra.mxu0 %v1479
        %1910 = vmatprep.subr.bf16.mxu0 0
        %1911 = vmatpush1.bf16.msra.mxu0 %v1480
        %1912 = vmatprep.subr.bf16.mxu0 0
        %1913 = vmatpush1.bf16.msra.mxu0 %v1481
        %1914 = vmatprep.subr.bf16.mxu0 0
        %1915 = vmatpush1.bf16.msra.mxu0 %v1482
        %1916 = vmatprep.subr.bf16.mxu0 0
        %1917 = vmatpush1.bf16.msra.mxu0 %v1483
        %1918 = vmatprep.subr.bf16.mxu0 0
        %1919 = vmatpush1.bf16.msra.mxu0 %v1484
        %1920 = vmatprep.subr.bf16.mxu0 0
        %1921 = vmatpush1.bf16.msra.mxu0 %v1485
        %1922 = vmatprep.subr.bf16.mxu0 0
        %1923 = vmatpush1.bf16.msra.mxu0 %v1486
        %1924 = vmatprep.subr.bf16.mxu0 0
        %1925 = vmatpush1.bf16.msra.mxu0 %v1487
        %1926 = vmatprep.subr.bf16.mxu0 0
        %1927 = vmatpush1.bf16.msra.mxu0 %v1488
        %1928 = vmatprep.subr.bf16.mxu0 0
        %1929 = vmatpush1.bf16.msra.mxu0 %v1489
        %1930 = vmatprep.mubr.bf16.mxu0 %v833
        %1931 = vmatmul.mubr.bf16.gmra.mrb[0].mxu0 %v832
        %v1932 = vpop.f32.mrb[0].mxu0
        %v1933 = vadd.f32 %v1893, %v1932
        %v1934 = vpop.f32.mrb[0].mxu0
        %v1935 = vpop.f32.mrb[0].mxu0
        %v1936 = vpop.f32.mrb[0].mxu0
        %1937 = vdwg.mxu0
        %v1938 = vld [vmem:[%s4] sm:$0xf]
        %v1939 = vld [vmem:[%s4 + $0x4] sm:$0xf]
        %v1940 = vld [vmem:[%s4 + $0x8] sm:$0xf]
        %v1941 = vld [vmem:[%s4 + $0xc] sm:$0xf]
        %v1942 = vld [vmem:[%s5] sm:$0x1]
        %v1944 = vlaneseq
        %v1945 = vshrl.u32 %v1944, 7
        %v1946 = vsub.s32 0, %v1945
        %v1947 = vrot.slane %v1942, %v1946
        %v1953 = vunpack.c.l.b16 %v1938
        %v1954 = vunpack.c.l.b16 %v1939
        %v1955 = vunpack.c.l.b16 %v1940
        %v1956 = vunpack.c.l.b16 %v1941
        %v1957 = vpack.c.b16 %v1954, %v1953
        %v1958 = vpack.c.b16 %v1956, %v1955
        %vm1961 = vcmask 261120
        %v1963 = vsel %vm1961, %v530, 0
        %1965 = vmatprep.subr.bf16.mxu0 0
        %1966 = vmatpush1.bf16.msra.mxu0 %v1957
        %1967 = vmatprep.subr.bf16.mxu0 0
        %1968 = vmatpush1.bf16.msra.mxu0 %v1958
        %1969 = vmatprep.subr.bf16.mxu0 0
        %1970 = vmatpush1.bf16.msra.mxu0 0
        %1971 = vmatprep.subr.bf16.mxu0 0
        %1972 = vmatpush1.bf16.msra.mxu0 0
        %1973 = vmatprep.subr.bf16.mxu0 0
        %1974 = vmatpush1.bf16.msra.mxu0 0
        %1975 = vmatprep.subr.bf16.mxu0 0
        %1976 = vmatpush1.bf16.msra.mxu0 0
        %1977 = vmatprep.subr.bf16.mxu0 0
        %1978 = vmatpush1.bf16.msra.mxu0 0
        %1979 = vmatprep.subr.bf16.mxu0 0
        %1980 = vmatpush1.bf16.msra.mxu0 0
        %1981 = vmatprep.subr.bf16.mxu0 0
        %1982 = vmatpush1.bf16.msra.mxu0 0
        %1983 = vmatprep.subr.bf16.mxu0 0
        %1984 = vmatpush1.bf16.msra.mxu0 0
        %1985 = vmatprep.subr.bf16.mxu0 0
        %1986 = vmatpush1.bf16.msra.mxu0 0
        %1987 = vmatprep.subr.bf16.mxu0 0
        %1988 = vmatpush1.bf16.msra.mxu0 0
        %1989 = vmatprep.subr.bf16.mxu0 0
        %1990 = vmatpush1.bf16.msra.mxu0 0
        %1991 = vmatprep.subr.bf16.mxu0 0
        %1992 = vmatpush1.bf16.msra.mxu0 0
        %1993 = vmatprep.subr.bf16.mxu0 0
        %1994 = vmatpush1.bf16.msra.mxu0 0
        %1995 = vmatprep.subr.bf16.mxu0 0
        %1996 = vmatpush1.bf16.msra.mxu0 0
        %1997 = vmatprep.mubr.bf16.mxu0 0
        %1998 = vmatmul.mubr.bf16.gmra.mrb[0].mxu0 %v1963
        %v1999 = vpop.f32.mrb[0].mxu0
        %v2000 = vadd.f32 %v1947, %v1999
        %v2001 = vpop.f32.mrb[0].mxu0
        %v2002 = vpop.f32.mrb[0].mxu0
        %v2003 = vpop.f32.mrb[0].mxu0
        %2004 = vdwg.mxu0
        %v2005 = vpack.c.bf16 %v1933, %v1933
        %v2006 = vld [vmem:[%s6] sm:$0xf]
        %v2007 = vld [vmem:[%s6 + $0x4] sm:$0xf]
        %v2008 = vld [vmem:[%s6 + $0x8] sm:$0xf]
        %v2009 = vld [vmem:[%s6 + $0xc] sm:$0xf]
        %v2014 = vunpack.c.l.b16 %v2006
        %v2015 = vunpack.c.l.b16 %v2007
        %v2016 = vunpack.c.l.b16 %v2008
        %v2017 = vunpack.c.l.b16 %v2009
        %v2018 = vpack.c.b16 %v2015, %v2014
        %v2019 = vpack.c.b16 %v2017, %v2016
        %v2023 = vsel %vm1961, %v2005, 0
        %2025 = vmatprep.subr.bf16.mxu0 0
        %2026 = vmatpush1.bf16.msra.mxu0 %v2018
        %2027 = vmatprep.subr.bf16.mxu0 0
        %2028 = vmatpush1.bf16.msra.mxu0 %v2019
        %2029 = vmatprep.subr.bf16.mxu0 0
        %2030 = vmatpush1.bf16.msra.mxu0 0
        %2031 = vmatprep.subr.bf16.mxu0 0
        %2032 = vmatpush1.bf16.msra.mxu0 0
        %2033 = vmatprep.subr.bf16.mxu0 0
        %2034 = vmatpush1.bf16.msra.mxu0 0
        %2035 = vmatprep.subr.bf16.mxu0 0
        %2036 = vmatpush1.bf16.msra.mxu0 0
        %2037 = vmatprep.subr.bf16.mxu0 0
        %2038 = vmatpush1.bf16.msra.mxu0 0
        %2039 = vmatprep.subr.bf16.mxu0 0
        %2040 = vmatpush1.bf16.msra.mxu0 0
        %2041 = vmatprep.subr.bf16.mxu0 0
        %2042 = vmatpush1.bf16.msra.mxu0 0
        %2043 = vmatprep.subr.bf16.mxu0 0
        %2044 = vmatpush1.bf16.msra.mxu0 0
        %2045 = vmatprep.subr.bf16.mxu0 0
        %2046 = vmatpush1.bf16.msra.mxu0 0
        %2047 = vmatprep.subr.bf16.mxu0 0
        %2048 = vmatpush1.bf16.msra.mxu0 0
        %2049 = vmatprep.subr.bf16.mxu0 0
        %2050 = vmatpush1.bf16.msra.mxu0 0
        %2051 = vmatprep.subr.bf16.mxu0 0
        %2052 = vmatpush1.bf16.msra.mxu0 0
        %2053 = vmatprep.subr.bf16.mxu0 0
        %2054 = vmatpush1.bf16.msra.mxu0 0
        %2055 = vmatprep.subr.bf16.mxu0 0
        %2056 = vmatpush1.bf16.msra.mxu0 0
        %2057 = vmatprep.mubr.bf16.mxu0 0
        %2058 = vmatmul.mubr.bf16.gmra.mrb[0].mxu0 %v2023
        %v2059 = vpop.f32.mrb[0].mxu0
        %v2060 = vadd.f32 0.0, %v2059
        %v2061 = vpop.f32.mrb[0].mxu0
        %v2062 = vpop.f32.mrb[0].mxu0
        %v2063 = vpop.f32.mrb[0].mxu0
        %2064 = vdwg.mxu0
        %v2065 = vpack.c.bf16 %v2000, %v2000
        %v2066 = vld [vmem:[%s7] sm:$0xf]
        %v2067 = vld [vmem:[%s7 + $0x4] sm:$0xf]
        %v2068 = vld [vmem:[%s7 + $0x8] sm:$0xf]
        %v2069 = vld [vmem:[%s7 + $0xc] sm:$0xf]
        %v2074 = vunpack.c.l.b16 %v2066
        %v2075 = vunpack.c.l.b16 %v2067
        %v2076 = vunpack.c.l.b16 %v2068
        %v2077 = vunpack.c.l.b16 %v2069
        %v2078 = vpack.c.b16 %v2075, %v2074
        %v2079 = vpack.c.b16 %v2077, %v2076
        %v2083 = vsel %vm1961, %v2065, 0
        %2085 = vmatprep.subr.bf16.mxu0 0
        %2086 = vmatpush1.bf16.msra.mxu0 %v2078
        %2087 = vmatprep.subr.bf16.mxu0 0
        %2088 = vmatpush1.bf16.msra.mxu0 %v2079
        %2089 = vmatprep.subr.bf16.mxu0 0
        %2090 = vmatpush1.bf16.msra.mxu0 0
        %2091 = vmatprep.subr.bf16.mxu0 0
        %2092 = vmatpush1.bf16.msra.mxu0 0
        %2093 = vmatprep.subr.bf16.mxu0 0
        %2094 = vmatpush1.bf16.msra.mxu0 0
        %2095 = vmatprep.subr.bf16.mxu0 0
        %2096 = vmatpush1.bf16.msra.mxu0 0
        %2097 = vmatprep.subr.bf16.mxu0 0
        %2098 = vmatpush1.bf16.msra.mxu0 0
        %2099 = vmatprep.subr.bf16.mxu0 0
        %2100 = vmatpush1.bf16.msra.mxu0 0
        %2101 = vmatprep.subr.bf16.mxu0 0
        %2102 = vmatpush1.bf16.msra.mxu0 0
        %2103 = vmatprep.subr.bf16.mxu0 0
        %2104 = vmatpush1.bf16.msra.mxu0 0
        %2105 = vmatprep.subr.bf16.mxu0 0
        %2106 = vmatpush1.bf16.msra.mxu0 0
        %2107 = vmatprep.subr.bf16.mxu0 0
        %2108 = vmatpush1.bf16.msra.mxu0 0
        %2109 = vmatprep.subr.bf16.mxu0 0
        %2110 = vmatpush1.bf16.msra.mxu0 0
        %2111 = vmatprep.subr.bf16.mxu0 0
        %2112 = vmatpush1.bf16.msra.mxu0 0
        %2113 = vmatprep.subr.bf16.mxu0 0
        %2114 = vmatpush1.bf16.msra.mxu0 0
        %2115 = vmatprep.subr.bf16.mxu0 0
        %2116 = vmatpush1.bf16.msra.mxu0 0
        %2117 = vmatprep.mubr.bf16.mxu0 0
        %2118 = vmatmul.mubr.bf16.gmra.mrb[0].mxu0 %v2083
        %v2119 = vpop.f32.mrb[0].mxu0
        %v2120 = vadd.f32 0.0, %v2119
        %v2121 = vpop.f32.mrb[0].mxu0
        %v2122 = vpop.f32.mrb[0].mxu0
        %v2123 = vpop.f32.mrb[0].mxu0
        %2124 = vdwg.mxu0
        %v2125 = vld [vmem:[%s8] sm:$0xff]
        %v2126 = vld [vmem:[%s8 + $0x8] sm:$0xff]
        %v2127 = vld [vmem:[%s8 + $0x10] sm:$0xff]
        %v2128 = vld [vmem:[%s8 + $0x18] sm:$0xff]
        %v2129 = vld [vmem:[%s9] sm:$0x1]
        %v2130 = vld [vmem:[%s10] sm:$0x1]
        %2132 = vrot.lane.b32.xlu0 %v2120, 96
        %v2133 = vpop.permute.xlu0 %2132
        %vm2134 = vcmask 130048
        %v2136 = vsel %vm2134, %v2060, 0
        %v2138 = vsel %vm2134, %v2133, 0
        %2140 = vmatprep.subr.mxu0 0.0
        %2141 = vmatpush1.xpose.msra.mxu0 %v2138
        %2142 = vmatprep.subr.mxu0 0.0
        %2143 = vmatpush1.xpose.msra.mxu0 0.0
        %2144 = vmatprep.subr.mxu0 0.0
        %2145 = vmatpush1.xpose.msra.mxu0 0.0
        %2146 = vmatprep.subr.mxu0 0.0
        %2147 = vmatpush1.xpose.msra.mxu0 0.0
        %2148 = vmatprep.subr.mxu0 0.0
        %2149 = vmatpush1.xpose.msra.mxu0 0.0
        %2150 = vmatprep.subr.mxu0 0.0
        %2151 = vmatpush1.xpose.msra.mxu0 0.0
        %2152 = vmatprep.subr.mxu0 0.0
        %2153 = vmatpush1.xpose.msra.mxu0 0.0
        %2154 = vmatprep.subr.mxu0 0.0
        %2155 = vmatpush1.xpose.msra.mxu0 0.0
        %2156 = vmatprep.subr.mxu0 0.0
        %2157 = vmatpush1.xpose.msra.mxu0 0.0
        %2158 = vmatprep.subr.mxu0 0.0
        %2159 = vmatpush1.xpose.msra.mxu0 0.0
        %2160 = vmatprep.subr.mxu0 0.0
        %2161 = vmatpush1.xpose.msra.mxu0 0.0
        %2162 = vmatprep.subr.mxu0 0.0
        %2163 = vmatpush1.xpose.msra.mxu0 0.0
        %2164 = vmatprep.subr.mxu0 0.0
        %2165 = vmatpush1.xpose.msra.mxu0 0.0
        %2166 = vmatprep.subr.mxu0 0.0
        %2167 = vmatpush1.xpose.msra.mxu0 0.0
        %2168 = vmatprep.subr.mxu0 0.0
        %2169 = vmatpush1.xpose.msra.mxu0 0.0
        %2170 = vmatprep.subr.mxu0 0.0
        %2171 = vmatpush1.xpose.msra.mxu0 0.0
        %2172 = vmatprep.subr.mxu0 0.0
        %2173 = vmatpush1.xpose.msra.mxu0 0.0
        %2174 = vmatprep.subr.mxu0 0.0
        %2175 = vmatpush1.xpose.msra.mxu0 0.0
        %2176 = vmatprep.subr.mxu0 0.0
        %2177 = vmatpush1.xpose.msra.mxu0 0.0
        %2178 = vmatprep.subr.mxu0 0.0
        %2179 = vmatpush1.xpose.msra.mxu0 0.0
        %2180 = vmatprep.subr.mxu0 0.0
        %2181 = vmatpush1.xpose.msra.mxu0 0.0
        %2182 = vmatprep.subr.mxu0 0.0
        %2183 = vmatpush1.xpose.msra.mxu0 0.0
        %2184 = vmatprep.subr.mxu0 0.0
        %2185 = vmatpush1.xpose.msra.mxu0 0.0
        %2186 = vmatprep.subr.mxu0 0.0
        %2187 = vmatpush1.xpose.msra.mxu0 0.0
        %2188 = vmatprep.subr.mxu0 0.0
        %2189 = vmatpush1.xpose.msra.mxu0 0.0
        %2190 = vmatprep.subr.mxu0 0.0
        %2191 = vmatpush1.xpose.msra.mxu0 0.0
        %2192 = vmatprep.subr.mxu0 0.0
        %2193 = vmatpush1.xpose.msra.mxu0 0.0
        %2194 = vmatprep.subr.mxu0 0.0
        %2195 = vmatpush1.xpose.msra.mxu0 0.0
        %2196 = vmatprep.subr.mxu0 0.0
        %2197 = vmatpush1.xpose.msra.mxu0 0.0
        %2198 = vmatprep.subr.mxu0 0.0
        %2199 = vmatpush1.xpose.msra.mxu0 0.0
        %2200 = vmatprep.subr.mxu0 0.0
        %2201 = vmatpush1.xpose.msra.mxu0 0.0
        %2202 = vmatprep.subr.mxu0 0.0
        %2203 = vmatpush1.xpose.msra.mxu0 0.0
        %2204 = vmatprep.mubr.f32.mxu0 0.0
        %2205 = vmatmul.mubr.f32.gmra.mrb[0].mxu0 %v2136
        %v2206 = vpop.f32.mrb[0].mxu0
        %v2207 = vadd.f32 0.0, %v2206
        %v2208 = vpop.f32.mrb[0].mxu0
        %2209 = vdwg.mxu0
        %vm2210 = vcmask 64512
        %v2211 = vsel %vm2210, %v2207, -inf
        %2212 = vmax.xlane.f32.xlu0 %v2211
        %v2213 = vpop.xlane.xlu0 %2212
        %v2214 = vsub.f32 %v2207, %v2213
        %v2215 = vmul.f32 %v2214, 1.442695
        %v2216 = vpow.pop %v2215
        %v2217 = vsel %vm2210, %v2216, 0.0
        %2218 = vadd.xlane.f32.xlu0 %v2217
        %v2219 = vpop.xlane.xlu0 %2218
        %v2220 = vrcp.pop %v2219
        %v2221 = vmul.f32 %v2216, %v2220
        %2222 = vrot.lane.b32.xlu0 %v2120, 64
        %v2223 = vpop.permute.xlu0 %2222
        %v2226 = vsel %vm2210, %v2221, 0
        %2228 = vmatprep.subr.mxu0 0.0
        %2229 = vmatpush1.msra.mxu0 %v2223
        %2230 = vmatprep.subr.mxu0 0.0
        %2231 = vmatpush1.msra.mxu0 0.0
        %2232 = vmatprep.subr.mxu0 0.0
        %2233 = vmatpush1.msra.mxu0 0.0
        %2234 = vmatprep.subr.mxu0 0.0
        %2235 = vmatpush1.msra.mxu0 0.0
        %2236 = vmatprep.subr.mxu0 0.0
        %2237 = vmatpush1.msra.mxu0 0.0
        %2238 = vmatprep.subr.mxu0 0.0
        %2239 = vmatpush1.msra.mxu0 0.0
        %2240 = vmatprep.subr.mxu0 0.0
        %2241 = vmatpush1.msra.mxu0 0.0
        %2242 = vmatprep.subr.mxu0 0.0
        %2243 = vmatpush1.msra.mxu0 0.0
        %2244 = vmatprep.subr.mxu0 0.0
        %2245 = vmatpush1.msra.mxu0 0.0
        %2246 = vmatprep.subr.mxu0 0.0
        %2247 = vmatpush1.msra.mxu0 0.0
        %2248 = vmatprep.subr.mxu0 0.0
        %2249 = vmatpush1.msra.mxu0 0.0
        %2250 = vmatprep.subr.mxu0 0.0
        %2251 = vmatpush1.msra.mxu0 0.0
        %2252 = vmatprep.subr.mxu0 0.0
        %2253 = vmatpush1.msra.mxu0 0.0
        %2254 = vmatprep.subr.mxu0 0.0
        %2255 = vmatpush1.msra.mxu0 0.0
        %2256 = vmatprep.subr.mxu0 0.0
        %2257 = vmatpush1.msra.mxu0 0.0
        %2258 = vmatprep.subr.mxu0 0.0
        %2259 = vmatpush1.msra.mxu0 0.0
        %2260 = vmatprep.subr.mxu0 0.0
        %2261 = vmatpush1.msra.mxu0 0.0
        %2262 = vmatprep.subr.mxu0 0.0
        %2263 = vmatpush1.msra.mxu0 0.0
        %2264 = vmatprep.subr.mxu0 0.0
        %2265 = vmatpush1.msra.mxu0 0.0
        %2266 = vmatprep.subr.mxu0 0.0
        %2267 = vmatpush1.msra.mxu0 0.0
        %2268 = vmatprep.subr.mxu0 0.0
        %2269 = vmatpush1.msra.mxu0 0.0
        %2270 = vmatprep.subr.mxu0 0.0
        %2271 = vmatpush1.msra.mxu0 0.0
        %2272 = vmatprep.subr.mxu0 0.0
        %2273 = vmatpush1.msra.mxu0 0.0
        %2274 = vmatprep.subr.mxu0 0.0
        %2275 = vmatpush1.msra.mxu0 0.0
        %2276 = vmatprep.subr.mxu0 0.0
        %2277 = vmatpush1.msra.mxu0 0.0
        %2278 = vmatprep.subr.mxu0 0.0
        %2279 = vmatpush1.msra.mxu0 0.0
        %2280 = vmatprep.subr.mxu0 0.0
        %2281 = vmatpush1.msra.mxu0 0.0
        %2282 = vmatprep.subr.mxu0 0.0
        %2283 = vmatpush1.msra.mxu0 0.0
        %2284 = vmatprep.subr.mxu0 0.0
        %2285 = vmatpush1.msra.mxu0 0.0
        %2286 = vmatprep.subr.mxu0 0.0
        %2287 = vmatpush1.msra.mxu0 0.0
        %2288 = vmatprep.subr.mxu0 0.0
        %2289 = vmatpush1.msra.mxu0 0.0
        %2290 = vmatprep.subr.mxu0 0.0
        %2291 = vmatpush1.msra.mxu0 0.0
        %2292 = vmatprep.mubr.f32.mxu0 0.0
        %2293 = vmatmul.mubr.f32.gmra.mrb[0].mxu0 %v2226
        %v2294 = vpop.f32.mrb[0].mxu0
        %v2295 = vadd.f32 0.0, %v2294
        %v2296 = vpop.f32.mrb[0].mxu0
        %2297 = vdwg.mxu0
        %2298 = vrot.lane.b32.xlu0 %v2060, 112
        %v2299 = vpop.permute.xlu0 %2298
        %2300 = vrot.lane.b32.xlu0 %v2120, 80
        %v2301 = vpop.permute.xlu0 %2300
        %v2302 = vsel %vm2134, %v2299, 0
        %v2304 = vsel %vm2134, %v2301, 0
        %2306 = vmatprep.subr.mxu0 0.0
        %2307 = vmatpush1.xpose.msra.mxu0 %v2304
        %2308 = vmatprep.subr.mxu0 0.0
        %2309 = vmatpush1.xpose.msra.mxu0 0.0
        %2310 = vmatprep.subr.mxu0 0.0
        %2311 = vmatpush1.xpose.msra.mxu0 0.0
        %2312 = vmatprep.subr.mxu0 0.0
        %2313 = vmatpush1.xpose.msra.mxu0 0.0
        %2314 = vmatprep.subr.mxu0 0.0
        %2315 = vmatpush1.xpose.msra.mxu0 0.0
        %2316 = vmatprep.subr.mxu0 0.0
        %2317 = vmatpush1.xpose.msra.mxu0 0.0
        %2318 = vmatprep.subr.mxu0 0.0
        %2319 = vmatpush1.xpose.msra.mxu0 0.0
        %2320 = vmatprep.subr.mxu0 0.0
        %2321 = vmatpush1.xpose.msra.mxu0 0.0
        %2322 = vmatprep.subr.mxu0 0.0
        %2323 = vmatpush1.xpose.msra.mxu0 0.0
        %2324 = vmatprep.subr.mxu0 0.0
        %2325 = vmatpush1.xpose.msra.mxu0 0.0
        %2326 = vmatprep.subr.mxu0 0.0
        %2327 = vmatpush1.xpose.msra.mxu0 0.0
        %2328 = vmatprep.subr.mxu0 0.0
        %2329 = vmatpush1.xpose.msra.mxu0 0.0
        %2330 = vmatprep.subr.mxu0 0.0
        %2331 = vmatpush1.xpose.msra.mxu0 0.0
        %2332 = vmatprep.subr.mxu0 0.0
        %2333 = vmatpush1.xpose.msra.mxu0 0.0
        %2334 = vmatprep.subr.mxu0 0.0
        %2335 = vmatpush1.xpose.msra.mxu0 0.0
        %2336 = vmatprep.subr.mxu0 0.0
        %2337 = vmatpush1.xpose.msra.mxu0 0.0
        %2338 = vmatprep.subr.mxu0 0.0
        %2339 = vmatpush1.xpose.msra.mxu0 0.0
        %2340 = vmatprep.subr.mxu0 0.0
        %2341 = vmatpush1.xpose.msra.mxu0 0.0
        %2342 = vmatprep.subr.mxu0 0.0
        %2343 = vmatpush1.xpose.msra.mxu0 0.0
        %2344 = vmatprep.subr.mxu0 0.0
        %2345 = vmatpush1.xpose.msra.mxu0 0.0
        %2346 = vmatprep.subr.mxu0 0.0
        %2347 = vmatpush1.xpose.msra.mxu0 0.0
        %2348 = vmatprep.subr.mxu0 0.0
        %2349 = vmatpush1.xpose.msra.mxu0 0.0
        %2350 = vmatprep.subr.mxu0 0.0
        %2351 = vmatpush1.xpose.msra.mxu0 0.0
        %2352 = vmatprep.subr.mxu0 0.0
        %2353 = vmatpush1.xpose.msra.mxu0 0.0
        %2354 = vmatprep.subr.mxu0 0.0
        %2355 = vmatpush1.xpose.msra.mxu0 0.0
        %2356 = vmatprep.subr.mxu0 0.0
        %2357 = vmatpush1.xpose.msra.mxu0 0.0
        %2358 = vmatprep.subr.mxu0 0.0
        %2359 = vmatpush1.xpose.msra.mxu0 0.0
        %2360 = vmatprep.subr.mxu0 0.0
        %2361 = vmatpush1.xpose.msra.mxu0 0.0
        %2362 = vmatprep.subr.mxu0 0.0
        %2363 = vmatpush1.xpose.msra.mxu0 0.0
        %2364 = vmatprep.subr.mxu0 0.0
        %2365 = vmatpush1.xpose.msra.mxu0 0.0
        %2366 = vmatprep.subr.mxu0 0.0
        %2367 = vmatpush1.xpose.msra.mxu0 0.0
        %2368 = vmatprep.subr.mxu0 0.0
        %2369 = vmatpush1.xpose.msra.mxu0 0.0
        %2370 = vmatprep.mubr.f32.mxu0 0.0
        %2371 = vmatmul.mubr.f32.gmra.mrb[0].mxu0 %v2302
        %v2372 = vpop.f32.mrb[0].mxu0
        %v2373 = vadd.f32 0.0, %v2372
        %v2374 = vpop.f32.mrb[0].mxu0
        %2375 = vdwg.mxu0
        %v2376 = vsel %vm2210, %v2373, -inf
        %2377 = vmax.xlane.f32.xlu0 %v2376
        %v2378 = vpop.xlane.xlu0 %2377
        %v2379 = vsub.f32 %v2373, %v2378
        %v2380 = vmul.f32 %v2379, 1.442695
        %v2381 = vpow.pop %v2380
        %v2382 = vsel %vm2210, %v2381, 0.0
        %2383 = vadd.xlane.f32.xlu0 %v2382
        %v2384 = vpop.xlane.xlu0 %2383
        %v2385 = vrcp.pop %v2384
        %v2386 = vmul.f32 %v2381, %v2385
        %2387 = vrot.lane.b32.xlu0 %v2120, 48
        %v2388 = vpop.permute.xlu0 %2387
        %v2391 = vsel %vm2210, %v2386, 0
        %2393 = vmatprep.subr.mxu0 0.0
        %2394 = vmatpush1.msra.mxu0 %v2388
        %2395 = vmatprep.subr.mxu0 0.0
        %2396 = vmatpush1.msra.mxu0 0.0
        %2397 = vmatprep.subr.mxu0 0.0
        %2398 = vmatpush1.msra.mxu0 0.0
        %2399 = vmatprep.subr.mxu0 0.0
        %2400 = vmatpush1.msra.mxu0 0.0
        %2401 = vmatprep.subr.mxu0 0.0
        %2402 = vmatpush1.msra.mxu0 0.0
        %2403 = vmatprep.subr.mxu0 0.0
        %2404 = vmatpush1.msra.mxu0 0.0
        %2405 = vmatprep.subr.mxu0 0.0
        %2406 = vmatpush1.msra.mxu0 0.0
        %2407 = vmatprep.subr.mxu0 0.0
        %2408 = vmatpush1.msra.mxu0 0.0
        %2409 = vmatprep.subr.mxu0 0.0
        %2410 = vmatpush1.msra.mxu0 0.0
        %2411 = vmatprep.subr.mxu0 0.0
        %2412 = vmatpush1.msra.mxu0 0.0
        %2413 = vmatprep.subr.mxu0 0.0
        %2414 = vmatpush1.msra.mxu0 0.0
        %2415 = vmatprep.subr.mxu0 0.0
        %2416 = vmatpush1.msra.mxu0 0.0
        %2417 = vmatprep.subr.mxu0 0.0
        %2418 = vmatpush1.msra.mxu0 0.0
        %2419 = vmatprep.subr.mxu0 0.0
        %2420 = vmatpush1.msra.mxu0 0.0
        %2421 = vmatprep.subr.mxu0 0.0
        %2422 = vmatpush1.msra.mxu0 0.0
        %2423 = vmatprep.subr.mxu0 0.0
        %2424 = vmatpush1.msra.mxu0 0.0
        %2425 = vmatprep.subr.mxu0 0.0
        %2426 = vmatpush1.msra.mxu0 0.0
        %2427 = vmatprep.subr.mxu0 0.0
        %2428 = vmatpush1.msra.mxu0 0.0
        %2429 = vmatprep.subr.mxu0 0.0
        %2430 = vmatpush1.msra.mxu0 0.0
        %2431 = vmatprep.subr.mxu0 0.0
        %2432 = vmatpush1.msra.mxu0 0.0
        %2433 = vmatprep.subr.mxu0 0.0
        %2434 = vmatpush1.msra.mxu0 0.0
        %2435 = vmatprep.subr.mxu0 0.0
        %2436 = vmatpush1.msra.mxu0 0.0
        %2437 = vmatprep.subr.mxu0 0.0
        %2438 = vmatpush1.msra.mxu0 0.0
        %2439 = vmatprep.subr.mxu0 0.0
        %2440 = vmatpush1.msra.mxu0 0.0
        %2441 = vmatprep.subr.mxu0 0.0
        %2442 = vmatpush1.msra.mxu0 0.0
        %2443 = vmatprep.subr.mxu0 0.0
        %2444 = vmatpush1.msra.mxu0 0.0
        %2445 = vmatprep.subr.mxu0 0.0
        %2446 = vmatpush1.msra.mxu0 0.0
        %2447 = vmatprep.subr.mxu0 0.0
        %2448 = vmatpush1.msra.mxu0 0.0
        %2449 = vmatprep.subr.mxu0 0.0
        %2450 = vmatpush1.msra.mxu0 0.0
        %2451 = vmatprep.subr.mxu0 0.0
        %2452 = vmatpush1.msra.mxu0 0.0
        %2453 = vmatprep.subr.mxu0 0.0
        %2454 = vmatpush1.msra.mxu0 0.0
        %2455 = vmatprep.subr.mxu0 0.0
        %2456 = vmatpush1.msra.mxu0 0.0
        %2457 = vmatprep.mubr.f32.mxu0 0.0
        %2458 = vmatmul.mubr.f32.gmra.mrb[0].mxu0 %v2391
        %v2459 = vpop.f32.mrb[0].mxu0
        %v2460 = vadd.f32 0.0, %v2459
        %v2461 = vpop.f32.mrb[0].mxu0
        %2462 = vdwg.mxu0
        %v2464 = vsel %vm2134, %v2460, 0
        %2466 = vmatprep.subr.mxu0 0.0
        %2467 = vmatpush1.msra.mxu0 %v2127
        %2468 = vmatprep.subr.mxu0 0.0
        %2469 = vmatpush1.msra.mxu0 %v2128
        %2470 = vmatprep.subr.mxu0 0.0
        %2471 = vmatpush1.msra.mxu0 0.0
        %2472 = vmatprep.subr.mxu0 0.0
        %2473 = vmatpush1.msra.mxu0 0.0
        %2474 = vmatprep.subr.mxu0 0.0
        %2475 = vmatpush1.msra.mxu0 0.0
        %2476 = vmatprep.subr.mxu0 0.0
        %2477 = vmatpush1.msra.mxu0 0.0
        %2478 = vmatprep.subr.mxu0 0.0
        %2479 = vmatpush1.msra.mxu0 0.0
        %2480 = vmatprep.subr.mxu0 0.0
        %2481 = vmatpush1.msra.mxu0 0.0
        %2482 = vmatprep.subr.mxu0 0.0
        %2483 = vmatpush1.msra.mxu0 0.0
        %2484 = vmatprep.subr.mxu0 0.0
        %2485 = vmatpush1.msra.mxu0 0.0
        %2486 = vmatprep.subr.mxu0 0.0
        %2487 = vmatpush1.msra.mxu0 0.0
        %2488 = vmatprep.subr.mxu0 0.0
        %2489 = vmatpush1.msra.mxu0 0.0
        %2490 = vmatprep.subr.mxu0 0.0
        %2491 = vmatpush1.msra.mxu0 0.0
        %2492 = vmatprep.subr.mxu0 0.0
        %2493 = vmatpush1.msra.mxu0 0.0
        %2494 = vmatprep.subr.mxu0 0.0
        %2495 = vmatpush1.msra.mxu0 0.0
        %2496 = vmatprep.subr.mxu0 0.0
        %2497 = vmatpush1.msra.mxu0 0.0
        %2498 = vmatprep.subr.mxu0 0.0
        %2499 = vmatpush1.msra.mxu0 0.0
        %2500 = vmatprep.subr.mxu0 0.0
        %2501 = vmatpush1.msra.mxu0 0.0
        %2502 = vmatprep.subr.mxu0 0.0
        %2503 = vmatpush1.msra.mxu0 0.0
        %2504 = vmatprep.subr.mxu0 0.0
        %2505 = vmatpush1.msra.mxu0 0.0
        %2506 = vmatprep.subr.mxu0 0.0
        %2507 = vmatpush1.msra.mxu0 0.0
        %2508 = vmatprep.subr.mxu0 0.0
        %2509 = vmatpush1.msra.mxu0 0.0
        %2510 = vmatprep.subr.mxu0 0.0
        %2511 = vmatpush1.msra.mxu0 0.0
        %2512 = vmatprep.subr.mxu0 0.0
        %2513 = vmatpush1.msra.mxu0 0.0
        %2514 = vmatprep.subr.mxu0 0.0
        %2515 = vmatpush1.msra.mxu0 0.0
        %2516 = vmatprep.subr.mxu0 0.0
        %2517 = vmatpush1.msra.mxu0 0.0
        %2518 = vmatprep.subr.mxu0 0.0
        %2519 = vmatpush1.msra.mxu0 0.0
        %2520 = vmatprep.subr.mxu0 0.0
        %2521 = vmatpush1.msra.mxu0 0.0
        %2522 = vmatprep.subr.mxu0 0.0
        %2523 = vmatpush1.msra.mxu0 0.0
        %2524 = vmatprep.subr.mxu0 0.0
        %2525 = vmatpush1.msra.mxu0 0.0
        %2526 = vmatprep.subr.mxu0 0.0
        %2527 = vmatpush1.msra.mxu0 0.0
        %2528 = vmatprep.subr.mxu0 0.0
        %2529 = vmatpush1.msra.mxu0 0.0
        %2530 = vmatprep.mubr.f32.mxu0 0.0
        %2531 = vmatmul.mubr.f32.gmra.mrb[0].mxu0 %v2464
        %v2532 = vpop.f32.mrb[0].mxu0
        %v2533 = vadd.f32 0.0, %v2532
        %v2534 = vpop.f32.mrb[0].mxu0
        %2535 = vdwg.mxu0
        %v2537 = vsel %vm2134, %v2295, 0
        %2539 = vmatprep.subr.mxu0 0.0
        %2540 = vmatpush1.msra.mxu0 %v2125
        %2541 = vmatprep.subr.mxu0 0.0
        %2542 = vmatpush1.msra.mxu0 %v2126
        %2543 = vmatprep.subr.mxu0 0.0
        %2544 = vmatpush1.msra.mxu0 0.0
        %2545 = vmatprep.subr.mxu0 0.0
        %2546 = vmatpush1.msra.mxu0 0.0
        %2547 = vmatprep.subr.mxu0 0.0
        %2548 = vmatpush1.msra.mxu0 0.0
        %2549 = vmatprep.subr.mxu0 0.0
        %2550 = vmatpush1.msra.mxu0 0.0
        %2551 = vmatprep.subr.mxu0 0.0
        %2552 = vmatpush1.msra.mxu0 0.0
        %2553 = vmatprep.subr.mxu0 0.0
        %2554 = vmatpush1.msra.mxu0 0.0
        %2555 = vmatprep.subr.mxu0 0.0
        %2556 = vmatpush1.msra.mxu0 0.0
        %2557 = vmatprep.subr.mxu0 0.0
        %2558 = vmatpush1.msra.mxu0 0.0
        %2559 = vmatprep.subr.mxu0 0.0
        %2560 = vmatpush1.msra.mxu0 0.0
        %2561 = vmatprep.subr.mxu0 0.0
        %2562 = vmatpush1.msra.mxu0 0.0
        %2563 = vmatprep.subr.mxu0 0.0
        %2564 = vmatpush1.msra.mxu0 0.0
        %2565 = vmatprep.subr.mxu0 0.0
        %2566 = vmatpush1.msra.mxu0 0.0
        %2567 = vmatprep.subr.mxu0 0.0
        %2568 = vmatpush1.msra.mxu0 0.0
        %2569 = vmatprep.subr.mxu0 0.0
        %2570 = vmatpush1.msra.mxu0 0.0
        %2571 = vmatprep.subr.mxu0 0.0
        %2572 = vmatpush1.msra.mxu0 0.0
        %2573 = vmatprep.subr.mxu0 0.0
        %2574 = vmatpush1.msra.mxu0 0.0
        %2575 = vmatprep.subr.mxu0 0.0
        %2576 = vmatpush1.msra.mxu0 0.0
        %2577 = vmatprep.subr.mxu0 0.0
        %2578 = vmatpush1.msra.mxu0 0.0
        %2579 = vmatprep.subr.mxu0 0.0
        %2580 = vmatpush1.msra.mxu0 0.0
        %2581 = vmatprep.subr.mxu0 0.0
        %2582 = vmatpush1.msra.mxu0 0.0
        %2583 = vmatprep.subr.mxu0 0.0
        %2584 = vmatpush1.msra.mxu0 0.0
        %2585 = vmatprep.subr.mxu0 0.0
        %2586 = vmatpush1.msra.mxu0 0.0
        %2587 = vmatprep.subr.mxu0 0.0
        %2588 = vmatpush1.msra.mxu0 0.0
        %2589 = vmatprep.subr.mxu0 0.0
        %2590 = vmatpush1.msra.mxu0 0.0
        %2591 = vmatprep.subr.mxu0 0.0
        %2592 = vmatpush1.msra.mxu0 0.0
        %2593 = vmatprep.subr.mxu0 0.0
        %2594 = vmatpush1.msra.mxu0 0.0
        %2595 = vmatprep.subr.mxu0 0.0
        %2596 = vmatpush1.msra.mxu0 0.0
        %2597 = vmatprep.subr.mxu0 0.0
        %2598 = vmatpush1.msra.mxu0 0.0
        %2599 = vmatprep.subr.mxu0 0.0
        %2600 = vmatpush1.msra.mxu0 0.0
        %2601 = vmatprep.subr.mxu0 0.0
        %2602 = vmatpush1.msra.mxu0 0.0
        %2603 = vmatprep.mubr.f32.mxu0 0.0
        %2604 = vmatmul.mubr.f32.gmra.mrb[0].mxu0 %v2537
        %v2605 = vpop.f32.mrb[0].mxu0
        %v2606 = vadd.f32 %v2533, %v2605
        %v2607 = vpop.f32.mrb[0].mxu0
        %2608 = vdwg.mxu0
        %v2609 = vadd.f32 %v2606, %v1933
        %v2610 = vsel %vm1961, %v2609, 0.0
        %2611 = vadd.xlane.f32.xlu0 %v2610
        %v2612 = vpop.xlane.xlu0 %2611
        %v2613 = vrcp.pop 32.0
        %v2614 = vmul.f32 %v2612, %v2613
        %v2615 = vsub.f32 %v2609, %v2614
        %v2616 = vmul.f32 %v2615, %v2615
        %v2617 = vsel %vm1961, %v2616, 0.0
        %2618 = vadd.xlane.f32.xlu0 %v2617
        %v2619 = vpop.xlane.xlu0 %2618
        %v2620 = vmul.f32 %v2619, %v2613
        %v2621 = vadd.f32 %v2620, 1e-05
        %v2622 = vrsqrt.pop %v2621
        %v2623 = vmul.f32 %v2615, %v2622
        %v2625 = vlaneseq
        %v2626 = vshrl.u32 %v2625, 7
        %v2627 = vsub.s32 0, %v2626
        %v2628 = vrot.slane %v2129, %v2627
        %v2630 = vmul.f32 %v2623, %v2628
        %v2632 = vlaneseq
        %v2633 = vshrl.u32 %v2632, 7
        %v2634 = vsub.s32 0, %v2633
        %v2635 = vrot.slane %v2130, %v2634
        %v2637 = vadd.f32 %v2630, %v2635
        %2638 = vst.msk [vmem:[%s504] sm:$0xff] %vm1961, %v2637
        %v2639 = vld [vmem:[%s11] sm:$0xff]
        %v2640 = vld [vmem:[%s11 + $0x8] sm:$0xff]
        %v2641 = vld [vmem:[%s11 + $0x10] sm:$0xff]
        %v2642 = vld [vmem:[%s11 + $0x18] sm:$0xff]
        %v2643 = vld [vmem:[%s12] sm:$0x1]
        %v2644 = vld [vmem:[%s13] sm:$0x1]
        %2645 = vrot.lane.b32.xlu0 %v2060, 96
        %v2646 = vpop.permute.xlu0 %2645
        %v2647 = vsel %vm2134, %v2120, 0
        %v2649 = vsel %vm2134, %v2646, 0
        %2651 = vmatprep.subr.mxu0 0.0
        %2652 = vmatpush1.xpose.msra.mxu0 %v2649
        %2653 = vmatprep.subr.mxu0 0.0
        %2654 = vmatpush1.xpose.msra.mxu0 0.0
        %2655 = vmatprep.subr.mxu0 0.0
        %2656 = vmatpush1.xpose.msra.mxu0 0.0
        %2657 = vmatprep.subr.mxu0 0.0
        %2658 = vmatpush1.xpose.msra.mxu0 0.0
        %2659 = vmatprep.subr.mxu0 0.0
        %2660 = vmatpush1.xpose.msra.mxu0 0.0
        %2661 = vmatprep.subr.mxu0 0.0
        %2662 = vmatpush1.xpose.msra.mxu0 0.0
        %2663 = vmatprep.subr.mxu0 0.0
        %2664 = vmatpush1.xpose.msra.mxu0 0.0
        %2665 = vmatprep.subr.mxu0 0.0
        %2666 = vmatpush1.xpose.msra.mxu0 0.0
        %2667 = vmatprep.subr.mxu0 0.0
        %2668 = vmatpush1.xpose.msra.mxu0 0.0
        %2669 = vmatprep.subr.mxu0 0.0
        %2670 = vmatpush1.xpose.msra.mxu0 0.0
        %2671 = vmatprep.subr.mxu0 0.0
        %2672 = vmatpush1.xpose.msra.mxu0 0.0
        %2673 = vmatprep.subr.mxu0 0.0
        %2674 = vmatpush1.xpose.msra.mxu0 0.0
        %2675 = vmatprep.subr.mxu0 0.0
        %2676 = vmatpush1.xpose.msra.mxu0 0.0
        %2677 = vmatprep.subr.mxu0 0.0
        %2678 = vmatpush1.xpose.msra.mxu0 0.0
        %2679 = vmatprep.subr.mxu0 0.0
        %2680 = vmatpush1.xpose.msra.mxu0 0.0
        %2681 = vmatprep.subr.mxu0 0.0
        %2682 = vmatpush1.xpose.msra.mxu0 0.0
        %2683 = vmatprep.subr.mxu0 0.0
        %2684 = vmatpush1.xpose.msra.mxu0 0.0
        %2685 = vmatprep.subr.mxu0 0.0
        %2686 = vmatpush1.xpose.msra.mxu0 0.0
        %2687 = vmatprep.subr.mxu0 0.0
        %2688 = vmatpush1.xpose.msra.mxu0 0.0
        %2689 = vmatprep.subr.mxu0 0.0
        %2690 = vmatpush1.xpose.msra.mxu0 0.0
        %2691 = vmatprep.subr.mxu0 0.0
        %2692 = vmatpush1.xpose.msra.mxu0 0.0
        %2693 = vmatprep.subr.mxu0 0.0
        %2694 = vmatpush1.xpose.msra.mxu0 0.0
        %2695 = vmatprep.subr.mxu0 0.0
        %2696 = vmatpush1.xpose.msra.mxu0 0.0
        %2697 = vmatprep.subr.mxu0 0.0
        %2698 = vmatpush1.xpose.msra.mxu0 0.0
        %2699 = vmatprep.subr.mxu0 0.0
        %2700 = vmatpush1.xpose.msra.mxu0 0.0
        %2701 = vmatprep.subr.mxu0 0.0
        %2702 = vmatpush1.xpose.msra.mxu0 0.0
        %2703 = vmatprep.subr.mxu0 0.0
        %2704 = vmatpush1.xpose.msra.mxu0 0.0
        %2705 = vmatprep.subr.mxu0 0.0
        %2706 = vmatpush1.xpose.msra.mxu0 0.0
        %2707 = vmatprep.subr.mxu0 0.0
        %2708 = vmatpush1.xpose.msra.mxu0 0.0
        %2709 = vmatprep.subr.mxu0 0.0
        %2710 = vmatpush1.xpose.msra.mxu0 0.0
        %2711 = vmatprep.subr.mxu0 0.0
        %2712 = vmatpush1.xpose.msra.mxu0 0.0
        %2713 = vmatprep.subr.mxu0 0.0
        %2714 = vmatpush1.xpose.msra.mxu0 0.0
        %2715 = vmatprep.mubr.f32.mxu0 0.0
        %2716 = vmatmul.mubr.f32.gmra.mrb[0].mxu0 %v2647
        %v2717 = vpop.f32.mrb[0].mxu0
        %v2718 = vadd.f32 0.0, %v2717
        %v2719 = vpop.f32.mrb[0].mxu0
        %2720 = vdwg.mxu0
        %v2721 = vsel %vm2210, %v2718, -inf
        %2722 = vmax.xlane.f32.xlu0 %v2721
        %v2723 = vpop.xlane.xlu0 %2722
        %v2724 = vsub.f32 %v2718, %v2723
        %v2725 = vmul.f32 %v2724, 1.442695
        %v2726 = vpow.pop %v2725
        %v2727 = vsel %vm2210, %v2726, 0.0
        %2728 = vadd.xlane.f32.xlu0 %v2727
        %v2729 = vpop.xlane.xlu0 %2728
        %v2730 = vrcp.pop %v2729
        %v2731 = vmul.f32 %v2726, %v2730
        %2732 = vrot.lane.b32.xlu0 %v2060, 64
        %v2733 = vpop.permute.xlu0 %2732
        %v2736 = vsel %vm2210, %v2731, 0
        %2738 = vmatprep.subr.mxu0 0.0
        %2739 = vmatpush1.msra.mxu0 %v2733
        %2740 = vmatprep.subr.mxu0 0.0
        %2741 = vmatpush1.msra.mxu0 0.0
        %2742 = vmatprep.subr.mxu0 0.0
        %2743 = vmatpush1.msra.mxu0 0.0
        %2744 = vmatprep.subr.mxu0 0.0
        %2745 = vmatpush1.msra.mxu0 0.0
        %2746 = vmatprep.subr.mxu0 0.0
        %2747 = vmatpush1.msra.mxu0 0.0
        %2748 = vmatprep.subr.mxu0 0.0
        %2749 = vmatpush1.msra.mxu0 0.0
        %2750 = vmatprep.subr.mxu0 0.0
        %2751 = vmatpush1.msra.mxu0 0.0
        %2752 = vmatprep.subr.mxu0 0.0
        %2753 = vmatpush1.msra.mxu0 0.0
        %2754 = vmatprep.subr.mxu0 0.0
        %2755 = vmatpush1.msra.mxu0 0.0
        %2756 = vmatprep.subr.mxu0 0.0
        %2757 = vmatpush1.msra.mxu0 0.0
        %2758 = vmatprep.subr.mxu0 0.0
        %2759 = vmatpush1.msra.mxu0 0.0
        %2760 = vmatprep.subr.mxu0 0.0
        %2761 = vmatpush1.msra.mxu0 0.0
        %2762 = vmatprep.subr.mxu0 0.0
        %2763 = vmatpush1.msra.mxu0 0.0
        %2764 = vmatprep.subr.mxu0 0.0
        %2765 = vmatpush1.msra.mxu0 0.0
        %2766 = vmatprep.subr.mxu0 0.0
        %2767 = vmatpush1.msra.mxu0 0.0
        %2768 = vmatprep.subr.mxu0 0.0
        %2769 = vmatpush1.msra.mxu0 0.0
        %2770 = vmatprep.subr.mxu0 0.0
        %2771 = vmatpush1.msra.mxu0 0.0
        %2772 = vmatprep.subr.mxu0 0.0
        %2773 = vmatpush1.msra.mxu0 0.0
        %2774 = vmatprep.subr.mxu0 0.0
        %2775 = vmatpush1.msra.mxu0 0.0
        %2776 = vmatprep.subr.mxu0 0.0
        %2777 = vmatpush1.msra.mxu0 0.0
        %2778 = vmatprep.subr.mxu0 0.0
        %2779 = vmatpush1.msra.mxu0 0.0
        %2780 = vmatprep.subr.mxu0 0.0
        %2781 = vmatpush1.msra.mxu0 0.0
        %2782 = vmatprep.subr.mxu0 0.0
        %2783 = vmatpush1.msra.mxu0 0.0
        %2784 = vmatprep.subr.mxu0 0.0
        %2785 = vmatpush1.msra.mxu0 0.0
        %2786 = vmatprep.subr.mxu0 0.0
        %2787 = vmatpush1.msra.mxu0 0.0
        %2788 = vmatprep.subr.mxu0 0.0
        %2789 = vmatpush1.msra.mxu0 0.0
        %2790 = vmatprep.subr.mxu0 0.0
        %2791 = vmatpush1.msra.mxu0 0.0
        %2792 = vmatprep.subr.mxu0 0.0
        %2793 = vmatpush1.msra.mxu0 0.0
        %2794 = vmatprep.subr.mxu0 0.0
        %2795 = vmatpush1.msra.mxu0 0.0
        %2796 = vmatprep.subr.mxu0 0.0
        %2797 = vmatpush1.msra.mxu0 0.0
        %2798 = vmatprep.subr.mxu0 0.0
        %2799 = vmatpush1.msra.mxu0 0.0
        %2800 = vmatprep.subr.mxu0 0.0
        %2801 = vmatpush1.msra.mxu0 0.0
        %2802 = vmatprep.mubr.f32.mxu0 0.0
        %2803 = vmatmul.mubr.f32.gmra.mrb[0].mxu0 %v2736
        %v2804 = vpop.f32.mrb[0].mxu0
        %v2805 = vadd.f32 0.0, %v2804
        %v2806 = vpop.f32.mrb[0].mxu0
        %2807 = vdwg.mxu0
        %2808 = vrot.lane.b32.xlu0 %v2120, 112
        %v2809 = vpop.permute.xlu0 %2808
        %2810 = vrot.lane.b32.xlu0 %v2060, 80
        %v2811 = vpop.permute.xlu0 %2810
        %v2812 = vsel %vm2134, %v2809, 0
        %v2814 = vsel %vm2134, %v2811, 0
        %2816 = vmatprep.subr.mxu0 0.0
        %2817 = vmatpush1.xpose.msra.mxu0 %v2814
        %2818 = vmatprep.subr.mxu0 0.0
        %2819 = vmatpush1.xpose.msra.mxu0 0.0
        %2820 = vmatprep.subr.mxu0 0.0
        %2821 = vmatpush1.xpose.msra.mxu0 0.0
        %2822 = vmatprep.subr.mxu0 0.0
        %2823 = vmatpush1.xpose.msra.mxu0 0.0
        %2824 = vmatprep.subr.mxu0 0.0
        %2825 = vmatpush1.xpose.msra.mxu0 0.0
        %2826 = vmatprep.subr.mxu0 0.0
        %2827 = vmatpush1.xpose.msra.mxu0 0.0
        %2828 = vmatprep.subr.mxu0 0.0
        %2829 = vmatpush1.xpose.msra.mxu0 0.0
        %2830 = vmatprep.subr.mxu0 0.0
        %2831 = vmatpush1.xpose.msra.mxu0 0.0
        %2832 = vmatprep.subr.mxu0 0.0
        %2833 = vmatpush1.xpose.msra.mxu0 0.0
        %2834 = vmatprep.subr.mxu0 0.0
        %2835 = vmatpush1.xpose.msra.mxu0 0.0
        %2836 = vmatprep.subr.mxu0 0.0
        %2837 = vmatpush1.xpose.msra.mxu0 0.0
        %2838 = vmatprep.subr.mxu0 0.0
        %2839 = vmatpush1.xpose.msra.mxu0 0.0
        %2840 = vmatprep.subr.mxu0 0.0
        %2841 = vmatpush1.xpose.msra.mxu0 0.0
        %2842 = vmatprep.subr.mxu0 0.0
        %2843 = vmatpush1.xpose.msra.mxu0 0.0
        %2844 = vmatprep.subr.mxu0 0.0
        %2845 = vmatpush1.xpose.msra.mxu0 0.0
        %2846 = vmatprep.subr.mxu0 0.0
        %2847 = vmatpush1.xpose.msra.mxu0 0.0
        %2848 = vmatprep.subr.mxu0 0.0
        %2849 = vmatpush1.xpose.msra.mxu0 0.0
        %2850 = vmatprep.subr.mxu0 0.0
        %2851 = vmatpush1.xpose.msra.mxu0 0.0
        %2852 = vmatprep.subr.mxu0 0.0
        %2853 = vmatpush1.xpose.msra.mxu0 0.0
        %2854 = vmatprep.subr.mxu0 0.0
        %2855 = vmatpush1.xpose.msra.mxu0 0.0
        %2856 = vmatprep.subr.mxu0 0.0
        %2857 = vmatpush1.xpose.msra.mxu0 0.0
        %2858 = vmatprep.subr.mxu0 0.0
        %2859 = vmatpush1.xpose.msra.mxu0 0.0
        %2860 = vmatprep.subr.mxu0 0.0
        %2861 = vmatpush1.xpose.msra.mxu0 0.0
        %2862 = vmatprep.subr.mxu0 0.0
        %2863 = vmatpush1.xpose.msra.mxu0 0.0
        %2864 = vmatprep.subr.mxu0 0.0
        %2865 = vmatpush1.xpose.msra.mxu0 0.0
        %2866 = vmatprep.subr.mxu0 0.0
        %2867 = vmatpush1.xpose.msra.mxu0 0.0
        %2868 = vmatprep.subr.mxu0 0.0
        %2869 = vmatpush1.xpose.msra.mxu0 0.0
        %2870 = vmatprep.subr.mxu0 0.0
        %2871 = vmatpush1.xpose.msra.mxu0 0.0
        %2872 = vmatprep.subr.mxu0 0.0
        %2873 = vmatpush1.xpose.msra.mxu0 0.0
        %2874 = vmatprep.subr.mxu0 0.0
        %2875 = vmatpush1.xpose.msra.mxu0 0.0
        %2876 = vmatprep.subr.mxu0 0.0
        %2877 = vmatpush1.xpose.msra.mxu0 0.0
        %2878 = vmatprep.subr.mxu0 0.0
        %2879 = vmatpush1.xpose.msra.mxu0 0.0
        %2880 = vmatprep.mubr.f32.mxu0 0.0
        %2881 = vmatmul.mubr.f32.gmra.mrb[0].mxu0 %v2812
        %v2882 = vpop.f32.mrb[0].mxu0
        %v2883 = vadd.f32 0.0, %v2882
        %v2884 = vpop.f32.mrb[0].mxu0
        %2885 = vdwg.mxu0
        %v2886 = vsel %vm2210, %v2883, -inf
        %2887 = vmax.xlane.f32.xlu0 %v2886
        %v2888 = vpop.xlane.xlu0 %2887
        %v2889 = vsub.f32 %v2883, %v2888
        %v2890 = vmul.f32 %v2889, 1.442695
        %v2891 = vpow.pop %v2890
        %v2892 = vsel %vm2210, %v2891, 0.0
        %2893 = vadd.xlane.f32.xlu0 %v2892
        %v2894 = vpop.xlane.xlu0 %2893
        %v2895 = vrcp.pop %v2894
        %v2896 = vmul.f32 %v2891, %v2895
        %2897 = vrot.lane.b32.xlu0 %v2060, 48
        %v2898 = vpop.permute.xlu0 %2897
        %v2901 = vsel %vm2210, %v2896, 0
        %2903 = vmatprep.subr.mxu0 0.0
        %2904 = vmatpush1.msra.mxu0 %v2898
        %2905 = vmatprep.subr.mxu0 0.0
        %2906 = vmatpush1.msra.mxu0 0.0
        %2907 = vmatprep.subr.mxu0 0.0
        %2908 = vmatpush1.msra.mxu0 0.0
        %2909 = vmatprep.subr.mxu0 0.0
        %2910 = vmatpush1.msra.mxu0 0.0
        %2911 = vmatprep.subr.mxu0 0.0
        %2912 = vmatpush1.msra.mxu0 0.0
        %2913 = vmatprep.subr.mxu0 0.0
        %2914 = vmatpush1.msra.mxu0 0.0
        %2915 = vmatprep.subr.mxu0 0.0
        %2916 = vmatpush1.msra.mxu0 0.0
        %2917 = vmatprep.subr.mxu0 0.0
        %2918 = vmatpush1.msra.mxu0 0.0
        %2919 = vmatprep.subr.mxu0 0.0
        %2920 = vmatpush1.msra.mxu0 0.0
        %2921 = vmatprep.subr.mxu0 0.0
        %2922 = vmatpush1.msra.mxu0 0.0
        %2923 = vmatprep.subr.mxu0 0.0
        %2924 = vmatpush1.msra.mxu0 0.0
        %2925 = vmatprep.subr.mxu0 0.0
        %2926 = vmatpush1.msra.mxu0 0.0
        %2927 = vmatprep.subr.mxu0 0.0
        %2928 = vmatpush1.msra.mxu0 0.0
        %2929 = vmatprep.subr.mxu0 0.0
        %2930 = vmatpush1.msra.mxu0 0.0
        %2931 = vmatprep.subr.mxu0 0.0
        %2932 = vmatpush1.msra.mxu0 0.0
        %2933 = vmatprep.subr.mxu0 0.0
        %2934 = vmatpush1.msra.mxu0 0.0
        %2935 = vmatprep.subr.mxu0 0.0
        %2936 = vmatpush1.msra.mxu0 0.0
        %2937 = vmatprep.subr.mxu0 0.0
        %2938 = vmatpush1.msra.mxu0 0.0
        %2939 = vmatprep.subr.mxu0 0.0
        %2940 = vmatpush1.msra.mxu0 0.0
        %2941 = vmatprep.subr.mxu0 0.0
        %2942 = vmatpush1.msra.mxu0 0.0
        %2943 = vmatprep.subr.mxu0 0.0
        %2944 = vmatpush1.msra.mxu0 0.0
        %2945 = vmatprep.subr.mxu0 0.0
        %2946 = vmatpush1.msra.mxu0 0.0
        %2947 = vmatprep.subr.mxu0 0.0
        %2948 = vmatpush1.msra.mxu0 0.0
        %2949 = vmatprep.subr.mxu0 0.0
        %2950 = vmatpush1.msra.mxu0 0.0
        %2951 = vmatprep.subr.mxu0 0.0
        %2952 = vmatpush1.msra.mxu0 0.0
        %2953 = vmatprep.subr.mxu0 0.0
        %2954 = vmatpush1.msra.mxu0 0.0
        %2955 = vmatprep.subr.mxu0 0.0
        %2956 = vmatpush1.msra.mxu0 0.0
        %2957 = vmatprep.subr.mxu0 0.0
        %2958 = vmatpush1.msra.mxu0 0.0
        %2959 = vmatprep.subr.mxu0 0.0
        %2960 = vmatpush1.msra.mxu0 0.0
        %2961 = vmatprep.subr.mxu0 0.0
        %2962 = vmatpush1.msra.mxu0 0.0
        %2963 = vmatprep.subr.mxu0 0.0
        %2964 = vmatpush1.msra.mxu0 0.0
        %2965 = vmatprep.subr.mxu0 0.0
        %2966 = vmatpush1.msra.mxu0 0.0
        %2967 = vmatprep.mubr.f32.mxu0 0.0
        %2968 = vmatmul.mubr.f32.gmra.mrb[0].mxu0 %v2901
        %v2969 = vpop.f32.mrb[0].mxu0
        %v2970 = vadd.f32 0.0, %v2969
        %v2971 = vpop.f32.mrb[0].mxu0
        %2972 = vdwg.mxu0
        %v2974 = vsel %vm2134, %v2970, 0
        %2976 = vmatprep.subr.mxu0 0.0
        %2977 = vmatpush1.msra.mxu0 %v2641
        %2978 = vmatprep.subr.mxu0 0.0
        %2979 = vmatpush1.msra.mxu0 %v2642
        %2980 = vmatprep.subr.mxu0 0.0
        %2981 = vmatpush1.msra.mxu0 0.0
        %2982 = vmatprep.subr.mxu0 0.0
        %2983 = vmatpush1.msra.mxu0 0.0
        %2984 = vmatprep.subr.mxu0 0.0
        %2985 = vmatpush1.msra.mxu0 0.0
        %2986 = vmatprep.subr.mxu0 0.0
        %2987 = vmatpush1.msra.mxu0 0.0
        %2988 = vmatprep.subr.mxu0 0.0
        %2989 = vmatpush1.msra.mxu0 0.0
        %2990 = vmatprep.subr.mxu0 0.0
        %2991 = vmatpush1.msra.mxu0 0.0
        %2992 = vmatprep.subr.mxu0 0.0
        %2993 = vmatpush1.msra.mxu0 0.0
        %2994 = vmatprep.subr.mxu0 0.0
        %2995 = vmatpush1.msra.mxu0 0.0
        %2996 = vmatprep.subr.mxu0 0.0
        %2997 = vmatpush1.msra.mxu0 0.0
        %2998 = vmatprep.subr.mxu0 0.0
        %2999 = vmatpush1.msra.mxu0 0.0
        %3000 = vmatprep.subr.mxu0 0.0
        %3001 = vmatpush1.msra.mxu0 0.0
        %3002 = vmatprep.subr.mxu0 0.0
        %3003 = vmatpush1.msra.mxu0 0.0
        %3004 = vmatprep.subr.mxu0 0.0
        %3005 = vmatpush1.msra.mxu0 0.0
        %3006 = vmatprep.subr.mxu0 0.0
        %3007 = vmatpush1.msra.mxu0 0.0
        %3008 = vmatprep.subr.mxu0 0.0
        %3009 = vmatpush1.msra.mxu0 0.0
        %3010 = vmatprep.subr.mxu0 0.0
        %3011 = vmatpush1.msra.mxu0 0.0
        %3012 = vmatprep.subr.mxu0 0.0
        %3013 = vmatpush1.msra.mxu0 0.0
        %3014 = vmatprep.subr.mxu0 0.0
        %3015 = vmatpush1.msra.mxu0 0.0
        %3016 = vmatprep.subr.mxu0 0.0
        %3017 = vmatpush1.msra.mxu0 0.0
        %3018 = vmatprep.subr.mxu0 0.0
        %3019 = vmatpush1.msra.mxu0 0.0
        %3020 = vmatprep.subr.mxu0 0.0
        %3021 = vmatpush1.msra.mxu0 0.0
        %3022 = vmatprep.subr.mxu0 0.0
        %3023 = vmatpush1.msra.mxu0 0.0
        %3024 = vmatprep.subr.mxu0 0.0
        %3025 = vmatpush1.msra.mxu0 0.0
        %3026 = vmatprep.subr.mxu0 0.0
        %3027 = vmatpush1.msra.mxu0 0.0
        %3028 = vmatprep.subr.mxu0 0.0
        %3029 = vmatpush1.msra.mxu0 0.0
        %3030 = vmatprep.subr.mxu0 0.0
        %3031 = vmatpush1.msra.mxu0 0.0
        %3032 = vmatprep.subr.mxu0 0.0
        %3033 = vmatpush1.msra.mxu0 0.0
        %3034 = vmatprep.subr.mxu0 0.0
        %3035 = vmatpush1.msra.mxu0 0.0
        %3036 = vmatprep.subr.mxu0 0.0
        %3037 = vmatpush1.msra.mxu0 0.0
        %3038 = vmatprep.subr.mxu0 0.0
        %3039 = vmatpush1.msra.mxu0 0.0
        %3040 = vmatprep.mubr.f32.mxu0 0.0
        %3041 = vmatmul.mubr.f32.gmra.mrb[0].mxu0 %v2974
        %v3042 = vpop.f32.mrb[0].mxu0
        %v3043 = vadd.f32 0.0, %v3042
        %v3044 = vpop.f32.mrb[0].mxu0
        %3045 = vdwg.mxu0
        %v3047 = vsel %vm2134, %v2805, 0
        %3049 = vmatprep.subr.mxu0 0.0
        %3050 = vmatpush1.msra.mxu0 %v2639
        %3051 = vmatprep.subr.mxu0 0.0
        %3052 = vmatpush1.msra.mxu0 %v2640
        %3053 = vmatprep.subr.mxu0 0.0
        %3054 = vmatpush1.msra.mxu0 0.0
        %3055 = vmatprep.subr.mxu0 0.0
        %3056 = vmatpush1.msra.mxu0 0.0
        %3057 = vmatprep.subr.mxu0 0.0
        %3058 = vmatpush1.msra.mxu0 0.0
        %3059 = vmatprep.subr.mxu0 0.0
        %3060 = vmatpush1.msra.mxu0 0.0
        %3061 = vmatprep.subr.mxu0 0.0
        %3062 = vmatpush1.msra.mxu0 0.0
        %3063 = vmatprep.subr.mxu0 0.0
        %3064 = vmatpush1.msra.mxu0 0.0
        %3065 = vmatprep.subr.mxu0 0.0
        %3066 = vmatpush1.msra.mxu0 0.0
        %3067 = vmatprep.subr.mxu0 0.0
        %3068 = vmatpush1.msra.mxu0 0.0
        %3069 = vmatprep.subr.mxu0 0.0
        %3070 = vmatpush1.msra.mxu0 0.0
        %3071 = vmatprep.subr.mxu0 0.0
        %3072 = vmatpush1.msra.mxu0 0.0
        %3073 = vmatprep.subr.mxu0 0.0
        %3074 = vmatpush1.msra.mxu0 0.0
        %3075 = vmatprep.subr.mxu0 0.0
        %3076 = vmatpush1.msra.mxu0 0.0
        %3077 = vmatprep.subr.mxu0 0.0
        %3078 = vmatpush1.msra.mxu0 0.0
        %3079 = vmatprep.subr.mxu0 0.0
        %3080 = vmatpush1.msra.mxu0 0.0
        %3081 = vmatprep.subr.mxu0 0.0
        %3082 = vmatpush1.msra.mxu0 0.0
        %3083 = vmatprep.subr.mxu0 0.0
        %3084 = vmatpush1.msra.mxu0 0.0
        %3085 = vmatprep.subr.mxu0 0.0
        %3086 = vmatpush1.msra.mxu0 0.0
        %3087 = vmatprep.subr.mxu0 0.0
        %3088 = vmatpush1.msra.mxu0 0.0
        %3089 = vmatprep.subr.mxu0 0.0
        %3090 = vmatpush1.msra.mxu0 0.0
        %3091 = vmatprep.subr.mxu0 0.0
        %3092 = vmatpush1.msra.mxu0 0.0
        %3093 = vmatprep.subr.mxu0 0.0
        %3094 = vmatpush1.msra.mxu0 0.0
        %3095 = vmatprep.subr.mxu0 0.0
        %3096 = vmatpush1.msra.mxu0 0.0
        %3097 = vmatprep.subr.mxu0 0.0
        %3098 = vmatpush1.msra.mxu0 0.0
        %3099 = vmatprep.subr.mxu0 0.0
        %3100 = vmatpush1.msra.mxu0 0.0
        %3101 = vmatprep.subr.mxu0 0.0
        %3102 = vmatpush1.msra.mxu0 0.0
        %3103 = vmatprep.subr.mxu0 0.0
        %3104 = vmatpush1.msra.mxu0 0.0
        %3105 = vmatprep.subr.mxu0 0.0
        %3106 = vmatpush1.msra.mxu0 0.0
        %3107 = vmatprep.subr.mxu0 0.0
        %3108 = vmatpush1.msra.mxu0 0.0
        %3109 = vmatprep.subr.mxu0 0.0
        %3110 = vmatpush1.msra.mxu0 0.0
        %3111 = vmatprep.subr.mxu0 0.0
        %3112 = vmatpush1.msra.mxu0 0.0
        %3113 = vmatprep.mubr.f32.mxu0 0.0
        %3114 = vmatmul.mubr.f32.gmra.mrb[0].mxu0 %v3047
        %v3115 = vpop.f32.mrb[0].mxu0
        %v3116 = vadd.f32 %v3043, %v3115
        %v3117 = vpop.f32.mrb[0].mxu0
        %3118 = vdwg.mxu0
        %v3119 = vadd.f32 %v3116, %v2000
        %v3120 = vsel %vm1961, %v3119, 0.0
        %3121 = vadd.xlane.f32.xlu0 %v3120
        %v3122 = vpop.xlane.xlu0 %3121
        %v3123 = vmul.f32 %v3122, %v2613
        %v3124 = vsub.f32 %v3119, %v3123
        %v3125 = vmul.f32 %v3124, %v3124
        %v3126 = vsel %vm1961, %v3125, 0.0
        %3127 = vadd.xlane.f32.xlu0 %v3126
        %v3128 = vpop.xlane.xlu0 %3127
        %v3129 = vmul.f32 %v3128, %v2613
        %v3130 = vadd.f32 %v3129, 1e-05
        %v3131 = vrsqrt.pop %v3130
        %v3132 = vmul.f32 %v3124, %v3131
        %v3134 = vlaneseq
        %v3135 = vshrl.u32 %v3134, 7
        %v3136 = vsub.s32 0, %v3135
        %v3137 = vrot.slane %v2643, %v3136
        %v3139 = vmul.f32 %v3132, %v3137
        %v3141 = vlaneseq
        %v3142 = vshrl.u32 %v3141, 7
        %v3143 = vsub.s32 0, %v3142
        %v3144 = vrot.slane %v2644, %v3143
        %v3146 = vadd.f32 %v3139, %v3144
        %3147 = vst.msk [vmem:[%s511] sm:$0xff] %vm1961, %v3146
        %s3148 = sand.u32 %s345, 1
        %s3149 = scalar_lea.sflag [#allocation3], %s3148
        %s3150 = sand.u32 %s345, 1
        %s3151 = smul.addr %s3150, 8
        %s3152 = scalar_lea.vmem [#allocation2], %s3151
        %s3153 = sand.u32 %s371, 1
        %s3154 = scalar_lea.sflag [#allocation5], %s3153
        %s3155 = sand.u32 %s371, 1
        %s3156 = smul.addr %s3155, 8
        %s3157 = scalar_lea.vmem [#allocation4], %s3156
        // Predicated region
        $region77: #{tpu_custom_call.1} parent=75 // pred_check
          %p3158 = pneg %p355
        $region78: #{tpu_custom_call.1} parent=75 // pred_check_branch
          %3160 = sbr.rel (%p3158) target = $region80
        $region79: #{tpu_custom_call.1} parent=75 // pred_region
          %s3162 = ssub.s32 128, 128
          %3163 = vsyncadd %s3149, %s3162
          %s3164 = smul.addr %s33, 128
          %s3165 = scalar_lea.hbm %s14, %s3164
          %s3167 = sshll.u32 %s3152, 4
          %s3168 = int_to_ptr.vmem [resolvable:$true] %s3167
          %3170 = dma.vmem_to_hbm [thread:$0]  %s3168, 128, %s3165, %s3149
        $region80: #{tpu_custom_call.1} parent=75 // pred_fallthru
          _
        // Predicated region
        $region81: #{tpu_custom_call.1} parent=75 // pred_check
          %p3171 = pneg %p381
        $region82: #{tpu_custom_call.1} parent=75 // pred_check_branch
          %3173 = sbr.rel (%p3171) target = $region84
        $region83: #{tpu_custom_call.1} parent=75 // pred_region
          %s3175 = ssub.s32 128, 128
          %3176 = vsyncadd %s3154, %s3175
          %s3177 = smul.addr %s33, 128
          %s3178 = scalar_lea.hbm %s15, %s3177
          %s3180 = sshll.u32 %s3157, 4
          %s3181 = int_to_ptr.vmem [resolvable:$true] %s3180
          %3183 = dma.vmem_to_hbm [thread:$0]  %s3181, 128, %s3178, %s3154
        $region84: #{tpu_custom_call.1} parent=75 // pred_fallthru
          _
      $region76: #{tpu_custom_call.1} parent=5 // pred_fallthru
        _
      %p3184 = scmp.le.s32.totalorder 2, %s28
      // Predicated region
      $region85: #{tpu_custom_call.1} parent=5 // pred_check
        %p3185 = pneg %p3184
      $region86: #{tpu_custom_call.1} parent=5 // pred_check_branch
        %3187 = sbr.rel (%p3185) target = $region88
      $region87: #{tpu_custom_call.1} parent=5 // pred_region
        %s3188 = ssub.s32 %s28, 2
        // Predicated region
        $region89: #{tpu_custom_call.1} parent=87 // pred_check
          %p3189 = pneg %p361
        $region90: #{tpu_custom_call.1} parent=87 // pred_check_branch
          %3191 = sbr.rel (%p3189) target = $region92
        $region91: #{tpu_custom_call.1} parent=87 // pred_region
          %s3192 = sand.u32 %s346, 1
          %s3193 = scalar_lea.sflag [#allocation3], %s3192
          %s3194 = sand.u32 %s346, 1
          %s3195 = smul.addr %s3194, 8
          %s3196 = scalar_lea.vmem [#allocation2], %s3195
          %3197 = dma.done %s3193, 128
        $region92: #{tpu_custom_call.1} parent=87 // pred_fallthru
          _
        // Predicated region
        $region93: #{tpu_custom_call.1} parent=87 // pred_check
          %p3198 = pneg %p387
        $region94: #{tpu_custom_call.1} parent=87 // pred_check_branch
          %3200 = sbr.rel (%p3198) target = $region96
        $region95: #{tpu_custom_call.1} parent=87 // pred_region
          %s3201 = sand.u32 %s372, 1
          %s3202 = scalar_lea.sflag [#allocation5], %s3201
          %s3203 = sand.u32 %s372, 1
          %s3204 = smul.addr %s3203, 8
          %s3205 = scalar_lea.vmem [#allocation4], %s3204
          %3206 = dma.done %s3202, 128
        $region96: #{tpu_custom_call.1} parent=87 // pred_fallthru
          _
      $region88: #{tpu_custom_call.1} parent=5 // pred_fallthru
        _
    $region6: #{tpu_custom_call.1} parent=1 // loop_footer
      %s32 = sadd.s32 1, %s28
    $region7: #{tpu_custom_call.1} parent=1 // loop_footer_branch
      %27 = sbr.rel target = $region3
    $region8: #{tpu_custom_call.1} parent=1 // loop_exit
      _
    %3207 = vsyncpa [#allocation3], 1
    %s3208 = scalar_lea.sflag [#allocation3], 1
    %3209 = vsyncpa %s3208, 1
    %3210 = vsyncpa [#allocation5], 1
    %s3211 = scalar_lea.sflag [#allocation5], 1
    %3212 = vsyncpa %s3211, 1

</llo_original>
